<compile_context>
chip_gen: v5e
topology: v5e:2x2
jax: 0.10.0
libtpu: 0.0.40
codegen_flags: <defaults>
</compile_context>

<pallas_src>
import functools

import jax
import jax.numpy as jnp
from jax.experimental import pallas as pl
from jax.experimental.pallas import tpu as pltpu


# ----------------------------------------------------------------------------
# Pallas kernels
# ----------------------------------------------------------------------------
def _sum_all(x):
    # (M, N) -> (1, 1); composed single-axis reductions (robust Mosaic lowering).
    return jnp.sum(jnp.sum(x, axis=1, keepdims=True), axis=0, keepdims=True)


def _conv_fused_kernel(p_ref, w_ref, b_ref, scale_ref, shift_ref, o_ref):
    """One sample: conv-as-matmul + bias + per-sample ternarize + eval-BN affine.

    p_ref:     (M, K)  im2col patches of one sample (M = OH*OW, K = KH*KW*Cin)
    w_ref:     (K, N)  conv weight (N = Cout)
    b_ref:     (1, N)  conv bias
    scale_ref: (1, N)  gamma / sqrt(var + eps)
    shift_ref: (1, N)  beta - mean * scale
    o_ref:     (M, N)
    """
    acc = jnp.dot(p_ref[...], w_ref[...], preferred_element_type=jnp.float32)
    acc = acc + b_ref[...]

    m, n = acc.shape
    numel = m * n
    ax = jnp.abs(acc)
    # delta_i = 0.7 * mean(|x_i|) over the whole sample (matches torch ternarize)
    d = (0.7 / numel) * _sum_all(ax)                           # (1, 1)
    sel = (ax > d).astype(jnp.float32)
    count = _sum_all(sel)                                      # (1, 1)
    abssum = _sum_all(ax * sel)                                # (1, 1)
    alpha = jnp.where(count > 0.0, abssum / jnp.maximum(count, 1.0), 0.0)
    tern = alpha * ((acc > d).astype(jnp.float32) - (acc < -d).astype(jnp.float32))

    # Eval-mode BatchNorm folded to a per-channel affine (channels on lane axis).
    o_ref[...] = tern * scale_ref[...] + shift_ref[...]


def ternary_conv_block(patches, w_kn, bias, bn_scale, bn_shift):
    """patches: (B, M, K); w_kn: (K, N); bias/bn_*: (1, N) -> (B, M, N) f32."""
    B, M, K = patches.shape
    N = w_kn.shape[1]
    flops = 2 * B * M * K * N
    bytes_accessed = 4 * (B * M * K + K * N + B * M * N + 3 * N)
    return pl.pallas_call(
        _conv_fused_kernel,
        out_shape=jax.ShapeDtypeStruct((B, M, N), jnp.float32),
        grid=(B,),
        in_specs=[
            pl.BlockSpec((None, M, K), lambda b: (b, 0, 0)),   # one sample's patches
            pl.BlockSpec((K, N), lambda b: (0, 0)),            # weight (resident)
            pl.BlockSpec((1, N), lambda b: (0, 0)),            # bias
            pl.BlockSpec((1, N), lambda b: (0, 0)),            # BN scale
            pl.BlockSpec((1, N), lambda b: (0, 0)),            # BN shift
        ],
        out_specs=pl.BlockSpec((None, M, N), lambda b: (b, 0, 0)),
        compiler_params=pltpu.CompilerParams(
            dimension_semantics=("parallel",)),
        cost_estimate=pl.CostEstimate(
            flops=flops, transcendentals=0, bytes_accessed=bytes_accessed),
    )(patches, w_kn, bias, bn_scale, bn_shift)


def _fc_fused_kernel(x_ref, w_ref, b_ref, o_ref, *, apply_relu):
    """Row tile: matmul + bias + per-row ternarize (+ optional fused ReLU)."""
    acc = jnp.dot(x_ref[...], w_ref[...], preferred_element_type=jnp.float32)
    acc = acc + b_ref[...]

    n = acc.shape[1]
    ax = jnp.abs(acc)
    d = (0.7 / n) * jnp.sum(ax, axis=1, keepdims=True)         # (TM, 1)
    sel = (ax > d).astype(jnp.float32)
    count = jnp.sum(sel, axis=1, keepdims=True)
    abssum = jnp.sum(ax * sel, axis=1, keepdims=True)
    alpha = jnp.where(count > 0.0, abssum / jnp.maximum(count, 1.0), 0.0)
    tern = alpha * ((acc > d).astype(jnp.float32) - (acc < -d).astype(jnp.float32))
    if apply_relu:
        tern = jnp.maximum(tern, 0.0)
    o_ref[...] = tern


def ternary_linear(x, w_kn, bias, *, apply_relu=False, block_m=128):
    """x: (B, K); w_kn: (K, N); bias: (1, N) -> (B, N) f32."""
    B, K = x.shape
    N = w_kn.shape[1]
    tm = min(block_m, B)
    flops = 2 * B * K * N
    bytes_accessed = 4 * (B * K + K * N + B * N + N)
    return pl.pallas_call(
        functools.partial(_fc_fused_kernel, apply_relu=apply_relu),
        out_shape=jax.ShapeDtypeStruct((B, N), jnp.float32),
        grid=(pl.cdiv(B, tm),),
        in_specs=[
            pl.BlockSpec((tm, K), lambda i: (i, 0)),
            pl.BlockSpec((K, N), lambda i: (0, 0)),
            pl.BlockSpec((1, N), lambda i: (0, 0)),
        ],
        out_specs=pl.BlockSpec((tm, N), lambda i: (i, 0)),
        compiler_params=pltpu.CompilerParams(
            dimension_semantics=("parallel",)),
        cost_estimate=pl.CostEstimate(
            flops=flops, transcendentals=0, bytes_accessed=bytes_accessed),
    )(x, w_kn, bias)


# ----------------------------------------------------------------------------
# Plain-JAX glue (all NHWC, no transposes)
# ----------------------------------------------------------------------------
def im2col_nhwc(x, kh, kw):
    """x: (B, H, W, C) -> (B, OH*OW, KH*KW*C), feature order (kh, kw, cin)."""
    B, H, W, C = x.shape
    OH, OW = H - kh + 1, W - kw + 1
    cols = [x[:, i:i + OH, j:j + OW, :] for i in range(kh) for j in range(kw)]
    patches = jnp.stack(cols, axis=3)                          # (B, OH, OW, KH*KW, C)
    return patches.reshape(B, OH * OW, kh * kw * C), (OH, OW)


def maxpool2x2_nhwc(x):
    B, H, W, C = x.shape
    return jnp.max(x.reshape(B, H // 2, 2, W // 2, 2, C), axis=(2, 4))


# ----------------------------------------------------------------------------
# Parameter preparation (done ONCE, outside the forward hot path)
# ----------------------------------------------------------------------------
def _bn_affine(gamma, beta, mean, var, eps=1e-5):
    scale = gamma / jnp.sqrt(var + eps)
    shift = beta - mean * scale
    return scale.reshape(1, -1), shift.reshape(1, -1)


def prepare_params(p):
    """Convert torch-layout params into kernel-ready (K, N) layouts."""
    prep = {}
    # Conv weights: (Cout, Cin, KH, KW) -> (KH, KW, Cin, Cout) -> (KH*KW*Cin, Cout)
    for name in ("conv1", "conv2"):
        w = p[name + "_w"]
        cout = w.shape[0]
        prep[name + "_w"] = jnp.transpose(w, (2, 3, 1, 0)).reshape(-1, cout)
        prep[name + "_b"] = p[name + "_b"].reshape(1, -1)
    prep["bn1_scale"], prep["bn1_shift"] = _bn_affine(
        p["bn1_g"], p["bn1_b"], p["bn1_m"], p["bn1_v"])
    prep["bn2_scale"], prep["bn2_shift"] = _bn_affine(
        p["bn2_g"], p["bn2_b"], p["bn2_m"], p["bn2_v"])
    # fc1: permute input columns from torch NCHW-flatten (c,h,w) to NHWC-flatten
    # (h,w,c) order, store as (K, N).
    w1 = p["fc1_w"].reshape(512, 64, 4, 4)                     # (N, C, H, W)
    w1 = jnp.transpose(w1, (0, 2, 3, 1)).reshape(512, 1024)    # columns now (H, W, C)
    prep["fc1_w"] = w1.T                                       # (1024, 512)
    prep["fc1_b"] = p["fc1_b"].reshape(1, -1)
    prep["fc2_w"] = p["fc2_w"].T                               # (512, 10)
    prep["fc2_b"] = p["fc2_b"].reshape(1, -1)
    return prep


# ----------------------------------------------------------------------------
# LeNet5_T forward (conv -> ternarize -> BN fused in-kernel; pool/relu in glue)
# ----------------------------------------------------------------------------
def lenet5_t_forward(prep, x_nchw):
    B = x_nchw.shape[0]
    x = jnp.transpose(x_nchw, (0, 2, 3, 1))                    # NHWC, once at entry

    # conv1 (+bias+ternarize+bn1 fused), then 2x2 maxpool + relu
    patches, (oh, ow) = im2col_nhwc(x, 5, 5)
    y = ternary_conv_block(patches, prep["conv1_w"], prep["conv1_b"],
                           prep["bn1_scale"], prep["bn1_shift"])
    y = jax.nn.relu(maxpool2x2_nhwc(y.reshape(B, oh, ow, -1)))

    # conv2 (+bias+ternarize+bn2 fused), then 2x2 maxpool + relu
    patches, (oh, ow) = im2col_nhwc(y, 5, 5)
    y = ternary_conv_block(patches, prep["conv2_w"], prep["conv2_b"],
                           prep["bn2_scale"], prep["bn2_shift"])
    y = jax.nn.relu(maxpool2x2_nhwc(y.reshape(B, oh, ow, -1)))

    # flatten (NHWC order; fc1 columns were permuted at prep time to match
    # torch's NCHW .view(-1, 1024))
    h = y.reshape(B, 1024)
    h = ternary_linear(h, prep["fc1_w"], prep["fc1_b"], apply_relu=True)
    return ternary_linear(h, prep["fc2_w"], prep["fc2_b"], apply_relu=False)


def init_params(key):
    ks = jax.random.split(key, 12)
    return {
        "conv1_w": 0.1 * jax.random.normal(ks[0], (32, 1, 5, 5), jnp.float32),
        "conv1_b": 0.1 * jax.random.normal(ks[1], (32,), jnp.float32),
        "conv2_w": 0.1 * jax.random.normal(ks[2], (64, 32, 5, 5), jnp.float32),
        "conv2_b": 0.1 * jax.random.normal(ks[3], (64,), jnp.float32),
        "fc1_w": 0.05 * jax.random.normal(ks[4], (512, 1024), jnp.float32),
        "fc1_b": 0.05 * jax.random.normal(ks[5], (512,), jnp.float32),
        "fc2_w": 0.05 * jax.random.normal(ks[6], (10, 512), jnp.float32),
        "fc2_b": 0.05 * jax.random.normal(ks[7], (10,), jnp.float32),
        # BatchNorm (eval-mode) parameters / running stats
        "bn1_g": 1.0 + 0.1 * jax.random.normal(ks[8], (32,), jnp.float32),
        "bn1_b": 0.1 * jax.random.normal(ks[9], (32,), jnp.float32),
        "bn1_m": jnp.zeros((32,), jnp.float32),
        "bn1_v": jnp.ones((32,), jnp.float32),
        "bn2_g": 1.0 + 0.1 * jax.random.normal(ks[10], (64,), jnp.float32),
        "bn2_b": 0.1 * jax.random.normal(ks[11], (64,), jnp.float32),
        "bn2_m": jnp.zeros((64,), jnp.float32),
        "bn2_v": jnp.ones((64,), jnp.float32),
    }


if __name__ == "__main__":
    key = jax.random.PRNGKey(0)
    pkey, xkey = jax.random.split(key)
    params = init_params(pkey)
    prep = prepare_params(params)            # one-time weight reshapes / BN fold
    # LeNet5_T requires 28x28 single-channel input (64*4*4 = 1024 flatten).
    x = jax.random.normal(xkey, (2, 1, 28, 28), jnp.float32)

    fwd = jax.jit(functools.partial(lenet5_t_forward, prep))
    out = fwd(x)
    jax.block_until_ready(out)
    assert out.shape == (2, 10) and out.dtype == jnp.float32
    assert bool(jnp.all(jnp.isfinite(out)))
    print("KERNEL_OK")
</pallas_src>

<mosaic_0001>
module attributes {stable_mosaic.version = 11 : i64} {
  func.func @_conv_fused_kernel(%arg0: i32, %arg1: memref<1x576x25xf32, #tpu.memory_space<vmem>>, %arg2: memref<25x32xf32, #tpu.memory_space<vmem>>, %arg3: memref<1x32xf32, #tpu.memory_space<vmem>>, %arg4: memref<1x32xf32, #tpu.memory_space<vmem>>, %arg5: memref<1x32xf32, #tpu.memory_space<vmem>>, %arg6: memref<1x576x32xf32, #tpu.memory_space<vmem>>) attributes {dimension_semantics = [#tpu.dimension_semantics<parallel>], iteration_bounds = array<i64: 2>, scalar_prefetch = 0 : i64, scratch_operands = 0 : i64, tpu.core_type = #tpu.core_type<tc>, window_params = [{transform_indices = @transform_0, window_bounds = array<i64: 1, 576, 25>}, {pipeline_mode = #tpu.pipeline_mode<synchronous>, transform_indices = @transform_1, window_bounds = array<i64: 25, 32>}, {pipeline_mode = #tpu.pipeline_mode<synchronous>, transform_indices = @transform_2, window_bounds = array<i64: 1, 32>}, {pipeline_mode = #tpu.pipeline_mode<synchronous>, transform_indices = @transform_3, window_bounds = array<i64: 1, 32>}, {pipeline_mode = #tpu.pipeline_mode<synchronous>, transform_indices = @transform_4, window_bounds = array<i64: 1, 32>}, {transform_indices = @transform_5, window_bounds = array<i64: 1, 576, 32>}]} {
    %c0 = arith.constant 0 : index
    %c0_0 = arith.constant 0 : index
    %c0_1 = arith.constant 0 : index
    %0 = vector.load %arg1[%c0, %c0_0, %c0_1] : memref<1x576x25xf32, #tpu.memory_space<vmem>>, vector<1x576x25xf32>
    %1 = vector.shape_cast %0 : vector<1x576x25xf32> to vector<576x25xf32>
    %c0_2 = arith.constant 0 : index
    %c0_3 = arith.constant 0 : index
    %2 = vector.load %arg2[%c0_2, %c0_3] : memref<25x32xf32, #tpu.memory_space<vmem>>, vector<25x32xf32>
    %cst = arith.constant dense<0.000000e+00> : vector<576x32xf32>
    %3 = tpu.matmul %1, %2, %cst {dimension_numbers = #tpu.dot_dimension_numbers<[1], [0], [0], [1], [0, 0, 1, 1], [], []>} : vector<576x25xf32>, vector<25x32xf32>, vector<576x32xf32> -> vector<576x32xf32>
    %c0_4 = arith.constant 0 : index
    %c0_5 = arith.constant 0 : index
    %4 = vector.load %arg3[%c0_4, %c0_5] : memref<1x32xf32, #tpu.memory_space<vmem>>, vector<1x32xf32>
    %5 = vector.broadcast %4 : vector<1x32xf32> to vector<576x32xf32>
    %6 = arith.addf %3, %5 : vector<576x32xf32>
    %7 = math.absf %6 : vector<576x32xf32>
    %cst_6 = arith.constant dense<0.000000e+00> : vector<576xf32>
    %8 = vector.multi_reduction <add>, %7, %cst_6 [1] : vector<576x32xf32> to vector<576xf32>
    %9 = vector.shape_cast %8 : vector<576xf32> to vector<576x1xf32>
    %cst_7 = arith.constant dense<0.000000e+00> : vector<1xf32>
    %10 = vector.multi_reduction <add>, %9, %cst_7 [0] : vector<576x1xf32> to vector<1xf32>
    %11 = vector.shape_cast %10 : vector<1xf32> to vector<1x1xf32>
    %cst_8 = arith.constant 3.79774319E-5 : f32
    %12 = vector.broadcast %cst_8 : f32 to vector<1x1xf32>
    %13 = arith.mulf %12, %11 : vector<1x1xf32>
    %14 = vector.broadcast %13 : vector<1x1xf32> to vector<576x32xf32>
    %15 = arith.cmpf ogt, %7, %14 : vector<576x32xf32>
    %16 = arith.extui %15 : vector<576x32xi1> to vector<576x32xi32>
    %17 = arith.sitofp %16 : vector<576x32xi32> to vector<576x32xf32>
    %cst_9 = arith.constant dense<0.000000e+00> : vector<576xf32>
    %18 = vector.multi_reduction <add>, %17, %cst_9 [1] : vector<576x32xf32> to vector<576xf32>
    %19 = vector.shape_cast %18 : vector<576xf32> to vector<576x1xf32>
    %cst_10 = arith.constant dense<0.000000e+00> : vector<1xf32>
    %20 = vector.multi_reduction <add>, %19, %cst_10 [0] : vector<576x1xf32> to vector<1xf32>
    %21 = vector.shape_cast %20 : vector<1xf32> to vector<1x1xf32>
    %22 = arith.mulf %7, %17 : vector<576x32xf32>
    %cst_11 = arith.constant dense<0.000000e+00> : vector<576xf32>
    %23 = vector.multi_reduction <add>, %22, %cst_11 [1] : vector<576x32xf32> to vector<576xf32>
    %24 = vector.shape_cast %23 : vector<576xf32> to vector<576x1xf32>
    %cst_12 = arith.constant dense<0.000000e+00> : vector<1xf32>
    %25 = vector.multi_reduction <add>, %24, %cst_12 [0] : vector<576x1xf32> to vector<1xf32>
    %26 = vector.shape_cast %25 : vector<1xf32> to vector<1x1xf32>
    %cst_13 = arith.constant 0.000000e+00 : f32
    %27 = vector.broadcast %cst_13 : f32 to vector<1x1xf32>
    %28 = arith.cmpf ogt, %21, %27 : vector<1x1xf32>
    %cst_14 = arith.constant 1.000000e+00 : f32
    %29 = vector.broadcast %cst_14 : f32 to vector<1x1xf32>
    %30 = arith.maximumf %21, %29 : vector<1x1xf32>
    %31 = arith.divf %26, %30 : vector<1x1xf32>
    %cst_15 = arith.constant 0.000000e+00 : f32
    %32 = vector.broadcast %cst_15 : f32 to vector<1x1xf32>
    %33 = arith.select %28, %31, %32 : vector<1x1xi1>, vector<1x1xf32>
    %34 = vector.broadcast %13 : vector<1x1xf32> to vector<576x32xf32>
    %35 = arith.cmpf ogt, %6, %34 : vector<576x32xf32>
    %36 = arith.extui %35 : vector<576x32xi1> to vector<576x32xi32>
    %37 = arith.sitofp %36 : vector<576x32xi32> to vector<576x32xf32>
    %cst_16 = arith.constant 0.000000e+00 : f32
    %38 = vector.broadcast %cst_16 : f32 to vector<1x1xf32>
    %39 = arith.subf %38, %13 : vector<1x1xf32>
    %40 = vector.broadcast %39 : vector<1x1xf32> to vector<576x32xf32>
    %41 = arith.cmpf olt, %6, %40 : vector<576x32xf32>
    %42 = arith.extui %41 : vector<576x32xi1> to vector<576x32xi32>
    %43 = arith.sitofp %42 : vector<576x32xi32> to vector<576x32xf32>
    %44 = arith.subf %37, %43 : vector<576x32xf32>
    %45 = vector.broadcast %33 : vector<1x1xf32> to vector<576x32xf32>
    %46 = arith.mulf %45, %44 : vector<576x32xf32>
    %c0_17 = arith.constant 0 : index
    %c0_18 = arith.constant 0 : index
    %47 = vector.load %arg4[%c0_17, %c0_18] : memref<1x32xf32, #tpu.memory_space<vmem>>, vector<1x32xf32>
    %48 = vector.broadcast %47 : vector<1x32xf32> to vector<576x32xf32>
    %49 = arith.mulf %46, %48 : vector<576x32xf32>
    %c0_19 = arith.constant 0 : index
    %c0_20 = arith.constant 0 : index
    %50 = vector.load %arg5[%c0_19, %c0_20] : memref<1x32xf32, #tpu.memory_space<vmem>>, vector<1x32xf32>
    %51 = vector.broadcast %50 : vector<1x32xf32> to vector<576x32xf32>
    %52 = arith.addf %49, %51 : vector<576x32xf32>
    %c0_21 = arith.constant 0 : index
    %c0_22 = arith.constant 0 : index
    %c0_23 = arith.constant 0 : index
    %53 = vector.load %arg6[%c0_21, %c0_22, %c0_23] : memref<1x576x32xf32, #tpu.memory_space<vmem>>, vector<1x576x32xf32>
    %54 = vector.shape_cast %53 : vector<1x576x32xf32> to vector<576x32xf32>
    %55 = vector.shape_cast %52 : vector<576x32xf32> to vector<1x576x32xf32>
    tpu.vector_store %arg6[%c0_21, %c0_22, %c0_23], %55 {strides = array<i32>} : memref<1x576x32xf32, #tpu.memory_space<vmem>>, vector<1x576x32xf32>,
    return
  }
  func.func @transform_0(%arg0: i32) -> (i32, i32, i32) {
    %c0_i32 = arith.constant 0 : i32
    %c0_i32_0 = arith.constant 0 : i32
    %c0_i32_1 = arith.constant 0 : i32
    return %arg0, %c0_i32, %c0_i32_0 : i32, i32, i32
  }
  func.func @transform_1(%arg0: i32) -> (i32, i32) {
    %c0_i32 = arith.constant 0 : i32
    %c0_i32_0 = arith.constant 0 : i32
    %c0_i32_1 = arith.constant 0 : i32
    return %c0_i32, %c0_i32_0 : i32, i32
  }
  func.func @transform_2(%arg0: i32) -> (i32, i32) {
    %c0_i32 = arith.constant 0 : i32
    %c0_i32_0 = arith.constant 0 : i32
    %c0_i32_1 = arith.constant 0 : i32
    return %c0_i32, %c0_i32_0 : i32, i32
  }
  func.func @transform_3(%arg0: i32) -> (i32, i32) {
    %c0_i32 = arith.constant 0 : i32
    %c0_i32_0 = arith.constant 0 : i32
    %c0_i32_1 = arith.constant 0 : i32
    return %c0_i32, %c0_i32_0 : i32, i32
  }
  func.func @transform_4(%arg0: i32) -> (i32, i32) {
    %c0_i32 = arith.constant 0 : i32
    %c0_i32_0 = arith.constant 0 : i32
    %c0_i32_1 = arith.constant 0 : i32
    return %c0_i32, %c0_i32_0 : i32, i32
  }
  func.func @transform_5(%arg0: i32) -> (i32, i32, i32) {
    %c0_i32 = arith.constant 0 : i32
    %c0_i32_0 = arith.constant 0 : i32
    %c0_i32_1 = arith.constant 0 : i32
    return %arg0, %c0_i32, %c0_i32_0 : i32, i32, i32
  }
}

module attributes {stable_mosaic.version = 11 : i64} {
  func.func @_conv_fused_kernel(%arg0: i32, %arg1: memref<1x64x800xf32, #tpu.memory_space<vmem>>, %arg2: memref<800x64xf32, #tpu.memory_space<vmem>>, %arg3: memref<1x64xf32, #tpu.memory_space<vmem>>, %arg4: memref<1x64xf32, #tpu.memory_space<vmem>>, %arg5: memref<1x64xf32, #tpu.memory_space<vmem>>, %arg6: memref<1x64x64xf32, #tpu.memory_space<vmem>>) attributes {dimension_semantics = [#tpu.dimension_semantics<parallel>], iteration_bounds = array<i64: 2>, scalar_prefetch = 0 : i64, scratch_operands = 0 : i64, tpu.core_type = #tpu.core_type<tc>, window_params = [{transform_indices = @transform_0, window_bounds = array<i64: 1, 64, 800>}, {pipeline_mode = #tpu.pipeline_mode<synchronous>, transform_indices = @transform_1, window_bounds = array<i64: 800, 64>}, {pipeline_mode = #tpu.pipeline_mode<synchronous>, transform_indices = @transform_2, window_bounds = array<i64: 1, 64>}, {pipeline_mode = #tpu.pipeline_mode<synchronous>, transform_indices = @transform_3, window_bounds = array<i64: 1, 64>}, {pipeline_mode = #tpu.pipeline_mode<synchronous>, transform_indices = @transform_4, window_bounds = array<i64: 1, 64>}, {transform_indices = @transform_5, window_bounds = array<i64: 1, 64, 64>}]} {
    %c0 = arith.constant 0 : index
    %c0_0 = arith.constant 0 : index
    %c0_1 = arith.constant 0 : index
    %0 = vector.load %arg1[%c0, %c0_0, %c0_1] : memref<1x64x800xf32, #tpu.memory_space<vmem>>, vector<1x64x800xf32>
    %1 = vector.shape_cast %0 : vector<1x64x800xf32> to vector<64x800xf32>
    %c0_2 = arith.constant 0 : index
    %c0_3 = arith.constant 0 : index
    %2 = vector.load %arg2[%c0_2, %c0_3] : memref<800x64xf32, #tpu.memory_space<vmem>>, vector<800x64xf32>
    %cst = arith.constant dense<0.000000e+00> : vector<64x64xf32>
    %3 = tpu.matmul %1, %2, %cst {dimension_numbers = #tpu.dot_dimension_numbers<[1], [0], [0], [1], [0, 0, 1, 1], [], []>} : vector<64x800xf32>, vector<800x64xf32>, vector<64x64xf32> -> vector<64x64xf32>
    %c0_4 = arith.constant 0 : index
    %c0_5 = arith.constant 0 : index
    %4 = vector.load %arg3[%c0_4, %c0_5] : memref<1x64xf32, #tpu.memory_space<vmem>>, vector<1x64xf32>
    %5 = vector.broadcast %4 : vector<1x64xf32> to vector<64x64xf32>
    %6 = arith.addf %3, %5 : vector<64x64xf32>
    %7 = math.absf %6 : vector<64x64xf32>
    %cst_6 = arith.constant dense<0.000000e+00> : vector<64xf32>
    %8 = vector.multi_reduction <add>, %7, %cst_6 [1] : vector<64x64xf32> to vector<64xf32>
    %9 = vector.shape_cast %8 : vector<64xf32> to vector<64x1xf32>
    %cst_7 = arith.constant dense<0.000000e+00> : vector<1xf32>
    %10 = vector.multi_reduction <add>, %9, %cst_7 [0] : vector<64x1xf32> to vector<1xf32>
    %11 = vector.shape_cast %10 : vector<1xf32> to vector<1x1xf32>
    %cst_8 = arith.constant 1.70898435E-4 : f32
    %12 = vector.broadcast %cst_8 : f32 to vector<1x1xf32>
    %13 = arith.mulf %12, %11 : vector<1x1xf32>
    %14 = vector.broadcast %13 : vector<1x1xf32> to vector<64x64xf32>
    %15 = arith.cmpf ogt, %7, %14 : vector<64x64xf32>
    %16 = arith.extui %15 : vector<64x64xi1> to vector<64x64xi32>
    %17 = arith.sitofp %16 : vector<64x64xi32> to vector<64x64xf32>
    %cst_9 = arith.constant dense<0.000000e+00> : vector<64xf32>
    %18 = vector.multi_reduction <add>, %17, %cst_9 [1] : vector<64x64xf32> to vector<64xf32>
    %19 = vector.shape_cast %18 : vector<64xf32> to vector<64x1xf32>
    %cst_10 = arith.constant dense<0.000000e+00> : vector<1xf32>
    %20 = vector.multi_reduction <add>, %19, %cst_10 [0] : vector<64x1xf32> to vector<1xf32>
    %21 = vector.shape_cast %20 : vector<1xf32> to vector<1x1xf32>
    %22 = arith.mulf %7, %17 : vector<64x64xf32>
    %cst_11 = arith.constant dense<0.000000e+00> : vector<64xf32>
    %23 = vector.multi_reduction <add>, %22, %cst_11 [1] : vector<64x64xf32> to vector<64xf32>
    %24 = vector.shape_cast %23 : vector<64xf32> to vector<64x1xf32>
    %cst_12 = arith.constant dense<0.000000e+00> : vector<1xf32>
    %25 = vector.multi_reduction <add>, %24, %cst_12 [0] : vector<64x1xf32> to vector<1xf32>
    %26 = vector.shape_cast %25 : vector<1xf32> to vector<1x1xf32>
    %cst_13 = arith.constant 0.000000e+00 : f32
    %27 = vector.broadcast %cst_13 : f32 to vector<1x1xf32>
    %28 = arith.cmpf ogt, %21, %27 : vector<1x1xf32>
    %cst_14 = arith.constant 1.000000e+00 : f32
    %29 = vector.broadcast %cst_14 : f32 to vector<1x1xf32>
    %30 = arith.maximumf %21, %29 : vector<1x1xf32>
    %31 = arith.divf %26, %30 : vector<1x1xf32>
    %cst_15 = arith.constant 0.000000e+00 : f32
    %32 = vector.broadcast %cst_15 : f32 to vector<1x1xf32>
    %33 = arith.select %28, %31, %32 : vector<1x1xi1>, vector<1x1xf32>
    %34 = vector.broadcast %13 : vector<1x1xf32> to vector<64x64xf32>
    %35 = arith.cmpf ogt, %6, %34 : vector<64x64xf32>
    %36 = arith.extui %35 : vector<64x64xi1> to vector<64x64xi32>
    %37 = arith.sitofp %36 : vector<64x64xi32> to vector<64x64xf32>
    %cst_16 = arith.constant 0.000000e+00 : f32
    %38 = vector.broadcast %cst_16 : f32 to vector<1x1xf32>
    %39 = arith.subf %38, %13 : vector<1x1xf32>
    %40 = vector.broadcast %39 : vector<1x1xf32> to vector<64x64xf32>
    %41 = arith.cmpf olt, %6, %40 : vector<64x64xf32>
    %42 = arith.extui %41 : vector<64x64xi1> to vector<64x64xi32>
    %43 = arith.sitofp %42 : vector<64x64xi32> to vector<64x64xf32>
    %44 = arith.subf %37, %43 : vector<64x64xf32>
    %45 = vector.broadcast %33 : vector<1x1xf32> to vector<64x64xf32>
    %46 = arith.mulf %45, %44 : vector<64x64xf32>
    %c0_17 = arith.constant 0 : index
    %c0_18 = arith.constant 0 : index
    %47 = vector.load %arg4[%c0_17, %c0_18] : memref<1x64xf32, #tpu.memory_space<vmem>>, vector<1x64xf32>
    %48 = vector.broadcast %47 : vector<1x64xf32> to vector<64x64xf32>
    %49 = arith.mulf %46, %48 : vector<64x64xf32>
    %c0_19 = arith.constant 0 : index
    %c0_20 = arith.constant 0 : index
    %50 = vector.load %arg5[%c0_19, %c0_20] : memref<1x64xf32, #tpu.memory_space<vmem>>, vector<1x64xf32>
    %51 = vector.broadcast %50 : vector<1x64xf32> to vector<64x64xf32>
    %52 = arith.addf %49, %51 : vector<64x64xf32>
    %c0_21 = arith.constant 0 : index
    %c0_22 = arith.constant 0 : index
    %c0_23 = arith.constant 0 : index
    %53 = vector.load %arg6[%c0_21, %c0_22, %c0_23] : memref<1x64x64xf32, #tpu.memory_space<vmem>>, vector<1x64x64xf32>
    %54 = vector.shape_cast %53 : vector<1x64x64xf32> to vector<64x64xf32>
    %55 = vector.shape_cast %52 : vector<64x64xf32> to vector<1x64x64xf32>
    tpu.vector_store %arg6[%c0_21, %c0_22, %c0_23], %55 {strides = array<i32>} : memref<1x64x64xf32, #tpu.memory_space<vmem>>, vector<1x64x64xf32>,
    return
  }
  func.func @transform_0(%arg0: i32) -> (i32, i32, i32) {
    %c0_i32 = arith.constant 0 : i32
    %c0_i32_0 = arith.constant 0 : i32
    %c0_i32_1 = arith.constant 0 : i32
    return %arg0, %c0_i32, %c0_i32_0 : i32, i32, i32
  }
  func.func @transform_1(%arg0: i32) -> (i32, i32) {
    %c0_i32 = arith.constant 0 : i32
    %c0_i32_0 = arith.constant 0 : i32
    %c0_i32_1 = arith.constant 0 : i32
    return %c0_i32, %c0_i32_0 : i32, i32
  }
  func.func @transform_2(%arg0: i32) -> (i32, i32) {
    %c0_i32 = arith.constant 0 : i32
    %c0_i32_0 = arith.constant 0 : i32
    %c0_i32_1 = arith.constant 0 : i32
    return %c0_i32, %c0_i32_0 : i32, i32
  }
  func.func @transform_3(%arg0: i32) -> (i32, i32) {
    %c0_i32 = arith.constant 0 : i32
    %c0_i32_0 = arith.constant 0 : i32
    %c0_i32_1 = arith.constant 0 : i32
    return %c0_i32, %c0_i32_0 : i32, i32
  }
  func.func @transform_4(%arg0: i32) -> (i32, i32) {
    %c0_i32 = arith.constant 0 : i32
    %c0_i32_0 = arith.constant 0 : i32
    %c0_i32_1 = arith.constant 0 : i32
    return %c0_i32, %c0_i32_0 : i32, i32
  }
  func.func @transform_5(%arg0: i32) -> (i32, i32, i32) {
    %c0_i32 = arith.constant 0 : i32
    %c0_i32_0 = arith.constant 0 : i32
    %c0_i32_1 = arith.constant 0 : i32
    return %arg0, %c0_i32, %c0_i32_0 : i32, i32, i32
  }
}

module attributes {stable_mosaic.version = 11 : i64} {
  func.func @_fc_fused_kernel(%arg0: i32, %arg1: memref<2x1024xf32, #tpu.memory_space<vmem>>, %arg2: memref<1024x512xf32, #tpu.memory_space<vmem>>, %arg3: memref<1x512xf32, #tpu.memory_space<vmem>>, %arg4: memref<2x512xf32, #tpu.memory_space<vmem>>) attributes {dimension_semantics = [#tpu.dimension_semantics<parallel>], iteration_bounds = array<i64: 1>, scalar_prefetch = 0 : i64, scratch_operands = 0 : i64, tpu.core_type = #tpu.core_type<tc>, window_params = [{transform_indices = @transform_0, window_bounds = array<i64: 2, 1024>}, {pipeline_mode = #tpu.pipeline_mode<synchronous>, transform_indices = @transform_1, window_bounds = array<i64: 1024, 512>}, {pipeline_mode = #tpu.pipeline_mode<synchronous>, transform_indices = @transform_2, window_bounds = array<i64: 1, 512>}, {transform_indices = @transform_3, window_bounds = array<i64: 2, 512>}]} {
    %c0 = arith.constant 0 : index
    %c0_0 = arith.constant 0 : index
    %0 = vector.load %arg1[%c0, %c0_0] : memref<2x1024xf32, #tpu.memory_space<vmem>>, vector<2x1024xf32>
    %c0_1 = arith.constant 0 : index
    %c0_2 = arith.constant 0 : index
    %1 = vector.load %arg2[%c0_1, %c0_2] : memref<1024x512xf32, #tpu.memory_space<vmem>>, vector<1024x512xf32>
    %cst = arith.constant dense<0.000000e+00> : vector<2x512xf32>
    %2 = tpu.matmul %0, %1, %cst {dimension_numbers = #tpu.dot_dimension_numbers<[1], [0], [0], [1], [0, 0, 1, 1], [], []>} : vector<2x1024xf32>, vector<1024x512xf32>, vector<2x512xf32> -> vector<2x512xf32>
    %c0_3 = arith.constant 0 : index
    %c0_4 = arith.constant 0 : index
    %3 = vector.load %arg3[%c0_3, %c0_4] : memref<1x512xf32, #tpu.memory_space<vmem>>, vector<1x512xf32>
    %4 = vector.broadcast %3 : vector<1x512xf32> to vector<2x512xf32>
    %5 = arith.addf %2, %4 : vector<2x512xf32>
    %6 = math.absf %5 : vector<2x512xf32>
    %cst_5 = arith.constant dense<0.000000e+00> : vector<2xf32>
    %7 = vector.multi_reduction <add>, %6, %cst_5 [1] : vector<2x512xf32> to vector<2xf32>
    %8 = vector.shape_cast %7 : vector<2xf32> to vector<2x1xf32>
    %cst_6 = arith.constant 0.00136718748 : f32
    %9 = vector.broadcast %cst_6 : f32 to vector<2x1xf32>
    %10 = arith.mulf %9, %8 : vector<2x1xf32>
    %11 = vector.broadcast %10 : vector<2x1xf32> to vector<2x512xf32>
    %12 = arith.cmpf ogt, %6, %11 : vector<2x512xf32>
    %13 = arith.extui %12 : vector<2x512xi1> to vector<2x512xi32>
    %14 = arith.sitofp %13 : vector<2x512xi32> to vector<2x512xf32>
    %cst_7 = arith.constant dense<0.000000e+00> : vector<2xf32>
    %15 = vector.multi_reduction <add>, %14, %cst_7 [1] : vector<2x512xf32> to vector<2xf32>
    %16 = vector.shape_cast %15 : vector<2xf32> to vector<2x1xf32>
    %17 = arith.mulf %6, %14 : vector<2x512xf32>
    %cst_8 = arith.constant dense<0.000000e+00> : vector<2xf32>
    %18 = vector.multi_reduction <add>, %17, %cst_8 [1] : vector<2x512xf32> to vector<2xf32>
    %19 = vector.shape_cast %18 : vector<2xf32> to vector<2x1xf32>
    %cst_9 = arith.constant 0.000000e+00 : f32
    %20 = vector.broadcast %cst_9 : f32 to vector<2x1xf32>
    %21 = arith.cmpf ogt, %16, %20 : vector<2x1xf32>
    %cst_10 = arith.constant 1.000000e+00 : f32
    %22 = vector.broadcast %cst_10 : f32 to vector<2x1xf32>
    %23 = arith.maximumf %16, %22 : vector<2x1xf32>
    %24 = arith.divf %19, %23 : vector<2x1xf32>
    %cst_11 = arith.constant 0.000000e+00 : f32
    %25 = vector.broadcast %cst_11 : f32 to vector<2x1xf32>
    %26 = arith.select %21, %24, %25 : vector<2x1xi1>, vector<2x1xf32>
    %27 = vector.broadcast %10 : vector<2x1xf32> to vector<2x512xf32>
    %28 = arith.cmpf ogt, %5, %27 : vector<2x512xf32>
    %29 = arith.extui %28 : vector<2x512xi1> to vector<2x512xi32>
    %30 = arith.sitofp %29 : vector<2x512xi32> to vector<2x512xf32>
    %cst_12 = arith.constant 0.000000e+00 : f32
    %31 = vector.broadcast %cst_12 : f32 to vector<2x1xf32>
    %32 = arith.subf %31, %10 : vector<2x1xf32>
    %33 = vector.broadcast %32 : vector<2x1xf32> to vector<2x512xf32>
    %34 = arith.cmpf olt, %5, %33 : vector<2x512xf32>
    %35 = arith.extui %34 : vector<2x512xi1> to vector<2x512xi32>
    %36 = arith.sitofp %35 : vector<2x512xi32> to vector<2x512xf32>
    %37 = arith.subf %30, %36 : vector<2x512xf32>
    %38 = vector.broadcast %26 : vector<2x1xf32> to vector<2x512xf32>
    %39 = arith.mulf %38, %37 : vector<2x512xf32>
    %cst_13 = arith.constant 0.000000e+00 : f32
    %40 = vector.broadcast %cst_13 : f32 to vector<2x512xf32>
    %41 = arith.maximumf %39, %40 : vector<2x512xf32>
    %c0_14 = arith.constant 0 : index
    %c0_15 = arith.constant 0 : index
    %42 = vector.load %arg4[%c0_14, %c0_15] : memref<2x512xf32, #tpu.memory_space<vmem>>, vector<2x512xf32>
    tpu.vector_store %arg4[%c0_14, %c0_15], %41 {strides = array<i32>} : memref<2x512xf32, #tpu.memory_space<vmem>>, vector<2x512xf32>,
    return
  }
  func.func @transform_0(%arg0: i32) -> (i32, i32) {
    %c0_i32 = arith.constant 0 : i32
    %c0_i32_0 = arith.constant 0 : i32
    return %arg0, %c0_i32 : i32, i32
  }
  func.func @transform_1(%arg0: i32) -> (i32, i32) {
    %c0_i32 = arith.constant 0 : i32
    %c0_i32_0 = arith.constant 0 : i32
    %c0_i32_1 = arith.constant 0 : i32
    return %c0_i32, %c0_i32_0 : i32, i32
  }
  func.func @transform_2(%arg0: i32) -> (i32, i32) {
    %c0_i32 = arith.constant 0 : i32
    %c0_i32_0 = arith.constant 0 : i32
    %c0_i32_1 = arith.constant 0 : i32
    return %c0_i32, %c0_i32_0 : i32, i32
  }
  func.func @transform_3(%arg0: i32) -> (i32, i32) {
    %c0_i32 = arith.constant 0 : i32
    %c0_i32_0 = arith.constant 0 : i32
    return %arg0, %c0_i32 : i32, i32
  }
}

module attributes {stable_mosaic.version = 11 : i64} {
  func.func @_fc_fused_kernel(%arg0: i32, %arg1: memref<2x512xf32, #tpu.memory_space<vmem>>, %arg2: memref<512x10xf32, #tpu.memory_space<vmem>>, %arg3: memref<1x10xf32, #tpu.memory_space<vmem>>, %arg4: memref<2x10xf32, #tpu.memory_space<vmem>>) attributes {dimension_semantics = [#tpu.dimension_semantics<parallel>], iteration_bounds = array<i64: 1>, scalar_prefetch = 0 : i64, scratch_operands = 0 : i64, tpu.core_type = #tpu.core_type<tc>, window_params = [{transform_indices = @transform_0, window_bounds = array<i64: 2, 512>}, {pipeline_mode = #tpu.pipeline_mode<synchronous>, transform_indices = @transform_1, window_bounds = array<i64: 512, 10>}, {pipeline_mode = #tpu.pipeline_mode<synchronous>, transform_indices = @transform_2, window_bounds = array<i64: 1, 10>}, {transform_indices = @transform_3, window_bounds = array<i64: 2, 10>}]} {
    %c0 = arith.constant 0 : index
    %c0_0 = arith.constant 0 : index
    %0 = vector.load %arg1[%c0, %c0_0] : memref<2x512xf32, #tpu.memory_space<vmem>>, vector<2x512xf32>
    %c0_1 = arith.constant 0 : index
    %c0_2 = arith.constant 0 : index
    %1 = vector.load %arg2[%c0_1, %c0_2] : memref<512x10xf32, #tpu.memory_space<vmem>>, vector<512x10xf32>
    %cst = arith.constant dense<0.000000e+00> : vector<2x10xf32>
    %2 = tpu.matmul %0, %1, %cst {dimension_numbers = #tpu.dot_dimension_numbers<[1], [0], [0], [1], [0, 0, 1, 1], [], []>} : vector<2x512xf32>, vector<512x10xf32>, vector<2x10xf32> -> vector<2x10xf32>
    %c0_3 = arith.constant 0 : index
    %c0_4 = arith.constant 0 : index
    %3 = vector.load %arg3[%c0_3, %c0_4] : memref<1x10xf32, #tpu.memory_space<vmem>>, vector<1x10xf32>
    %4 = vector.broadcast %3 : vector<1x10xf32> to vector<2x10xf32>
    %5 = arith.addf %2, %4 : vector<2x10xf32>
    %6 = math.absf %5 : vector<2x10xf32>
    %cst_5 = arith.constant dense<0.000000e+00> : vector<2xf32>
    %7 = vector.multi_reduction <add>, %6, %cst_5 [1] : vector<2x10xf32> to vector<2xf32>
    %8 = vector.shape_cast %7 : vector<2xf32> to vector<2x1xf32>
    %cst_6 = arith.constant 7.000000e-02 : f32
    %9 = vector.broadcast %cst_6 : f32 to vector<2x1xf32>
    %10 = arith.mulf %9, %8 : vector<2x1xf32>
    %11 = vector.broadcast %10 : vector<2x1xf32> to vector<2x10xf32>
    %12 = arith.cmpf ogt, %6, %11 : vector<2x10xf32>
    %13 = arith.extui %12 : vector<2x10xi1> to vector<2x10xi32>
    %14 = arith.sitofp %13 : vector<2x10xi32> to vector<2x10xf32>
    %cst_7 = arith.constant dense<0.000000e+00> : vector<2xf32>
    %15 = vector.multi_reduction <add>, %14, %cst_7 [1] : vector<2x10xf32> to vector<2xf32>
    %16 = vector.shape_cast %15 : vector<2xf32> to vector<2x1xf32>
    %17 = arith.mulf %6, %14 : vector<2x10xf32>
    %cst_8 = arith.constant dense<0.000000e+00> : vector<2xf32>
    %18 = vector.multi_reduction <add>, %17, %cst_8 [1] : vector<2x10xf32> to vector<2xf32>
    %19 = vector.shape_cast %18 : vector<2xf32> to vector<2x1xf32>
    %cst_9 = arith.constant 0.000000e+00 : f32
    %20 = vector.broadcast %cst_9 : f32 to vector<2x1xf32>
    %21 = arith.cmpf ogt, %16, %20 : vector<2x1xf32>
    %cst_10 = arith.constant 1.000000e+00 : f32
    %22 = vector.broadcast %cst_10 : f32 to vector<2x1xf32>
    %23 = arith.maximumf %16, %22 : vector<2x1xf32>
    %24 = arith.divf %19, %23 : vector<2x1xf32>
    %cst_11 = arith.constant 0.000000e+00 : f32
    %25 = vector.broadcast %cst_11 : f32 to vector<2x1xf32>
    %26 = arith.select %21, %24, %25 : vector<2x1xi1>, vector<2x1xf32>
    %27 = vector.broadcast %10 : vector<2x1xf32> to vector<2x10xf32>
    %28 = arith.cmpf ogt, %5, %27 : vector<2x10xf32>
    %29 = arith.extui %28 : vector<2x10xi1> to vector<2x10xi32>
    %30 = arith.sitofp %29 : vector<2x10xi32> to vector<2x10xf32>
    %cst_12 = arith.constant 0.000000e+00 : f32
    %31 = vector.broadcast %cst_12 : f32 to vector<2x1xf32>
    %32 = arith.subf %31, %10 : vector<2x1xf32>
    %33 = vector.broadcast %32 : vector<2x1xf32> to vector<2x10xf32>
    %34 = arith.cmpf olt, %5, %33 : vector<2x10xf32>
    %35 = arith.extui %34 : vector<2x10xi1> to vector<2x10xi32>
    %36 = arith.sitofp %35 : vector<2x10xi32> to vector<2x10xf32>
    %37 = arith.subf %30, %36 : vector<2x10xf32>
    %38 = vector.broadcast %26 : vector<2x1xf32> to vector<2x10xf32>
    %39 = arith.mulf %38, %37 : vector<2x10xf32>
    %c0_13 = arith.constant 0 : index
    %c0_14 = arith.constant 0 : index
    %40 = vector.load %arg4[%c0_13, %c0_14] : memref<2x10xf32, #tpu.memory_space<vmem>>, vector<2x10xf32>
    tpu.vector_store %arg4[%c0_13, %c0_14], %39 {strides = array<i32>} : memref<2x10xf32, #tpu.memory_space<vmem>>, vector<2x10xf32>,
    return
  }
  func.func @transform_0(%arg0: i32) -> (i32, i32) {
    %c0_i32 = arith.constant 0 : i32
    %c0_i32_0 = arith.constant 0 : i32
    return %arg0, %c0_i32 : i32, i32
  }
  func.func @transform_1(%arg0: i32) -> (i32, i32) {
    %c0_i32 = arith.constant 0 : i32
    %c0_i32_0 = arith.constant 0 : i32
    %c0_i32_1 = arith.constant 0 : i32
    return %c0_i32, %c0_i32_0 : i32, i32
  }
  func.func @transform_2(%arg0: i32) -> (i32, i32) {
    %c0_i32 = arith.constant 0 : i32
    %c0_i32_0 = arith.constant 0 : i32
    %c0_i32_1 = arith.constant 0 : i32
    return %c0_i32, %c0_i32_0 : i32, i32
  }
  func.func @transform_3(%arg0: i32) -> (i32, i32) {
    %c0_i32 = arith.constant 0 : i32
    %c0_i32_0 = arith.constant 0 : i32
    return %arg0, %c0_i32 : i32, i32
  }
}

</mosaic_0001>

<llo_original>
// kernel: lenet5_t_forward.4
$region0: #{lenet5_t_forward.4}
  #allocation0 [shape = 'u32[]', space=smem, size = 0x4, offset = 0x4, fixed_abs, tag = 'smem constant byte address 0x4 - core index']
  #allocation1 [shape = 'u32[72,128]{1,0:T(1,128)}', space=vmem, size = 0x9000, scoped, tag = 'internal scratch']
  %s0 = inlined_call_operand.vmem [shape: f32[2,576,25], index: 0, kind: input, shape index: {}]
  %s1 = inlined_call_operand.vmem [shape: f32[25,32], index: 1, kind: input, shape index: {}]
  %s2 = inlined_call_operand.vmem [shape: f32[1,32], index: 2, kind: input, shape index: {}]
  %s3 = inlined_call_operand.vmem [shape: f32[1,32], index: 3, kind: input, shape index: {}]
  %s4 = inlined_call_operand.vmem [shape: f32[1,32], index: 4, kind: input, shape index: {}]
  %s5 = inlined_call_operand.vmem [shape: f32[2,576,32], index: 5, kind: output, shape index: {}]
  %s6 = sld [smem:[#allocation0]]
  $region53: #{lenet5_t_forward.4} parent=0
    _
  %s8 = ssub.s32 1, %s6
  %s9 = scalar_select 0, %s8, %s6
  loop: start=0, step=1, limit=4
  $region2: #{lenet5_t_forward.4} parent=0 // loop_pre_header
    _
  $region3: #{lenet5_t_forward.4} parent=0 // loop_header
    %s11 = sphi 0, %s15
    %p12 = scmp.ge.s32.totalorder %s11, 4
    %s21 = sphi 0, %s23
    %s24 = sphi 0, %s21
    %s25 = sphi 0, %s24
    %s41 = sphi 0, %s25
    %s45 = sphi 0, %s45
    %s47 = sphi 0, %s45
    %s48 = sphi 0, %s47
    %s62 = sphi 0, %s48
    %s66 = sphi 0, %s66
    %s68 = sphi 0, %s66
    %s69 = sphi 0, %s68
    %s83 = sphi 0, %s69
    %s87 = sphi 0, %s87
    %s89 = sphi 0, %s87
    %s90 = sphi 0, %s89
    %s104 = sphi 0, %s90
    %s108 = sphi 0, %s108
    %s110 = sphi 0, %s108
    %s111 = sphi 0, %s110
    %s125 = sphi 0, %s111
    %s131 = sphi 0, %s133
    %s134 = sphi 0, %s131
    %s135 = sphi 0, %s134
    %s151 = sphi 0, %s135
  $region4: #{lenet5_t_forward.4} parent=0 // loop_header_branch
    %14 = sbr.rel (%p12) target = $region8
  $region5: #{lenet5_t_forward.4} parent=0 // loop_body
    %s16 = ssub.s32 %s11, 1
    %s17 = ssub.s32 %s11, 2
    %s18 = sadd.s32 %s11, 1
    %s19 = ssub.s32 %s11, %s18
    %p20 = scmp.eq.s32.totalorder %s19, 0
    %s22 = sadd.s32 %s21, 1
    %s23 = scalar_select %p20, %s21, %s22
    %p26 = pneg %p20
    %p27 = scmp.eq.s32.totalorder %s11, 1
    %p28 = por %p26, %p27
    %p29 = scmp.ne.s32.totalorder %s21, %s24
    %p30 = scmp.eq.s32.totalorder %s11, 0
    %p31 = por %p29, %p30
    %p32 = scmp.ne.s32.totalorder %s21, %s24
    %p33 = scmp.eq.s32.totalorder %s16, 1
    %p34 = por %p32, %p33
    %p35 = scmp.ne.s32.totalorder %s24, %s25
    %p36 = scmp.eq.s32.totalorder %s16, 0
    %p37 = por %p35, %p36
    %p38 = scmp.ne.s32.totalorder %s24, %s25
    %p39 = scmp.eq.s32.totalorder %s17, 1
    %p40 = por %p38, %p39
    %p42 = scmp.ne.s32.totalorder %s25, %s41
    %p43 = scmp.eq.s32.totalorder %s17, 0
    %p44 = por %p42, %p43
    %s46 = sadd.s32 %s45, 1
    %p49 = scmp.eq.s32.totalorder %s11, 1
    %p50 = scmp.ne.s32.totalorder %s45, %s47
    %p51 = scmp.eq.s32.totalorder %s11, 0
    %p52 = por %p50, %p51
    %p53 = scmp.ne.s32.totalorder %s45, %s47
    %p54 = scmp.eq.s32.totalorder %s16, 1
    %p55 = por %p53, %p54
    %p56 = scmp.ne.s32.totalorder %s47, %s48
    %p57 = scmp.eq.s32.totalorder %s16, 0
    %p58 = por %p56, %p57
    %p59 = scmp.ne.s32.totalorder %s47, %s48
    %p60 = scmp.eq.s32.totalorder %s17, 1
    %p61 = por %p59, %p60
    %p63 = scmp.ne.s32.totalorder %s48, %s62
    %p64 = scmp.eq.s32.totalorder %s17, 0
    %p65 = por %p63, %p64
    %s67 = sadd.s32 %s66, 1
    %p70 = scmp.eq.s32.totalorder %s11, 1
    %p71 = scmp.ne.s32.totalorder %s66, %s68
    %p72 = scmp.eq.s32.totalorder %s11, 0
    %p73 = por %p71, %p72
    %p74 = scmp.ne.s32.totalorder %s66, %s68
    %p75 = scmp.eq.s32.totalorder %s16, 1
    %p76 = por %p74, %p75
    %p77 = scmp.ne.s32.totalorder %s68, %s69
    %p78 = scmp.eq.s32.totalorder %s16, 0
    %p79 = por %p77, %p78
    %p80 = scmp.ne.s32.totalorder %s68, %s69
    %p81 = scmp.eq.s32.totalorder %s17, 1
    %p82 = por %p80, %p81
    %p84 = scmp.ne.s32.totalorder %s69, %s83
    %p85 = scmp.eq.s32.totalorder %s17, 0
    %p86 = por %p84, %p85
    %s88 = sadd.s32 %s87, 1
    %p91 = scmp.eq.s32.totalorder %s11, 1
    %p92 = scmp.ne.s32.totalorder %s87, %s89
    %p93 = scmp.eq.s32.totalorder %s11, 0
    %p94 = por %p92, %p93
    %p95 = scmp.ne.s32.totalorder %s87, %s89
    %p96 = scmp.eq.s32.totalorder %s16, 1
    %p97 = por %p95, %p96
    %p98 = scmp.ne.s32.totalorder %s89, %s90
    %p99 = scmp.eq.s32.totalorder %s16, 0
    %p100 = por %p98, %p99
    %p101 = scmp.ne.s32.totalorder %s89, %s90
    %p102 = scmp.eq.s32.totalorder %s17, 1
    %p103 = por %p101, %p102
    %p105 = scmp.ne.s32.totalorder %s90, %s104
    %p106 = scmp.eq.s32.totalorder %s17, 0
    %p107 = por %p105, %p106
    %s109 = sadd.s32 %s108, 1
    %p112 = scmp.eq.s32.totalorder %s11, 1
    %p113 = scmp.ne.s32.totalorder %s108, %s110
    %p114 = scmp.eq.s32.totalorder %s11, 0
    %p115 = por %p113, %p114
    %p116 = scmp.ne.s32.totalorder %s108, %s110
    %p117 = scmp.eq.s32.totalorder %s16, 1
    %p118 = por %p116, %p117
    %p119 = scmp.ne.s32.totalorder %s110, %s111
    %p120 = scmp.eq.s32.totalorder %s16, 0
    %p121 = por %p119, %p120
    %p122 = scmp.ne.s32.totalorder %s110, %s111
    %p123 = scmp.eq.s32.totalorder %s17, 1
    %p124 = por %p122, %p123
    %p126 = scmp.ne.s32.totalorder %s111, %s125
    %p127 = scmp.eq.s32.totalorder %s17, 0
    %p128 = por %p126, %p127
    %s129 = ssub.s32 %s11, %s18
    %p130 = scmp.eq.s32.totalorder %s129, 0
    %s132 = sadd.s32 %s131, 1
    %s133 = scalar_select %p130, %s131, %s132
    %p136 = pneg %p130
    %p137 = scmp.eq.s32.totalorder %s11, 1
    %p138 = por %p136, %p137
    %p139 = scmp.ne.s32.totalorder %s131, %s134
    %p140 = scmp.eq.s32.totalorder %s11, 0
    %p141 = por %p139, %p140
    %p142 = scmp.ne.s32.totalorder %s131, %s134
    %p143 = scmp.eq.s32.totalorder %s16, 1
    %p144 = por %p142, %p143
    %p145 = scmp.ne.s32.totalorder %s134, %s135
    %p146 = scmp.eq.s32.totalorder %s16, 0
    %p147 = por %p145, %p146
    %p148 = scmp.ne.s32.totalorder %s134, %s135
    %p149 = scmp.eq.s32.totalorder %s17, 1
    %p150 = por %p148, %p149
    %p152 = scmp.ne.s32.totalorder %s135, %s151
    %p153 = scmp.eq.s32.totalorder %s17, 0
    %p154 = por %p152, %p153
    %p155 = scmp.le.s32.totalorder 1, %s11
    %p156 = scmp.lt.s32.totalorder %s11, 3
    %p157 = pnand %p155, %p156
    %p158 = pneg %p157
    // Predicated region
    $region9: #{lenet5_t_forward.4} parent=5 // pred_check
      _
    $region10: #{lenet5_t_forward.4} parent=5 // pred_check_branch
      %160 = sbr.rel (%p157) target = $region12
    $region11: #{lenet5_t_forward.4} parent=5 // pred_region
      %s161 = ssub.s32 %s11, 1
      // Predicated region
      $region13: #{lenet5_t_forward.4} parent=11 // pred_check
        %p162 = pneg %p58
      $region14: #{lenet5_t_forward.4} parent=11 // pred_check_branch
        %164 = sbr.rel (%p162) target = $region16
      $region15: #{lenet5_t_forward.4} parent=11 // pred_region
        _
      $region16: #{lenet5_t_forward.4} parent=11 // pred_fallthru
        _
      // Predicated region
      $region17: #{lenet5_t_forward.4} parent=11 // pred_check
        %p165 = pneg %p79
      $region18: #{lenet5_t_forward.4} parent=11 // pred_check_branch
        %167 = sbr.rel (%p165) target = $region20
      $region19: #{lenet5_t_forward.4} parent=11 // pred_region
        _
      $region20: #{lenet5_t_forward.4} parent=11 // pred_fallthru
        _
      // Predicated region
      $region21: #{lenet5_t_forward.4} parent=11 // pred_check
        %p168 = pneg %p100
      $region22: #{lenet5_t_forward.4} parent=11 // pred_check_branch
        %170 = sbr.rel (%p168) target = $region24
      $region23: #{lenet5_t_forward.4} parent=11 // pred_region
        _
      $region24: #{lenet5_t_forward.4} parent=11 // pred_fallthru
        _
      // Predicated region
      $region25: #{lenet5_t_forward.4} parent=11 // pred_check
        %p171 = pneg %p121
      $region26: #{lenet5_t_forward.4} parent=11 // pred_check_branch
        %173 = sbr.rel (%p171) target = $region28
      $region27: #{lenet5_t_forward.4} parent=11 // pred_region
        _
      $region28: #{lenet5_t_forward.4} parent=11 // pred_fallthru
        _
    $region12: #{lenet5_t_forward.4} parent=5 // pred_fallthru
      _
    %p174 = scmp.lt.s32.totalorder %s11, 2
    // Predicated region
    $region29: #{lenet5_t_forward.4} parent=5 // pred_check
      %p175 = pneg %p174
    $region30: #{lenet5_t_forward.4} parent=5 // pred_check_branch
      %177 = sbr.rel (%p175) target = $region32
    $region31: #{lenet5_t_forward.4} parent=5 // pred_region
      // Predicated region
      $region33: #{lenet5_t_forward.4} parent=31 // pred_check
        %p178 = pneg %p31
      $region34: #{lenet5_t_forward.4} parent=31 // pred_check_branch
        %180 = sbr.rel (%p178) target = $region36
      $region35: #{lenet5_t_forward.4} parent=31 // pred_region
        %p181 = scmp.lt.s32.totalorder %s11, 1
        %s182 = scalar_select %p181, %s11, 1
        %s183 = smul.addr %s182, 72
        %s184 = smul.addr %s183, 8
        %s185 = scalar_lea.vmem %s0, %s184
      $region36: #{lenet5_t_forward.4} parent=31 // pred_fallthru
        _
    $region32: #{lenet5_t_forward.4} parent=5 // pred_fallthru
      _
    %p186 = scmp.le.s32.totalorder 1, %s11
    %p187 = scmp.lt.s32.totalorder %s11, 3
    %p188 = pnand %p186, %p187
    %p189 = pneg %p188
    // Predicated region
    $region37: #{lenet5_t_forward.4} parent=5 // pred_check
      _
    $region38: #{lenet5_t_forward.4} parent=5 // pred_check_branch
      %191 = sbr.rel (%p188) target = $region40
    $region39: #{lenet5_t_forward.4} parent=5 // pred_region
      %s192 = ssub.s32 %s11, 1
      %p193 = scmp.lt.s32.totalorder %s16, 1
      %s194 = scalar_select %p193, %s16, 1
      %s195 = smul.addr %s194, 72
      %s196 = smul.addr %s195, 8
      %s197 = scalar_lea.vmem %s0, %s196
      %p198 = pneg %p37
      %p199 = pneg %p34
      %p200 = pneg %p58
      %p201 = pneg %p55
      %p202 = pneg %p79
      %p203 = pneg %p76
      %p204 = pneg %p100
      %p205 = pneg %p97
      %p206 = pneg %p121
      %p207 = pneg %p118
      %p208 = pneg %p147
      %p209 = pneg %p144
      %p210 = scmp.lt.s32.totalorder %s16, 1
      %s211 = scalar_select %p210, %s16, 1
      %s212 = smul.addr %s211, 72
      %s213 = smul.addr %s212, 8
      %s214 = scalar_lea.vmem %s5, %s213
      %p215 = scmp.lt.s32.totalorder %s16, 1
      %s216 = scalar_select %p215, %s16, 1
      %s217 = smul.addr %s216, 72
      %s218 = smul.addr %s217, 8
      %s219 = scalar_lea.vmem %s0, %s218
      %p220 = scmp.lt.s32.totalorder %s16, 1
      %s221 = scalar_select %p220, %s16, 1
      %s222 = smul.addr %s221, 72
      %s223 = smul.addr %s222, 8
      %s224 = scalar_lea.vmem %s5, %s223
      %v225 = vld [vmem:[%s219] sm:$0xff]
      %v226 = vld [vmem:[%s219 + $0x8] sm:$0xff]
      %v227 = vld [vmem:[%s219 + $0x10] sm:$0xff]
      %v228 = vld [vmem:[%s219 + $0x18] sm:$0xff]
      %v229 = vld [vmem:[%s219 + $0x20] sm:$0xff]
      %v230 = vld [vmem:[%s219 + $0x28] sm:$0xff]
      %v231 = vld [vmem:[%s219 + $0x30] sm:$0xff]
      %v232 = vld [vmem:[%s219 + $0x38] sm:$0xff]
      %v233 = vld [vmem:[%s219 + $0x40] sm:$0xff]
      %v234 = vld [vmem:[%s219 + $0x48] sm:$0xff]
      %v235 = vld [vmem:[%s219 + $0x50] sm:$0xff]
      %v236 = vld [vmem:[%s219 + $0x58] sm:$0xff]
      %v237 = vld [vmem:[%s219 + $0x60] sm:$0xff]
      %v238 = vld [vmem:[%s219 + $0x68] sm:$0xff]
      %v239 = vld [vmem:[%s219 + $0x70] sm:$0xff]
      %v240 = vld [vmem:[%s219 + $0x78] sm:$0xff]
      %v241 = vld [vmem:[%s219 + $0x80] sm:$0xff]
      %v242 = vld [vmem:[%s219 + $0x88] sm:$0xff]
      %v243 = vld [vmem:[%s219 + $0x90] sm:$0xff]
      %v244 = vld [vmem:[%s219 + $0x98] sm:$0xff]
      %v245 = vld [vmem:[%s219 + $0xa0] sm:$0xff]
      %v246 = vld [vmem:[%s219 + $0xa8] sm:$0xff]
      %v247 = vld [vmem:[%s219 + $0xb0] sm:$0xff]
      %v248 = vld [vmem:[%s219 + $0xb8] sm:$0xff]
      %v249 = vld [vmem:[%s219 + $0xc0] sm:$0xff]
      %v250 = vld [vmem:[%s219 + $0xc8] sm:$0xff]
      %v251 = vld [vmem:[%s219 + $0xd0] sm:$0xff]
      %v252 = vld [vmem:[%s219 + $0xd8] sm:$0xff]
      %v253 = vld [vmem:[%s219 + $0xe0] sm:$0xff]
      %v254 = vld [vmem:[%s219 + $0xe8] sm:$0xff]
      %v255 = vld [vmem:[%s219 + $0xf0] sm:$0xff]
      %v256 = vld [vmem:[%s219 + $0xf8] sm:$0xff]
      %v257 = vld [vmem:[%s219 + $0x100] sm:$0xff]
      %v258 = vld [vmem:[%s219 + $0x108] sm:$0xff]
      %v259 = vld [vmem:[%s219 + $0x110] sm:$0xff]
      %v260 = vld [vmem:[%s219 + $0x118] sm:$0xff]
      %v261 = vld [vmem:[%s219 + $0x120] sm:$0xff]
      %v262 = vld [vmem:[%s219 + $0x128] sm:$0xff]
      %v263 = vld [vmem:[%s219 + $0x130] sm:$0xff]
      %v264 = vld [vmem:[%s219 + $0x138] sm:$0xff]
      %v265 = vld [vmem:[%s219 + $0x140] sm:$0xff]
      %v266 = vld [vmem:[%s219 + $0x148] sm:$0xff]
      %v267 = vld [vmem:[%s219 + $0x150] sm:$0xff]
      %v268 = vld [vmem:[%s219 + $0x158] sm:$0xff]
      %v269 = vld [vmem:[%s219 + $0x160] sm:$0xff]
      %v270 = vld [vmem:[%s219 + $0x168] sm:$0xff]
      %v271 = vld [vmem:[%s219 + $0x170] sm:$0xff]
      %v272 = vld [vmem:[%s219 + $0x178] sm:$0xff]
      %v273 = vld [vmem:[%s219 + $0x180] sm:$0xff]
      %v274 = vld [vmem:[%s219 + $0x188] sm:$0xff]
      %v275 = vld [vmem:[%s219 + $0x190] sm:$0xff]
      %v276 = vld [vmem:[%s219 + $0x198] sm:$0xff]
      %v277 = vld [vmem:[%s219 + $0x1a0] sm:$0xff]
      %v278 = vld [vmem:[%s219 + $0x1a8] sm:$0xff]
      %v279 = vld [vmem:[%s219 + $0x1b0] sm:$0xff]
      %v280 = vld [vmem:[%s219 + $0x1b8] sm:$0xff]
      %v281 = vld [vmem:[%s219 + $0x1c0] sm:$0xff]
      %v282 = vld [vmem:[%s219 + $0x1c8] sm:$0xff]
      %v283 = vld [vmem:[%s219 + $0x1d0] sm:$0xff]
      %v284 = vld [vmem:[%s219 + $0x1d8] sm:$0xff]
      %v285 = vld [vmem:[%s219 + $0x1e0] sm:$0xff]
      %v286 = vld [vmem:[%s219 + $0x1e8] sm:$0xff]
      %v287 = vld [vmem:[%s219 + $0x1f0] sm:$0xff]
      %v288 = vld [vmem:[%s219 + $0x1f8] sm:$0xff]
      %v289 = vld [vmem:[%s219 + $0x200] sm:$0xff]
      %v290 = vld [vmem:[%s219 + $0x208] sm:$0xff]
      %v291 = vld [vmem:[%s219 + $0x210] sm:$0xff]
      %v292 = vld [vmem:[%s219 + $0x218] sm:$0xff]
      %v293 = vld [vmem:[%s219 + $0x220] sm:$0xff]
      %v294 = vld [vmem:[%s219 + $0x228] sm:$0xff]
      %v295 = vld [vmem:[%s219 + $0x230] sm:$0xff]
      %v296 = vld [vmem:[%s219 + $0x238] sm:$0xff]
      %v297 = vld [vmem:[%s1] sm:$0xff]
      %v298 = vld [vmem:[%s1 + $0x8] sm:$0xff]
      %v299 = vld [vmem:[%s1 + $0x10] sm:$0xff]
      %v300 = vld [vmem:[%s1 + $0x18] sm:$0x1]
      %v301 = vld [vmem:[%s2] sm:$0x1]
      %v303 = vperm.slane %v301, 0
      %vm305 = vcmask 203776
      %v307 = vsel %vm305, %v225, 0
      %v310 = vsel %vm305, %v226, 0
      %v313 = vsel %vm305, %v227, 0
      %v316 = vsel %vm305, %v228, 0
      %v319 = vsel %vm305, %v229, 0
      %v322 = vsel %vm305, %v230, 0
      %v325 = vsel %vm305, %v231, 0
      %v328 = vsel %vm305, %v232, 0
      %v331 = vsel %vm305, %v233, 0
      %v334 = vsel %vm305, %v234, 0
      %v337 = vsel %vm305, %v235, 0
      %v340 = vsel %vm305, %v236, 0
      %v343 = vsel %vm305, %v237, 0
      %v346 = vsel %vm305, %v238, 0
      %v349 = vsel %vm305, %v239, 0
      %v352 = vsel %vm305, %v240, 0
      %v355 = vsel %vm305, %v241, 0
      %v358 = vsel %vm305, %v242, 0
      %v361 = vsel %vm305, %v243, 0
      %v364 = vsel %vm305, %v244, 0
      %v367 = vsel %vm305, %v245, 0
      %v370 = vsel %vm305, %v246, 0
      %v373 = vsel %vm305, %v247, 0
      %v376 = vsel %vm305, %v248, 0
      %v379 = vsel %vm305, %v249, 0
      %v382 = vsel %vm305, %v250, 0
      %v385 = vsel %vm305, %v251, 0
      %v388 = vsel %vm305, %v252, 0
      %v391 = vsel %vm305, %v253, 0
      %v394 = vsel %vm305, %v254, 0
      %v397 = vsel %vm305, %v255, 0
      %v400 = vsel %vm305, %v256, 0
      %v403 = vsel %vm305, %v257, 0
      %v406 = vsel %vm305, %v258, 0
      %v409 = vsel %vm305, %v259, 0
      %v412 = vsel %vm305, %v260, 0
      %v415 = vsel %vm305, %v261, 0
      %v418 = vsel %vm305, %v262, 0
      %v421 = vsel %vm305, %v263, 0
      %v424 = vsel %vm305, %v264, 0
      %v427 = vsel %vm305, %v265, 0
      %v430 = vsel %vm305, %v266, 0
      %v433 = vsel %vm305, %v267, 0
      %v436 = vsel %vm305, %v268, 0
      %v439 = vsel %vm305, %v269, 0
      %v442 = vsel %vm305, %v270, 0
      %v445 = vsel %vm305, %v271, 0
      %v448 = vsel %vm305, %v272, 0
      %v451 = vsel %vm305, %v273, 0
      %v454 = vsel %vm305, %v274, 0
      %v457 = vsel %vm305, %v275, 0
      %v460 = vsel %vm305, %v276, 0
      %v463 = vsel %vm305, %v277, 0
      %v466 = vsel %vm305, %v278, 0
      %v469 = vsel %vm305, %v279, 0
      %v472 = vsel %vm305, %v280, 0
      %v475 = vsel %vm305, %v281, 0
      %v478 = vsel %vm305, %v282, 0
      %v481 = vsel %vm305, %v283, 0
      %v484 = vsel %vm305, %v284, 0
      %v487 = vsel %vm305, %v285, 0
      %v490 = vsel %vm305, %v286, 0
      %v493 = vsel %vm305, %v287, 0
      %v496 = vsel %vm305, %v288, 0
      %v499 = vsel %vm305, %v289, 0
      %v502 = vsel %vm305, %v290, 0
      %v505 = vsel %vm305, %v291, 0
      %v508 = vsel %vm305, %v292, 0
      %v511 = vsel %vm305, %v293, 0
      %v514 = vsel %vm305, %v294, 0
      %v517 = vsel %vm305, %v295, 0
      %v520 = vsel %vm305, %v296, 0
      %vm522 = vcmask 1040384
      %v524 = vsel %vm522, %v300, 0
      %526 = vmatpush.msra.mxu0 0.0
      %527 = vmatpush.msra.mxu0 0.0
      %528 = vmatpush.msra.mxu0 0.0
      %529 = vmatpush.msra.mxu0 0.0
      %530 = vmatpush.msra.mxu0 0.0
      %531 = vmatpush.msra.mxu0 0.0
      %532 = vmatpush.msra.mxu0 0.0
      %533 = vmatpush.msra.mxu0 0.0
      %534 = vmatpush.msra.mxu0 0.0
      %535 = vmatpush.msra.mxu0 0.0
      %536 = vmatpush.msra.mxu0 0.0
      %537 = vmatpush.msra.mxu0 0.0
      %538 = vmatpush.msra.mxu0 %v524
      %539 = vmatpush.msra.mxu0 %v299
      %540 = vmatpush.msra.mxu0 %v298
      %541 = vmatpush.msra.mxu0 %v297
      %542 = vmatmul.f32.gmra.mxu0 %v307
      %v543 = vpop.f32.mrf.mxu0
      %v544 = vadd.f32 %v303, %v543
      %545 = vmatmul.f32.gmra.mxu0 %v310
      %v546 = vpop.f32.mrf.mxu0
      %v547 = vadd.f32 %v303, %v546
      %548 = vmatmul.f32.gmra.mxu0 %v313
      %v549 = vpop.f32.mrf.mxu0
      %v550 = vadd.f32 %v303, %v549
      %551 = vmatmul.f32.gmra.mxu0 %v316
      %v552 = vpop.f32.mrf.mxu0
      %v553 = vadd.f32 %v303, %v552
      %554 = vmatmul.f32.gmra.mxu0 %v319
      %v555 = vpop.f32.mrf.mxu0
      %v556 = vadd.f32 %v303, %v555
      %557 = vmatmul.f32.gmra.mxu0 %v322
      %v558 = vpop.f32.mrf.mxu0
      %v559 = vadd.f32 %v303, %v558
      %560 = vmatmul.f32.gmra.mxu0 %v325
      %v561 = vpop.f32.mrf.mxu0
      %v562 = vadd.f32 %v303, %v561
      %563 = vmatmul.f32.gmra.mxu0 %v328
      %v564 = vpop.f32.mrf.mxu0
      %v565 = vadd.f32 %v303, %v564
      %566 = vmatmul.f32.gmra.mxu0 %v331
      %v567 = vpop.f32.mrf.mxu0
      %v568 = vadd.f32 %v303, %v567
      %569 = vmatmul.f32.gmra.mxu0 %v334
      %v570 = vpop.f32.mrf.mxu0
      %v571 = vadd.f32 %v303, %v570
      %572 = vmatmul.f32.gmra.mxu0 %v337
      %v573 = vpop.f32.mrf.mxu0
      %v574 = vadd.f32 %v303, %v573
      %575 = vmatmul.f32.gmra.mxu0 %v340
      %v576 = vpop.f32.mrf.mxu0
      %v577 = vadd.f32 %v303, %v576
      %578 = vmatmul.f32.gmra.mxu0 %v343
      %v579 = vpop.f32.mrf.mxu0
      %v580 = vadd.f32 %v303, %v579
      %581 = vmatmul.f32.gmra.mxu0 %v346
      %v582 = vpop.f32.mrf.mxu0
      %v583 = vadd.f32 %v303, %v582
      %584 = vmatmul.f32.gmra.mxu0 %v349
      %v585 = vpop.f32.mrf.mxu0
      %v586 = vadd.f32 %v303, %v585
      %587 = vmatmul.f32.gmra.mxu0 %v352
      %v588 = vpop.f32.mrf.mxu0
      %v589 = vadd.f32 %v303, %v588
      %590 = vmatmul.f32.gmra.mxu0 %v355
      %v591 = vpop.f32.mrf.mxu0
      %v592 = vadd.f32 %v303, %v591
      %593 = vmatmul.f32.gmra.mxu0 %v358
      %v594 = vpop.f32.mrf.mxu0
      %v595 = vadd.f32 %v303, %v594
      %596 = vmatmul.f32.gmra.mxu0 %v361
      %v597 = vpop.f32.mrf.mxu0
      %v598 = vadd.f32 %v303, %v597
      %599 = vmatmul.f32.gmra.mxu0 %v364
      %v600 = vpop.f32.mrf.mxu0
      %v601 = vadd.f32 %v303, %v600
      %602 = vmatmul.f32.gmra.mxu0 %v367
      %v603 = vpop.f32.mrf.mxu0
      %v604 = vadd.f32 %v303, %v603
      %605 = vmatmul.f32.gmra.mxu0 %v370
      %v606 = vpop.f32.mrf.mxu0
      %v607 = vadd.f32 %v303, %v606
      %608 = vmatmul.f32.gmra.mxu0 %v373
      %v609 = vpop.f32.mrf.mxu0
      %v610 = vadd.f32 %v303, %v609
      %611 = vmatmul.f32.gmra.mxu0 %v376
      %v612 = vpop.f32.mrf.mxu0
      %v613 = vadd.f32 %v303, %v612
      %614 = vmatmul.f32.gmra.mxu0 %v379
      %v615 = vpop.f32.mrf.mxu0
      %v616 = vadd.f32 %v303, %v615
      %617 = vmatmul.f32.gmra.mxu0 %v382
      %v618 = vpop.f32.mrf.mxu0
      %v619 = vadd.f32 %v303, %v618
      %620 = vmatmul.f32.gmra.mxu0 %v385
      %v621 = vpop.f32.mrf.mxu0
      %v622 = vadd.f32 %v303, %v621
      %623 = vmatmul.f32.gmra.mxu0 %v388
      %v624 = vpop.f32.mrf.mxu0
      %v625 = vadd.f32 %v303, %v624
      %626 = vmatmul.f32.gmra.mxu0 %v391
      %v627 = vpop.f32.mrf.mxu0
      %v628 = vadd.f32 %v303, %v627
      %629 = vmatmul.f32.gmra.mxu0 %v394
      %v630 = vpop.f32.mrf.mxu0
      %v631 = vadd.f32 %v303, %v630
      %632 = vmatmul.f32.gmra.mxu0 %v397
      %v633 = vpop.f32.mrf.mxu0
      %v634 = vadd.f32 %v303, %v633
      %635 = vmatmul.f32.gmra.mxu0 %v400
      %v636 = vpop.f32.mrf.mxu0
      %v637 = vadd.f32 %v303, %v636
      %638 = vmatmul.f32.gmra.mxu0 %v403
      %v639 = vpop.f32.mrf.mxu0
      %v640 = vadd.f32 %v303, %v639
      %641 = vmatmul.f32.gmra.mxu0 %v406
      %v642 = vpop.f32.mrf.mxu0
      %v643 = vadd.f32 %v303, %v642
      %644 = vmatmul.f32.gmra.mxu0 %v409
      %v645 = vpop.f32.mrf.mxu0
      %v646 = vadd.f32 %v303, %v645
      %647 = vmatmul.f32.gmra.mxu0 %v412
      %v648 = vpop.f32.mrf.mxu0
      %v649 = vadd.f32 %v303, %v648
      %650 = vmatmul.f32.gmra.mxu0 %v415
      %v651 = vpop.f32.mrf.mxu0
      %v652 = vadd.f32 %v303, %v651
      %653 = vmatmul.f32.gmra.mxu0 %v418
      %v654 = vpop.f32.mrf.mxu0
      %v655 = vadd.f32 %v303, %v654
      %656 = vmatmul.f32.gmra.mxu0 %v421
      %v657 = vpop.f32.mrf.mxu0
      %v658 = vadd.f32 %v303, %v657
      %659 = vmatmul.f32.gmra.mxu0 %v424
      %v660 = vpop.f32.mrf.mxu0
      %v661 = vadd.f32 %v303, %v660
      %662 = vmatmul.f32.gmra.mxu0 %v427
      %v663 = vpop.f32.mrf.mxu0
      %v664 = vadd.f32 %v303, %v663
      %665 = vmatmul.f32.gmra.mxu0 %v430
      %v666 = vpop.f32.mrf.mxu0
      %v667 = vadd.f32 %v303, %v666
      %668 = vmatmul.f32.gmra.mxu0 %v433
      %v669 = vpop.f32.mrf.mxu0
      %v670 = vadd.f32 %v303, %v669
      %671 = vmatmul.f32.gmra.mxu0 %v436
      %v672 = vpop.f32.mrf.mxu0
      %v673 = vadd.f32 %v303, %v672
      %674 = vmatmul.f32.gmra.mxu0 %v439
      %v675 = vpop.f32.mrf.mxu0
      %v676 = vadd.f32 %v303, %v675
      %677 = vmatmul.f32.gmra.mxu0 %v442
      %v678 = vpop.f32.mrf.mxu0
      %v679 = vadd.f32 %v303, %v678
      %680 = vmatmul.f32.gmra.mxu0 %v445
      %v681 = vpop.f32.mrf.mxu0
      %v682 = vadd.f32 %v303, %v681
      %683 = vmatmul.f32.gmra.mxu0 %v448
      %v684 = vpop.f32.mrf.mxu0
      %v685 = vadd.f32 %v303, %v684
      %686 = vmatmul.f32.gmra.mxu0 %v451
      %v687 = vpop.f32.mrf.mxu0
      %v688 = vadd.f32 %v303, %v687
      %689 = vmatmul.f32.gmra.mxu0 %v454
      %v690 = vpop.f32.mrf.mxu0
      %v691 = vadd.f32 %v303, %v690
      %692 = vmatmul.f32.gmra.mxu0 %v457
      %v693 = vpop.f32.mrf.mxu0
      %v694 = vadd.f32 %v303, %v693
      %695 = vmatmul.f32.gmra.mxu0 %v460
      %v696 = vpop.f32.mrf.mxu0
      %v697 = vadd.f32 %v303, %v696
      %698 = vmatmul.f32.gmra.mxu0 %v463
      %v699 = vpop.f32.mrf.mxu0
      %v700 = vadd.f32 %v303, %v699
      %701 = vmatmul.f32.gmra.mxu0 %v466
      %v702 = vpop.f32.mrf.mxu0
      %v703 = vadd.f32 %v303, %v702
      %704 = vmatmul.f32.gmra.mxu0 %v469
      %v705 = vpop.f32.mrf.mxu0
      %v706 = vadd.f32 %v303, %v705
      %707 = vmatmul.f32.gmra.mxu0 %v472
      %v708 = vpop.f32.mrf.mxu0
      %v709 = vadd.f32 %v303, %v708
      %710 = vmatmul.f32.gmra.mxu0 %v475
      %v711 = vpop.f32.mrf.mxu0
      %v712 = vadd.f32 %v303, %v711
      %713 = vmatmul.f32.gmra.mxu0 %v478
      %v714 = vpop.f32.mrf.mxu0
      %v715 = vadd.f32 %v303, %v714
      %716 = vmatmul.f32.gmra.mxu0 %v481
      %v717 = vpop.f32.mrf.mxu0
      %v718 = vadd.f32 %v303, %v717
      %719 = vmatmul.f32.gmra.mxu0 %v484
      %v720 = vpop.f32.mrf.mxu0
      %v721 = vadd.f32 %v303, %v720
      %722 = vmatmul.f32.gmra.mxu0 %v487
      %v723 = vpop.f32.mrf.mxu0
      %v724 = vadd.f32 %v303, %v723
      %725 = vmatmul.f32.gmra.mxu0 %v490
      %v726 = vpop.f32.mrf.mxu0
      %v727 = vadd.f32 %v303, %v726
      %728 = vmatmul.f32.gmra.mxu0 %v493
      %v729 = vpop.f32.mrf.mxu0
      %v730 = vadd.f32 %v303, %v729
      %731 = vmatmul.f32.gmra.mxu0 %v496
      %v732 = vpop.f32.mrf.mxu0
      %v733 = vadd.f32 %v303, %v732
      %734 = vmatmul.f32.gmra.mxu0 %v499
      %v735 = vpop.f32.mrf.mxu0
      %v736 = vadd.f32 %v303, %v735
      %737 = vmatmul.f32.gmra.mxu0 %v502
      %v738 = vpop.f32.mrf.mxu0
      %v739 = vadd.f32 %v303, %v738
      %740 = vmatmul.f32.gmra.mxu0 %v505
      %v741 = vpop.f32.mrf.mxu0
      %v742 = vadd.f32 %v303, %v741
      %743 = vmatmul.f32.gmra.mxu0 %v508
      %v744 = vpop.f32.mrf.mxu0
      %v745 = vadd.f32 %v303, %v744
      %746 = vmatmul.f32.gmra.mxu0 %v511
      %v747 = vpop.f32.mrf.mxu0
      %v748 = vadd.f32 %v303, %v747
      %749 = vmatmul.f32.gmra.mxu0 %v514
      %v750 = vpop.f32.mrf.mxu0
      %v751 = vadd.f32 %v303, %v750
      %752 = vmatmul.f32.gmra.mxu0 %v517
      %v753 = vpop.f32.mrf.mxu0
      %v754 = vadd.f32 %v303, %v753
      %755 = vmatmul.f32.gmra.mxu0 %v520
      %v756 = vpop.f32.mrf.mxu0
      %v757 = vadd.f32 %v303, %v756
      %758 = vdwg.mxu0
      %v759 = vand.u32 2147483647, %v544
      %v760 = vand.u32 2147483647, %v547
      %v761 = vand.u32 2147483647, %v550
      %v762 = vand.u32 2147483647, %v553
      %v763 = vand.u32 2147483647, %v556
      %v764 = vand.u32 2147483647, %v559
      %v765 = vand.u32 2147483647, %v562
      %v766 = vand.u32 2147483647, %v565
      %v767 = vand.u32 2147483647, %v568
      %v768 = vand.u32 2147483647, %v571
      %v769 = vand.u32 2147483647, %v574
      %v770 = vand.u32 2147483647, %v577
      %v771 = vand.u32 2147483647, %v580
      %v772 = vand.u32 2147483647, %v583
      %v773 = vand.u32 2147483647, %v586
      %v774 = vand.u32 2147483647, %v589
      %v775 = vand.u32 2147483647, %v592
      %v776 = vand.u32 2147483647, %v595
      %v777 = vand.u32 2147483647, %v598
      %v778 = vand.u32 2147483647, %v601
      %v779 = vand.u32 2147483647, %v604
      %v780 = vand.u32 2147483647, %v607
      %v781 = vand.u32 2147483647, %v610
      %v782 = vand.u32 2147483647, %v613
      %v783 = vand.u32 2147483647, %v616
      %v784 = vand.u32 2147483647, %v619
      %v785 = vand.u32 2147483647, %v622
      %v786 = vand.u32 2147483647, %v625
      %v787 = vand.u32 2147483647, %v628
      %v788 = vand.u32 2147483647, %v631
      %v789 = vand.u32 2147483647, %v634
      %v790 = vand.u32 2147483647, %v637
      %v791 = vand.u32 2147483647, %v640
      %v792 = vand.u32 2147483647, %v643
      %v793 = vand.u32 2147483647, %v646
      %v794 = vand.u32 2147483647, %v649
      %v795 = vand.u32 2147483647, %v652
      %v796 = vand.u32 2147483647, %v655
      %v797 = vand.u32 2147483647, %v658
      %v798 = vand.u32 2147483647, %v661
      %v799 = vand.u32 2147483647, %v664
      %v800 = vand.u32 2147483647, %v667
      %v801 = vand.u32 2147483647, %v670
      %v802 = vand.u32 2147483647, %v673
      %v803 = vand.u32 2147483647, %v676
      %v804 = vand.u32 2147483647, %v679
      %v805 = vand.u32 2147483647, %v682
      %v806 = vand.u32 2147483647, %v685
      %v807 = vand.u32 2147483647, %v688
      %v808 = vand.u32 2147483647, %v691
      %v809 = vand.u32 2147483647, %v694
      %v810 = vand.u32 2147483647, %v697
      %v811 = vand.u32 2147483647, %v700
      %v812 = vand.u32 2147483647, %v703
      %v813 = vand.u32 2147483647, %v706
      %v814 = vand.u32 2147483647, %v709
      %v815 = vand.u32 2147483647, %v712
      %v816 = vand.u32 2147483647, %v715
      %v817 = vand.u32 2147483647, %v718
      %v818 = vand.u32 2147483647, %v721
      %v819 = vand.u32 2147483647, %v724
      %v820 = vand.u32 2147483647, %v727
      %v821 = vand.u32 2147483647, %v730
      %v822 = vand.u32 2147483647, %v733
      %v823 = vand.u32 2147483647, %v736
      %v824 = vand.u32 2147483647, %v739
      %v825 = vand.u32 2147483647, %v742
      %v826 = vand.u32 2147483647, %v745
      %v827 = vand.u32 2147483647, %v748
      %v828 = vand.u32 2147483647, %v751
      %v829 = vand.u32 2147483647, %v754
      %v830 = vand.u32 2147483647, %v757
      %vm831 = vcmask 261120
      %v832 = vsel %vm831, %v759, 0.0
      %833 = vadd.xlane.f32.xlu0 %v832
      %v834 = vpop.xlane.xlu0 %833
      %v835 = vsel %vm831, %v760, 0.0
      %836 = vadd.xlane.f32.xlu0 %v835
      %v837 = vpop.xlane.xlu0 %836
      %v838 = vsel %vm831, %v761, 0.0
      %839 = vadd.xlane.f32.xlu0 %v838
      %v840 = vpop.xlane.xlu0 %839
      %v841 = vsel %vm831, %v762, 0.0
      %842 = vadd.xlane.f32.xlu0 %v841
      %v843 = vpop.xlane.xlu0 %842
      %v844 = vsel %vm831, %v763, 0.0
      %845 = vadd.xlane.f32.xlu0 %v844
      %v846 = vpop.xlane.xlu0 %845
      %v847 = vsel %vm831, %v764, 0.0
      %848 = vadd.xlane.f32.xlu0 %v847
      %v849 = vpop.xlane.xlu0 %848
      %v850 = vsel %vm831, %v765, 0.0
      %851 = vadd.xlane.f32.xlu0 %v850
      %v852 = vpop.xlane.xlu0 %851
      %v853 = vsel %vm831, %v766, 0.0
      %854 = vadd.xlane.f32.xlu0 %v853
      %v855 = vpop.xlane.xlu0 %854
      %v856 = vsel %vm831, %v767, 0.0
      %857 = vadd.xlane.f32.xlu0 %v856
      %v858 = vpop.xlane.xlu0 %857
      %v859 = vsel %vm831, %v768, 0.0
      %860 = vadd.xlane.f32.xlu0 %v859
      %v861 = vpop.xlane.xlu0 %860
      %v862 = vsel %vm831, %v769, 0.0
      %863 = vadd.xlane.f32.xlu0 %v862
      %v864 = vpop.xlane.xlu0 %863
      %v865 = vsel %vm831, %v770, 0.0
      %866 = vadd.xlane.f32.xlu0 %v865
      %v867 = vpop.xlane.xlu0 %866
      %v868 = vsel %vm831, %v771, 0.0
      %869 = vadd.xlane.f32.xlu0 %v868
      %v870 = vpop.xlane.xlu0 %869
      %v871 = vsel %vm831, %v772, 0.0
      %872 = vadd.xlane.f32.xlu0 %v871
      %v873 = vpop.xlane.xlu0 %872
      %v874 = vsel %vm831, %v773, 0.0
      %875 = vadd.xlane.f32.xlu0 %v874
      %v876 = vpop.xlane.xlu0 %875
      %v877 = vsel %vm831, %v774, 0.0
      %878 = vadd.xlane.f32.xlu0 %v877
      %v879 = vpop.xlane.xlu0 %878
      %v880 = vsel %vm831, %v775, 0.0
      %881 = vadd.xlane.f32.xlu0 %v880
      %v882 = vpop.xlane.xlu0 %881
      %v883 = vsel %vm831, %v776, 0.0
      %884 = vadd.xlane.f32.xlu0 %v883
      %v885 = vpop.xlane.xlu0 %884
      %v886 = vsel %vm831, %v777, 0.0
      %887 = vadd.xlane.f32.xlu0 %v886
      %v888 = vpop.xlane.xlu0 %887
      %v889 = vsel %vm831, %v778, 0.0
      %890 = vadd.xlane.f32.xlu0 %v889
      %v891 = vpop.xlane.xlu0 %890
      %v892 = vsel %vm831, %v779, 0.0
      %893 = vadd.xlane.f32.xlu0 %v892
      %v894 = vpop.xlane.xlu0 %893
      %v895 = vsel %vm831, %v780, 0.0
      %896 = vadd.xlane.f32.xlu0 %v895
      %v897 = vpop.xlane.xlu0 %896
      %v898 = vsel %vm831, %v781, 0.0
      %899 = vadd.xlane.f32.xlu0 %v898
      %v900 = vpop.xlane.xlu0 %899
      %v901 = vsel %vm831, %v782, 0.0
      %902 = vadd.xlane.f32.xlu0 %v901
      %v903 = vpop.xlane.xlu0 %902
      %v904 = vsel %vm831, %v783, 0.0
      %905 = vadd.xlane.f32.xlu0 %v904
      %v906 = vpop.xlane.xlu0 %905
      %v907 = vsel %vm831, %v784, 0.0
      %908 = vadd.xlane.f32.xlu0 %v907
      %v909 = vpop.xlane.xlu0 %908
      %v910 = vsel %vm831, %v785, 0.0
      %911 = vadd.xlane.f32.xlu0 %v910
      %v912 = vpop.xlane.xlu0 %911
      %v913 = vsel %vm831, %v786, 0.0
      %914 = vadd.xlane.f32.xlu0 %v913
      %v915 = vpop.xlane.xlu0 %914
      %v916 = vsel %vm831, %v787, 0.0
      %917 = vadd.xlane.f32.xlu0 %v916
      %v918 = vpop.xlane.xlu0 %917
      %v919 = vsel %vm831, %v788, 0.0
      %920 = vadd.xlane.f32.xlu0 %v919
      %v921 = vpop.xlane.xlu0 %920
      %v922 = vsel %vm831, %v789, 0.0
      %923 = vadd.xlane.f32.xlu0 %v922
      %v924 = vpop.xlane.xlu0 %923
      %v925 = vsel %vm831, %v790, 0.0
      %926 = vadd.xlane.f32.xlu0 %v925
      %v927 = vpop.xlane.xlu0 %926
      %v928 = vsel %vm831, %v791, 0.0
      %929 = vadd.xlane.f32.xlu0 %v928
      %v930 = vpop.xlane.xlu0 %929
      %v931 = vsel %vm831, %v792, 0.0
      %932 = vadd.xlane.f32.xlu0 %v931
      %v933 = vpop.xlane.xlu0 %932
      %v934 = vsel %vm831, %v793, 0.0
      %935 = vadd.xlane.f32.xlu0 %v934
      %v936 = vpop.xlane.xlu0 %935
      %v937 = vsel %vm831, %v794, 0.0
      %938 = vadd.xlane.f32.xlu0 %v937
      %v939 = vpop.xlane.xlu0 %938
      %v940 = vsel %vm831, %v795, 0.0
      %941 = vadd.xlane.f32.xlu0 %v940
      %v942 = vpop.xlane.xlu0 %941
      %v943 = vsel %vm831, %v796, 0.0
      %944 = vadd.xlane.f32.xlu0 %v943
      %v945 = vpop.xlane.xlu0 %944
      %v946 = vsel %vm831, %v797, 0.0
      %947 = vadd.xlane.f32.xlu0 %v946
      %v948 = vpop.xlane.xlu0 %947
      %v949 = vsel %vm831, %v798, 0.0
      %950 = vadd.xlane.f32.xlu0 %v949
      %v951 = vpop.xlane.xlu0 %950
      %v952 = vsel %vm831, %v799, 0.0
      %953 = vadd.xlane.f32.xlu0 %v952
      %v954 = vpop.xlane.xlu0 %953
      %v955 = vsel %vm831, %v800, 0.0
      %956 = vadd.xlane.f32.xlu0 %v955
      %v957 = vpop.xlane.xlu0 %956
      %v958 = vsel %vm831, %v801, 0.0
      %959 = vadd.xlane.f32.xlu0 %v958
      %v960 = vpop.xlane.xlu0 %959
      %v961 = vsel %vm831, %v802, 0.0
      %962 = vadd.xlane.f32.xlu0 %v961
      %v963 = vpop.xlane.xlu0 %962
      %v964 = vsel %vm831, %v803, 0.0
      %965 = vadd.xlane.f32.xlu0 %v964
      %v966 = vpop.xlane.xlu0 %965
      %v967 = vsel %vm831, %v804, 0.0
      %968 = vadd.xlane.f32.xlu0 %v967
      %v969 = vpop.xlane.xlu0 %968
      %v970 = vsel %vm831, %v805, 0.0
      %971 = vadd.xlane.f32.xlu0 %v970
      %v972 = vpop.xlane.xlu0 %971
      %v973 = vsel %vm831, %v806, 0.0
      %974 = vadd.xlane.f32.xlu0 %v973
      %v975 = vpop.xlane.xlu0 %974
      %v976 = vsel %vm831, %v807, 0.0
      %977 = vadd.xlane.f32.xlu0 %v976
      %v978 = vpop.xlane.xlu0 %977
      %v979 = vsel %vm831, %v808, 0.0
      %980 = vadd.xlane.f32.xlu0 %v979
      %v981 = vpop.xlane.xlu0 %980
      %v982 = vsel %vm831, %v809, 0.0
      %983 = vadd.xlane.f32.xlu0 %v982
      %v984 = vpop.xlane.xlu0 %983
      %v985 = vsel %vm831, %v810, 0.0
      %986 = vadd.xlane.f32.xlu0 %v985
      %v987 = vpop.xlane.xlu0 %986
      %v988 = vsel %vm831, %v811, 0.0
      %989 = vadd.xlane.f32.xlu0 %v988
      %v990 = vpop.xlane.xlu0 %989
      %v991 = vsel %vm831, %v812, 0.0
      %992 = vadd.xlane.f32.xlu0 %v991
      %v993 = vpop.xlane.xlu0 %992
      %v994 = vsel %vm831, %v813, 0.0
      %995 = vadd.xlane.f32.xlu0 %v994
      %v996 = vpop.xlane.xlu0 %995
      %v997 = vsel %vm831, %v814, 0.0
      %998 = vadd.xlane.f32.xlu0 %v997
      %v999 = vpop.xlane.xlu0 %998
      %v1000 = vsel %vm831, %v815, 0.0
      %1001 = vadd.xlane.f32.xlu0 %v1000
      %v1002 = vpop.xlane.xlu0 %1001
      %v1003 = vsel %vm831, %v816, 0.0
      %1004 = vadd.xlane.f32.xlu0 %v1003
      %v1005 = vpop.xlane.xlu0 %1004
      %v1006 = vsel %vm831, %v817, 0.0
      %1007 = vadd.xlane.f32.xlu0 %v1006
      %v1008 = vpop.xlane.xlu0 %1007
      %v1009 = vsel %vm831, %v818, 0.0
      %1010 = vadd.xlane.f32.xlu0 %v1009
      %v1011 = vpop.xlane.xlu0 %1010
      %v1012 = vsel %vm831, %v819, 0.0
      %1013 = vadd.xlane.f32.xlu0 %v1012
      %v1014 = vpop.xlane.xlu0 %1013
      %v1015 = vsel %vm831, %v820, 0.0
      %1016 = vadd.xlane.f32.xlu0 %v1015
      %v1017 = vpop.xlane.xlu0 %1016
      %v1018 = vsel %vm831, %v821, 0.0
      %1019 = vadd.xlane.f32.xlu0 %v1018
      %v1020 = vpop.xlane.xlu0 %1019
      %v1021 = vsel %vm831, %v822, 0.0
      %1022 = vadd.xlane.f32.xlu0 %v1021
      %v1023 = vpop.xlane.xlu0 %1022
      %v1024 = vsel %vm831, %v823, 0.0
      %1025 = vadd.xlane.f32.xlu0 %v1024
      %v1026 = vpop.xlane.xlu0 %1025
      %v1027 = vsel %vm831, %v824, 0.0
      %1028 = vadd.xlane.f32.xlu0 %v1027
      %v1029 = vpop.xlane.xlu0 %1028
      %v1030 = vsel %vm831, %v825, 0.0
      %1031 = vadd.xlane.f32.xlu0 %v1030
      %v1032 = vpop.xlane.xlu0 %1031
      %v1033 = vsel %vm831, %v826, 0.0
      %1034 = vadd.xlane.f32.xlu0 %v1033
      %v1035 = vpop.xlane.xlu0 %1034
      %v1036 = vsel %vm831, %v827, 0.0
      %1037 = vadd.xlane.f32.xlu0 %v1036
      %v1038 = vpop.xlane.xlu0 %1037
      %v1039 = vsel %vm831, %v828, 0.0
      %1040 = vadd.xlane.f32.xlu0 %v1039
      %v1041 = vpop.xlane.xlu0 %1040
      %v1042 = vsel %vm831, %v829, 0.0
      %1043 = vadd.xlane.f32.xlu0 %v1042
      %v1044 = vpop.xlane.xlu0 %1043
      %v1045 = vsel %vm831, %v830, 0.0
      %1046 = vadd.xlane.f32.xlu0 %v1045
      %v1047 = vpop.xlane.xlu0 %1046
      %v1048 = vadd.f32 %v834, %v837
      %v1049 = vadd.f32 %v1048, %v840
      %v1050 = vadd.f32 %v1049, %v843
      %v1051 = vadd.f32 %v1050, %v846
      %v1052 = vadd.f32 %v1051, %v849
      %v1053 = vadd.f32 %v1052, %v852
      %v1054 = vadd.f32 %v1053, %v855
      %v1055 = vadd.f32 %v1054, %v858
      %v1056 = vadd.f32 %v1055, %v861
      %v1057 = vadd.f32 %v1056, %v864
      %v1058 = vadd.f32 %v1057, %v867
      %v1059 = vadd.f32 %v1058, %v870
      %v1060 = vadd.f32 %v1059, %v873
      %v1061 = vadd.f32 %v1060, %v876
      %v1062 = vadd.f32 %v1061, %v879
      %v1063 = vadd.f32 %v1062, %v882
      %v1064 = vadd.f32 %v1063, %v885
      %v1065 = vadd.f32 %v1064, %v888
      %v1066 = vadd.f32 %v1065, %v891
      %v1067 = vadd.f32 %v1066, %v894
      %v1068 = vadd.f32 %v1067, %v897
      %v1069 = vadd.f32 %v1068, %v900
      %v1070 = vadd.f32 %v1069, %v903
      %v1071 = vadd.f32 %v1070, %v906
      %v1072 = vadd.f32 %v1071, %v909
      %v1073 = vadd.f32 %v1072, %v912
      %v1074 = vadd.f32 %v1073, %v915
      %v1075 = vadd.f32 %v1074, %v918
      %v1076 = vadd.f32 %v1075, %v921
      %v1077 = vadd.f32 %v1076, %v924
      %v1078 = vadd.f32 %v1077, %v927
      %v1079 = vadd.f32 %v1078, %v930
      %v1080 = vadd.f32 %v1079, %v933
      %v1081 = vadd.f32 %v1080, %v936
      %v1082 = vadd.f32 %v1081, %v939
      %v1083 = vadd.f32 %v1082, %v942
      %v1084 = vadd.f32 %v1083, %v945
      %v1085 = vadd.f32 %v1084, %v948
      %v1086 = vadd.f32 %v1085, %v951
      %v1087 = vadd.f32 %v1086, %v954
      %v1088 = vadd.f32 %v1087, %v957
      %v1089 = vadd.f32 %v1088, %v960
      %v1090 = vadd.f32 %v1089, %v963
      %v1091 = vadd.f32 %v1090, %v966
      %v1092 = vadd.f32 %v1091, %v969
      %v1093 = vadd.f32 %v1092, %v972
      %v1094 = vadd.f32 %v1093, %v975
      %v1095 = vadd.f32 %v1094, %v978
      %v1096 = vadd.f32 %v1095, %v981
      %v1097 = vadd.f32 %v1096, %v984
      %v1098 = vadd.f32 %v1097, %v987
      %v1099 = vadd.f32 %v1098, %v990
      %v1100 = vadd.f32 %v1099, %v993
      %v1101 = vadd.f32 %v1100, %v996
      %v1102 = vadd.f32 %v1101, %v999
      %v1103 = vadd.f32 %v1102, %v1002
      %v1104 = vadd.f32 %v1103, %v1005
      %v1105 = vadd.f32 %v1104, %v1008
      %v1106 = vadd.f32 %v1105, %v1011
      %v1107 = vadd.f32 %v1106, %v1014
      %v1108 = vadd.f32 %v1107, %v1017
      %v1109 = vadd.f32 %v1108, %v1020
      %v1110 = vadd.f32 %v1109, %v1023
      %v1111 = vadd.f32 %v1110, %v1026
      %v1112 = vadd.f32 %v1111, %v1029
      %v1113 = vadd.f32 %v1112, %v1032
      %v1114 = vadd.f32 %v1113, %v1035
      %v1115 = vadd.f32 %v1114, %v1038
      %v1116 = vadd.f32 %v1115, %v1041
      %v1117 = vadd.f32 %v1116, %v1044
      %v1118 = vadd.f32 %v1117, %v1047
      %v1119 = vrot.slane %v1118, 4
      %v1120 = vadd.f32 %v1118, %v1119
      %v1121 = vrot.slane %v1120, 2
      %v1122 = vadd.f32 %v1120, %v1121
      %v1123 = vrot.slane %v1122, 1
      %v1124 = vadd.f32 %v1122, %v1123
      %v1125 = vmul.f32 %v1124, 3.7977432e-05
      %vm1126 = vcmp.gt.f32.partialorder %v759, %v1125
      %vm1127 = vcmp.gt.f32.partialorder %v760, %v1125
      %vm1128 = vcmp.gt.f32.partialorder %v761, %v1125
      %vm1129 = vcmp.gt.f32.partialorder %v762, %v1125
      %vm1130 = vcmp.gt.f32.partialorder %v763, %v1125
      %vm1131 = vcmp.gt.f32.partialorder %v764, %v1125
      %vm1132 = vcmp.gt.f32.partialorder %v765, %v1125
      %vm1133 = vcmp.gt.f32.partialorder %v766, %v1125
      %vm1134 = vcmp.gt.f32.partialorder %v767, %v1125
      %vm1135 = vcmp.gt.f32.partialorder %v768, %v1125
      %vm1136 = vcmp.gt.f32.partialorder %v769, %v1125
      %vm1137 = vcmp.gt.f32.partialorder %v770, %v1125
      %vm1138 = vcmp.gt.f32.partialorder %v771, %v1125
      %vm1139 = vcmp.gt.f32.partialorder %v772, %v1125
      %vm1140 = vcmp.gt.f32.partialorder %v773, %v1125
      %vm1141 = vcmp.gt.f32.partialorder %v774, %v1125
      %vm1142 = vcmp.gt.f32.partialorder %v775, %v1125
      %vm1143 = vcmp.gt.f32.partialorder %v776, %v1125
      %vm1144 = vcmp.gt.f32.partialorder %v777, %v1125
      %vm1145 = vcmp.gt.f32.partialorder %v778, %v1125
      %vm1146 = vcmp.gt.f32.partialorder %v779, %v1125
      %vm1147 = vcmp.gt.f32.partialorder %v780, %v1125
      %vm1148 = vcmp.gt.f32.partialorder %v781, %v1125
      %vm1149 = vcmp.gt.f32.partialorder %v782, %v1125
      %vm1150 = vcmp.gt.f32.partialorder %v783, %v1125
      %vm1151 = vcmp.gt.f32.partialorder %v784, %v1125
      %vm1152 = vcmp.gt.f32.partialorder %v785, %v1125
      %vm1153 = vcmp.gt.f32.partialorder %v786, %v1125
      %vm1154 = vcmp.gt.f32.partialorder %v787, %v1125
      %vm1155 = vcmp.gt.f32.partialorder %v788, %v1125
      %vm1156 = vcmp.gt.f32.partialorder %v789, %v1125
      %vm1157 = vcmp.gt.f32.partialorder %v790, %v1125
      %vm1158 = vcmp.gt.f32.partialorder %v791, %v1125
      %vm1159 = vcmp.gt.f32.partialorder %v792, %v1125
      %vm1160 = vcmp.gt.f32.partialorder %v793, %v1125
      %vm1161 = vcmp.gt.f32.partialorder %v794, %v1125
      %vm1162 = vcmp.gt.f32.partialorder %v795, %v1125
      %vm1163 = vcmp.gt.f32.partialorder %v796, %v1125
      %vm1164 = vcmp.gt.f32.partialorder %v797, %v1125
      %vm1165 = vcmp.gt.f32.partialorder %v798, %v1125
      %vm1166 = vcmp.gt.f32.partialorder %v799, %v1125
      %vm1167 = vcmp.gt.f32.partialorder %v800, %v1125
      %vm1168 = vcmp.gt.f32.partialorder %v801, %v1125
      %vm1169 = vcmp.gt.f32.partialorder %v802, %v1125
      %vm1170 = vcmp.gt.f32.partialorder %v803, %v1125
      %vm1171 = vcmp.gt.f32.partialorder %v804, %v1125
      %vm1172 = vcmp.gt.f32.partialorder %v805, %v1125
      %vm1173 = vcmp.gt.f32.partialorder %v806, %v1125
      %vm1174 = vcmp.gt.f32.partialorder %v807, %v1125
      %vm1175 = vcmp.gt.f32.partialorder %v808, %v1125
      %vm1176 = vcmp.gt.f32.partialorder %v809, %v1125
      %vm1177 = vcmp.gt.f32.partialorder %v810, %v1125
      %vm1178 = vcmp.gt.f32.partialorder %v811, %v1125
      %vm1179 = vcmp.gt.f32.partialorder %v812, %v1125
      %vm1180 = vcmp.gt.f32.partialorder %v813, %v1125
      %vm1181 = vcmp.gt.f32.partialorder %v814, %v1125
      %vm1182 = vcmp.gt.f32.partialorder %v815, %v1125
      %vm1183 = vcmp.gt.f32.partialorder %v816, %v1125
      %vm1184 = vcmp.gt.f32.partialorder %v817, %v1125
      %vm1185 = vcmp.gt.f32.partialorder %v818, %v1125
      %vm1186 = vcmp.gt.f32.partialorder %v819, %v1125
      %vm1187 = vcmp.gt.f32.partialorder %v820, %v1125
      %vm1188 = vcmp.gt.f32.partialorder %v821, %v1125
      %vm1189 = vcmp.gt.f32.partialorder %v822, %v1125
      %vm1190 = vcmp.gt.f32.partialorder %v823, %v1125
      %vm1191 = vcmp.gt.f32.partialorder %v824, %v1125
      %vm1192 = vcmp.gt.f32.partialorder %v825, %v1125
      %vm1193 = vcmp.gt.f32.partialorder %v826, %v1125
      %vm1194 = vcmp.gt.f32.partialorder %v827, %v1125
      %vm1195 = vcmp.gt.f32.partialorder %v828, %v1125
      %vm1196 = vcmp.gt.f32.partialorder %v829, %v1125
      %vm1197 = vcmp.gt.f32.partialorder %v830, %v1125
      %v1198 = vsel %vm1126, 1, 0
      %v1199 = vsel %vm1127, 1, 0
      %v1200 = vsel %vm1128, 1, 0
      %v1201 = vsel %vm1129, 1, 0
      %v1202 = vsel %vm1130, 1, 0
      %v1203 = vsel %vm1131, 1, 0
      %v1204 = vsel %vm1132, 1, 0
      %v1205 = vsel %vm1133, 1, 0
      %v1206 = vsel %vm1134, 1, 0
      %v1207 = vsel %vm1135, 1, 0
      %v1208 = vsel %vm1136, 1, 0
      %v1209 = vsel %vm1137, 1, 0
      %v1210 = vsel %vm1138, 1, 0
      %v1211 = vsel %vm1139, 1, 0
      %v1212 = vsel %vm1140, 1, 0
      %v1213 = vsel %vm1141, 1, 0
      %v1214 = vsel %vm1142, 1, 0
      %v1215 = vsel %vm1143, 1, 0
      %v1216 = vsel %vm1144, 1, 0
      %v1217 = vsel %vm1145, 1, 0
      %v1218 = vsel %vm1146, 1, 0
      %v1219 = vsel %vm1147, 1, 0
      %v1220 = vsel %vm1148, 1, 0
      %v1221 = vsel %vm1149, 1, 0
      %v1222 = vsel %vm1150, 1, 0
      %v1223 = vsel %vm1151, 1, 0
      %v1224 = vsel %vm1152, 1, 0
      %v1225 = vsel %vm1153, 1, 0
      %v1226 = vsel %vm1154, 1, 0
      %v1227 = vsel %vm1155, 1, 0
      %v1228 = vsel %vm1156, 1, 0
      %v1229 = vsel %vm1157, 1, 0
      %v1230 = vsel %vm1158, 1, 0
      %v1231 = vsel %vm1159, 1, 0
      %v1232 = vsel %vm1160, 1, 0
      %v1233 = vsel %vm1161, 1, 0
      %v1234 = vsel %vm1162, 1, 0
      %v1235 = vsel %vm1163, 1, 0
      %v1236 = vsel %vm1164, 1, 0
      %v1237 = vsel %vm1165, 1, 0
      %v1238 = vsel %vm1166, 1, 0
      %v1239 = vsel %vm1167, 1, 0
      %v1240 = vsel %vm1168, 1, 0
      %v1241 = vsel %vm1169, 1, 0
      %v1242 = vsel %vm1170, 1, 0
      %v1243 = vsel %vm1171, 1, 0
      %v1244 = vsel %vm1172, 1, 0
      %v1245 = vsel %vm1173, 1, 0
      %v1246 = vsel %vm1174, 1, 0
      %v1247 = vsel %vm1175, 1, 0
      %v1248 = vsel %vm1176, 1, 0
      %v1249 = vsel %vm1177, 1, 0
      %v1250 = vsel %vm1178, 1, 0
      %v1251 = vsel %vm1179, 1, 0
      %v1252 = vsel %vm1180, 1, 0
      %v1253 = vsel %vm1181, 1, 0
      %v1254 = vsel %vm1182, 1, 0
      %v1255 = vsel %vm1183, 1, 0
      %v1256 = vsel %vm1184, 1, 0
      %v1257 = vsel %vm1185, 1, 0
      %v1258 = vsel %vm1186, 1, 0
      %v1259 = vsel %vm1187, 1, 0
      %v1260 = vsel %vm1188, 1, 0
      %v1261 = vsel %vm1189, 1, 0
      %v1262 = vsel %vm1190, 1, 0
      %v1263 = vsel %vm1191, 1, 0
      %v1264 = vsel %vm1192, 1, 0
      %v1265 = vsel %vm1193, 1, 0
      %v1266 = vsel %vm1194, 1, 0
      %v1267 = vsel %vm1195, 1, 0
      %v1268 = vsel %vm1196, 1, 0
      %v1269 = vsel %vm1197, 1, 0
      %v1270 = vcvt.s32.f32 %v1198
      %v1271 = vcvt.s32.f32 %v1199
      %v1272 = vcvt.s32.f32 %v1200
      %v1273 = vcvt.s32.f32 %v1201
      %v1274 = vcvt.s32.f32 %v1202
      %v1275 = vcvt.s32.f32 %v1203
      %v1276 = vcvt.s32.f32 %v1204
      %v1277 = vcvt.s32.f32 %v1205
      %v1278 = vcvt.s32.f32 %v1206
      %v1279 = vcvt.s32.f32 %v1207
      %v1280 = vcvt.s32.f32 %v1208
      %v1281 = vcvt.s32.f32 %v1209
      %v1282 = vcvt.s32.f32 %v1210
      %v1283 = vcvt.s32.f32 %v1211
      %v1284 = vcvt.s32.f32 %v1212
      %v1285 = vcvt.s32.f32 %v1213
      %v1286 = vcvt.s32.f32 %v1214
      %v1287 = vcvt.s32.f32 %v1215
      %v1288 = vcvt.s32.f32 %v1216
      %v1289 = vcvt.s32.f32 %v1217
      %v1290 = vcvt.s32.f32 %v1218
      %v1291 = vcvt.s32.f32 %v1219
      %v1292 = vcvt.s32.f32 %v1220
      %v1293 = vcvt.s32.f32 %v1221
      %v1294 = vcvt.s32.f32 %v1222
      %v1295 = vcvt.s32.f32 %v1223
      %v1296 = vcvt.s32.f32 %v1224
      %v1297 = vcvt.s32.f32 %v1225
      %v1298 = vcvt.s32.f32 %v1226
      %v1299 = vcvt.s32.f32 %v1227
      %v1300 = vcvt.s32.f32 %v1228
      %v1301 = vcvt.s32.f32 %v1229
      %v1302 = vcvt.s32.f32 %v1230
      %v1303 = vcvt.s32.f32 %v1231
      %v1304 = vcvt.s32.f32 %v1232
      %v1305 = vcvt.s32.f32 %v1233
      %v1306 = vcvt.s32.f32 %v1234
      %v1307 = vcvt.s32.f32 %v1235
      %v1308 = vcvt.s32.f32 %v1236
      %v1309 = vcvt.s32.f32 %v1237
      %v1310 = vcvt.s32.f32 %v1238
      %v1311 = vcvt.s32.f32 %v1239
      %v1312 = vcvt.s32.f32 %v1240
      %v1313 = vcvt.s32.f32 %v1241
      %v1314 = vcvt.s32.f32 %v1242
      %v1315 = vcvt.s32.f32 %v1243
      %v1316 = vcvt.s32.f32 %v1244
      %v1317 = vcvt.s32.f32 %v1245
      %v1318 = vcvt.s32.f32 %v1246
      %v1319 = vcvt.s32.f32 %v1247
      %v1320 = vcvt.s32.f32 %v1248
      %v1321 = vcvt.s32.f32 %v1249
      %v1322 = vcvt.s32.f32 %v1250
      %v1323 = vcvt.s32.f32 %v1251
      %v1324 = vcvt.s32.f32 %v1252
      %v1325 = vcvt.s32.f32 %v1253
      %v1326 = vcvt.s32.f32 %v1254
      %v1327 = vcvt.s32.f32 %v1255
      %v1328 = vcvt.s32.f32 %v1256
      %v1329 = vcvt.s32.f32 %v1257
      %v1330 = vcvt.s32.f32 %v1258
      %v1331 = vcvt.s32.f32 %v1259
      %v1332 = vcvt.s32.f32 %v1260
      %v1333 = vcvt.s32.f32 %v1261
      %v1334 = vcvt.s32.f32 %v1262
      %v1335 = vcvt.s32.f32 %v1263
      %v1336 = vcvt.s32.f32 %v1264
      %v1337 = vcvt.s32.f32 %v1265
      %v1338 = vcvt.s32.f32 %v1266
      %v1339 = vcvt.s32.f32 %v1267
      %v1340 = vcvt.s32.f32 %v1268
      %v1341 = vcvt.s32.f32 %v1269
      %v1342 = vsel %vm831, %v1270, 0.0
      %1343 = vadd.xlane.f32.xlu0 %v1342
      %v1344 = vpop.xlane.xlu0 %1343
      %v1345 = vsel %vm831, %v1271, 0.0
      %1346 = vadd.xlane.f32.xlu0 %v1345
      %v1347 = vpop.xlane.xlu0 %1346
      %v1348 = vsel %vm831, %v1272, 0.0
      %1349 = vadd.xlane.f32.xlu0 %v1348
      %v1350 = vpop.xlane.xlu0 %1349
      %v1351 = vsel %vm831, %v1273, 0.0
      %1352 = vadd.xlane.f32.xlu0 %v1351
      %v1353 = vpop.xlane.xlu0 %1352
      %v1354 = vsel %vm831, %v1274, 0.0
      %1355 = vadd.xlane.f32.xlu0 %v1354
      %v1356 = vpop.xlane.xlu0 %1355
      %v1357 = vsel %vm831, %v1275, 0.0
      %1358 = vadd.xlane.f32.xlu0 %v1357
      %v1359 = vpop.xlane.xlu0 %1358
      %v1360 = vsel %vm831, %v1276, 0.0
      %1361 = vadd.xlane.f32.xlu0 %v1360
      %v1362 = vpop.xlane.xlu0 %1361
      %v1363 = vsel %vm831, %v1277, 0.0
      %1364 = vadd.xlane.f32.xlu0 %v1363
      %v1365 = vpop.xlane.xlu0 %1364
      %v1366 = vsel %vm831, %v1278, 0.0
      %1367 = vadd.xlane.f32.xlu0 %v1366
      %v1368 = vpop.xlane.xlu0 %1367
      %v1369 = vsel %vm831, %v1279, 0.0
      %1370 = vadd.xlane.f32.xlu0 %v1369
      %v1371 = vpop.xlane.xlu0 %1370
      %v1372 = vsel %vm831, %v1280, 0.0
      %1373 = vadd.xlane.f32.xlu0 %v1372
      %v1374 = vpop.xlane.xlu0 %1373
      %v1375 = vsel %vm831, %v1281, 0.0
      %1376 = vadd.xlane.f32.xlu0 %v1375
      %v1377 = vpop.xlane.xlu0 %1376
      %v1378 = vsel %vm831, %v1282, 0.0
      %1379 = vadd.xlane.f32.xlu0 %v1378
      %v1380 = vpop.xlane.xlu0 %1379
      %v1381 = vsel %vm831, %v1283, 0.0
      %1382 = vadd.xlane.f32.xlu0 %v1381
      %v1383 = vpop.xlane.xlu0 %1382
      %v1384 = vsel %vm831, %v1284, 0.0
      %1385 = vadd.xlane.f32.xlu0 %v1384
      %v1386 = vpop.xlane.xlu0 %1385
      %v1387 = vsel %vm831, %v1285, 0.0
      %1388 = vadd.xlane.f32.xlu0 %v1387
      %v1389 = vpop.xlane.xlu0 %1388
      %v1390 = vsel %vm831, %v1286, 0.0
      %1391 = vadd.xlane.f32.xlu0 %v1390
      %v1392 = vpop.xlane.xlu0 %1391
      %v1393 = vsel %vm831, %v1287, 0.0
      %1394 = vadd.xlane.f32.xlu0 %v1393
      %v1395 = vpop.xlane.xlu0 %1394
      %v1396 = vsel %vm831, %v1288, 0.0
      %1397 = vadd.xlane.f32.xlu0 %v1396
      %v1398 = vpop.xlane.xlu0 %1397
      %v1399 = vsel %vm831, %v1289, 0.0
      %1400 = vadd.xlane.f32.xlu0 %v1399
      %v1401 = vpop.xlane.xlu0 %1400
      %v1402 = vsel %vm831, %v1290, 0.0
      %1403 = vadd.xlane.f32.xlu0 %v1402
      %v1404 = vpop.xlane.xlu0 %1403
      %v1405 = vsel %vm831, %v1291, 0.0
      %1406 = vadd.xlane.f32.xlu0 %v1405
      %v1407 = vpop.xlane.xlu0 %1406
      %v1408 = vsel %vm831, %v1292, 0.0
      %1409 = vadd.xlane.f32.xlu0 %v1408
      %v1410 = vpop.xlane.xlu0 %1409
      %v1411 = vsel %vm831, %v1293, 0.0
      %1412 = vadd.xlane.f32.xlu0 %v1411
      %v1413 = vpop.xlane.xlu0 %1412
      %v1414 = vsel %vm831, %v1294, 0.0
      %1415 = vadd.xlane.f32.xlu0 %v1414
      %v1416 = vpop.xlane.xlu0 %1415
      %v1417 = vsel %vm831, %v1295, 0.0
      %1418 = vadd.xlane.f32.xlu0 %v1417
      %v1419 = vpop.xlane.xlu0 %1418
      %v1420 = vsel %vm831, %v1296, 0.0
      %1421 = vadd.xlane.f32.xlu0 %v1420
      %v1422 = vpop.xlane.xlu0 %1421
      %v1423 = vsel %vm831, %v1297, 0.0
      %1424 = vadd.xlane.f32.xlu0 %v1423
      %v1425 = vpop.xlane.xlu0 %1424
      %v1426 = vsel %vm831, %v1298, 0.0
      %1427 = vadd.xlane.f32.xlu0 %v1426
      %v1428 = vpop.xlane.xlu0 %1427
      %v1429 = vsel %vm831, %v1299, 0.0
      %1430 = vadd.xlane.f32.xlu0 %v1429
      %v1431 = vpop.xlane.xlu0 %1430
      %v1432 = vsel %vm831, %v1300, 0.0
      %1433 = vadd.xlane.f32.xlu0 %v1432
      %v1434 = vpop.xlane.xlu0 %1433
      %v1435 = vsel %vm831, %v1301, 0.0
      %1436 = vadd.xlane.f32.xlu0 %v1435
      %v1437 = vpop.xlane.xlu0 %1436
      %v1438 = vsel %vm831, %v1302, 0.0
      %1439 = vadd.xlane.f32.xlu0 %v1438
      %v1440 = vpop.xlane.xlu0 %1439
      %v1441 = vsel %vm831, %v1303, 0.0
      %1442 = vadd.xlane.f32.xlu0 %v1441
      %v1443 = vpop.xlane.xlu0 %1442
      %v1444 = vsel %vm831, %v1304, 0.0
      %1445 = vadd.xlane.f32.xlu0 %v1444
      %v1446 = vpop.xlane.xlu0 %1445
      %v1447 = vsel %vm831, %v1305, 0.0
      %1448 = vadd.xlane.f32.xlu0 %v1447
      %v1449 = vpop.xlane.xlu0 %1448
      %v1450 = vsel %vm831, %v1306, 0.0
      %1451 = vadd.xlane.f32.xlu0 %v1450
      %v1452 = vpop.xlane.xlu0 %1451
      %v1453 = vsel %vm831, %v1307, 0.0
      %1454 = vadd.xlane.f32.xlu0 %v1453
      %v1455 = vpop.xlane.xlu0 %1454
      %v1456 = vsel %vm831, %v1308, 0.0
      %1457 = vadd.xlane.f32.xlu0 %v1456
      %v1458 = vpop.xlane.xlu0 %1457
      %v1459 = vsel %vm831, %v1309, 0.0
      %1460 = vadd.xlane.f32.xlu0 %v1459
      %v1461 = vpop.xlane.xlu0 %1460
      %v1462 = vsel %vm831, %v1310, 0.0
      %1463 = vadd.xlane.f32.xlu0 %v1462
      %v1464 = vpop.xlane.xlu0 %1463
      %v1465 = vsel %vm831, %v1311, 0.0
      %1466 = vadd.xlane.f32.xlu0 %v1465
      %v1467 = vpop.xlane.xlu0 %1466
      %v1468 = vsel %vm831, %v1312, 0.0
      %1469 = vadd.xlane.f32.xlu0 %v1468
      %v1470 = vpop.xlane.xlu0 %1469
      %v1471 = vsel %vm831, %v1313, 0.0
      %1472 = vadd.xlane.f32.xlu0 %v1471
      %v1473 = vpop.xlane.xlu0 %1472
      %v1474 = vsel %vm831, %v1314, 0.0
      %1475 = vadd.xlane.f32.xlu0 %v1474
      %v1476 = vpop.xlane.xlu0 %1475
      %v1477 = vsel %vm831, %v1315, 0.0
      %1478 = vadd.xlane.f32.xlu0 %v1477
      %v1479 = vpop.xlane.xlu0 %1478
      %v1480 = vsel %vm831, %v1316, 0.0
      %1481 = vadd.xlane.f32.xlu0 %v1480
      %v1482 = vpop.xlane.xlu0 %1481
      %v1483 = vsel %vm831, %v1317, 0.0
      %1484 = vadd.xlane.f32.xlu0 %v1483
      %v1485 = vpop.xlane.xlu0 %1484
      %v1486 = vsel %vm831, %v1318, 0.0
      %1487 = vadd.xlane.f32.xlu0 %v1486
      %v1488 = vpop.xlane.xlu0 %1487
      %v1489 = vsel %vm831, %v1319, 0.0
      %1490 = vadd.xlane.f32.xlu0 %v1489
      %v1491 = vpop.xlane.xlu0 %1490
      %v1492 = vsel %vm831, %v1320, 0.0
      %1493 = vadd.xlane.f32.xlu0 %v1492
      %v1494 = vpop.xlane.xlu0 %1493
      %v1495 = vsel %vm831, %v1321, 0.0
      %1496 = vadd.xlane.f32.xlu0 %v1495
      %v1497 = vpop.xlane.xlu0 %1496
      %v1498 = vsel %vm831, %v1322, 0.0
      %1499 = vadd.xlane.f32.xlu0 %v1498
      %v1500 = vpop.xlane.xlu0 %1499
      %v1501 = vsel %vm831, %v1323, 0.0
      %1502 = vadd.xlane.f32.xlu0 %v1501
      %v1503 = vpop.xlane.xlu0 %1502
      %v1504 = vsel %vm831, %v1324, 0.0
      %1505 = vadd.xlane.f32.xlu0 %v1504
      %v1506 = vpop.xlane.xlu0 %1505
      %v1507 = vsel %vm831, %v1325, 0.0
      %1508 = vadd.xlane.f32.xlu0 %v1507
      %v1509 = vpop.xlane.xlu0 %1508
      %v1510 = vsel %vm831, %v1326, 0.0
      %1511 = vadd.xlane.f32.xlu0 %v1510
      %v1512 = vpop.xlane.xlu0 %1511
      %v1513 = vsel %vm831, %v1327, 0.0
      %1514 = vadd.xlane.f32.xlu0 %v1513
      %v1515 = vpop.xlane.xlu0 %1514
      %v1516 = vsel %vm831, %v1328, 0.0
      %1517 = vadd.xlane.f32.xlu0 %v1516
      %v1518 = vpop.xlane.xlu0 %1517
      %v1519 = vsel %vm831, %v1329, 0.0
      %1520 = vadd.xlane.f32.xlu0 %v1519
      %v1521 = vpop.xlane.xlu0 %1520
      %v1522 = vsel %vm831, %v1330, 0.0
      %1523 = vadd.xlane.f32.xlu0 %v1522
      %v1524 = vpop.xlane.xlu0 %1523
      %v1525 = vsel %vm831, %v1331, 0.0
      %1526 = vadd.xlane.f32.xlu0 %v1525
      %v1527 = vpop.xlane.xlu0 %1526
      %v1528 = vsel %vm831, %v1332, 0.0
      %1529 = vadd.xlane.f32.xlu0 %v1528
      %v1530 = vpop.xlane.xlu0 %1529
      %v1531 = vsel %vm831, %v1333, 0.0
      %1532 = vadd.xlane.f32.xlu0 %v1531
      %v1533 = vpop.xlane.xlu0 %1532
      %v1534 = vsel %vm831, %v1334, 0.0
      %1535 = vadd.xlane.f32.xlu0 %v1534
      %v1536 = vpop.xlane.xlu0 %1535
      %v1537 = vsel %vm831, %v1335, 0.0
      %1538 = vadd.xlane.f32.xlu0 %v1537
      %v1539 = vpop.xlane.xlu0 %1538
      %v1540 = vsel %vm831, %v1336, 0.0
      %1541 = vadd.xlane.f32.xlu0 %v1540
      %v1542 = vpop.xlane.xlu0 %1541
      %v1543 = vsel %vm831, %v1337, 0.0
      %1544 = vadd.xlane.f32.xlu0 %v1543
      %v1545 = vpop.xlane.xlu0 %1544
      %v1546 = vsel %vm831, %v1338, 0.0
      %1547 = vadd.xlane.f32.xlu0 %v1546
      %v1548 = vpop.xlane.xlu0 %1547
      %v1549 = vsel %vm831, %v1339, 0.0
      %1550 = vadd.xlane.f32.xlu0 %v1549
      %v1551 = vpop.xlane.xlu0 %1550
      %v1552 = vsel %vm831, %v1340, 0.0
      %1553 = vadd.xlane.f32.xlu0 %v1552
      %v1554 = vpop.xlane.xlu0 %1553
      %v1555 = vsel %vm831, %v1341, 0.0
      %1556 = vadd.xlane.f32.xlu0 %v1555
      %v1557 = vpop.xlane.xlu0 %1556
      %v1558 = vadd.f32 %v1344, %v1347
      %v1559 = vadd.f32 %v1558, %v1350
      %v1560 = vadd.f32 %v1559, %v1353
      %v1561 = vadd.f32 %v1560, %v1356
      %v1562 = vadd.f32 %v1561, %v1359
      %v1563 = vadd.f32 %v1562, %v1362
      %v1564 = vadd.f32 %v1563, %v1365
      %v1565 = vadd.f32 %v1564, %v1368
      %v1566 = vadd.f32 %v1565, %v1371
      %v1567 = vadd.f32 %v1566, %v1374
      %v1568 = vadd.f32 %v1567, %v1377
      %v1569 = vadd.f32 %v1568, %v1380
      %v1570 = vadd.f32 %v1569, %v1383
      %v1571 = vadd.f32 %v1570, %v1386
      %v1572 = vadd.f32 %v1571, %v1389
      %v1573 = vadd.f32 %v1572, %v1392
      %v1574 = vadd.f32 %v1573, %v1395
      %v1575 = vadd.f32 %v1574, %v1398
      %v1576 = vadd.f32 %v1575, %v1401
      %v1577 = vadd.f32 %v1576, %v1404
      %v1578 = vadd.f32 %v1577, %v1407
      %v1579 = vadd.f32 %v1578, %v1410
      %v1580 = vadd.f32 %v1579, %v1413
      %v1581 = vadd.f32 %v1580, %v1416
      %v1582 = vadd.f32 %v1581, %v1419
      %v1583 = vadd.f32 %v1582, %v1422
      %v1584 = vadd.f32 %v1583, %v1425
      %v1585 = vadd.f32 %v1584, %v1428
      %v1586 = vadd.f32 %v1585, %v1431
      %v1587 = vadd.f32 %v1586, %v1434
      %v1588 = vadd.f32 %v1587, %v1437
      %v1589 = vadd.f32 %v1588, %v1440
      %v1590 = vadd.f32 %v1589, %v1443
      %v1591 = vadd.f32 %v1590, %v1446
      %v1592 = vadd.f32 %v1591, %v1449
      %v1593 = vadd.f32 %v1592, %v1452
      %v1594 = vadd.f32 %v1593, %v1455
      %v1595 = vadd.f32 %v1594, %v1458
      %v1596 = vadd.f32 %v1595, %v1461
      %v1597 = vadd.f32 %v1596, %v1464
      %v1598 = vadd.f32 %v1597, %v1467
      %v1599 = vadd.f32 %v1598, %v1470
      %v1600 = vadd.f32 %v1599, %v1473
      %v1601 = vadd.f32 %v1600, %v1476
      %v1602 = vadd.f32 %v1601, %v1479
      %v1603 = vadd.f32 %v1602, %v1482
      %v1604 = vadd.f32 %v1603, %v1485
      %v1605 = vadd.f32 %v1604, %v1488
      %v1606 = vadd.f32 %v1605, %v1491
      %v1607 = vadd.f32 %v1606, %v1494
      %v1608 = vadd.f32 %v1607, %v1497
      %v1609 = vadd.f32 %v1608, %v1500
      %v1610 = vadd.f32 %v1609, %v1503
      %v1611 = vadd.f32 %v1610, %v1506
      %v1612 = vadd.f32 %v1611, %v1509
      %v1613 = vadd.f32 %v1612, %v1512
      %v1614 = vadd.f32 %v1613, %v1515
      %v1615 = vadd.f32 %v1614, %v1518
      %v1616 = vadd.f32 %v1615, %v1521
      %v1617 = vadd.f32 %v1616, %v1524
      %v1618 = vadd.f32 %v1617, %v1527
      %v1619 = vadd.f32 %v1618, %v1530
      %v1620 = vadd.f32 %v1619, %v1533
      %v1621 = vadd.f32 %v1620, %v1536
      %v1622 = vadd.f32 %v1621, %v1539
      %v1623 = vadd.f32 %v1622, %v1542
      %v1624 = vadd.f32 %v1623, %v1545
      %v1625 = vadd.f32 %v1624, %v1548
      %v1626 = vadd.f32 %v1625, %v1551
      %v1627 = vadd.f32 %v1626, %v1554
      %v1628 = vadd.f32 %v1627, %v1557
      %v1629 = vrot.slane %v1628, 4
      %v1630 = vadd.f32 %v1628, %v1629
      %v1631 = vrot.slane %v1630, 2
      %v1632 = vadd.f32 %v1630, %v1631
      %v1633 = vrot.slane %v1632, 1
      %v1634 = vadd.f32 %v1632, %v1633
      %v1635 = vmul.f32 %v759, %v1270
      %v1636 = vmul.f32 %v760, %v1271
      %v1637 = vmul.f32 %v761, %v1272
      %v1638 = vmul.f32 %v762, %v1273
      %v1639 = vmul.f32 %v763, %v1274
      %v1640 = vmul.f32 %v764, %v1275
      %v1641 = vmul.f32 %v765, %v1276
      %v1642 = vmul.f32 %v766, %v1277
      %v1643 = vmul.f32 %v767, %v1278
      %v1644 = vmul.f32 %v768, %v1279
      %v1645 = vmul.f32 %v769, %v1280
      %v1646 = vmul.f32 %v770, %v1281
      %v1647 = vmul.f32 %v771, %v1282
      %v1648 = vmul.f32 %v772, %v1283
      %v1649 = vmul.f32 %v773, %v1284
      %v1650 = vmul.f32 %v774, %v1285
      %v1651 = vmul.f32 %v775, %v1286
      %v1652 = vmul.f32 %v776, %v1287
      %v1653 = vmul.f32 %v777, %v1288
      %v1654 = vmul.f32 %v778, %v1289
      %v1655 = vmul.f32 %v779, %v1290
      %v1656 = vmul.f32 %v780, %v1291
      %v1657 = vmul.f32 %v781, %v1292
      %v1658 = vmul.f32 %v782, %v1293
      %v1659 = vmul.f32 %v783, %v1294
      %v1660 = vmul.f32 %v784, %v1295
      %v1661 = vmul.f32 %v785, %v1296
      %v1662 = vmul.f32 %v786, %v1297
      %v1663 = vmul.f32 %v787, %v1298
      %v1664 = vmul.f32 %v788, %v1299
      %v1665 = vmul.f32 %v789, %v1300
      %v1666 = vmul.f32 %v790, %v1301
      %v1667 = vmul.f32 %v791, %v1302
      %v1668 = vmul.f32 %v792, %v1303
      %v1669 = vmul.f32 %v793, %v1304
      %v1670 = vmul.f32 %v794, %v1305
      %v1671 = vmul.f32 %v795, %v1306
      %v1672 = vmul.f32 %v796, %v1307
      %v1673 = vmul.f32 %v797, %v1308
      %v1674 = vmul.f32 %v798, %v1309
      %v1675 = vmul.f32 %v799, %v1310
      %v1676 = vmul.f32 %v800, %v1311
      %v1677 = vmul.f32 %v801, %v1312
      %v1678 = vmul.f32 %v802, %v1313
      %v1679 = vmul.f32 %v803, %v1314
      %v1680 = vmul.f32 %v804, %v1315
      %v1681 = vmul.f32 %v805, %v1316
      %v1682 = vmul.f32 %v806, %v1317
      %v1683 = vmul.f32 %v807, %v1318
      %v1684 = vmul.f32 %v808, %v1319
      %v1685 = vmul.f32 %v809, %v1320
      %v1686 = vmul.f32 %v810, %v1321
      %v1687 = vmul.f32 %v811, %v1322
      %v1688 = vmul.f32 %v812, %v1323
      %v1689 = vmul.f32 %v813, %v1324
      %v1690 = vmul.f32 %v814, %v1325
      %v1691 = vmul.f32 %v815, %v1326
      %v1692 = vmul.f32 %v816, %v1327
      %v1693 = vmul.f32 %v817, %v1328
      %v1694 = vmul.f32 %v818, %v1329
      %v1695 = vmul.f32 %v819, %v1330
      %v1696 = vmul.f32 %v820, %v1331
      %v1697 = vmul.f32 %v821, %v1332
      %v1698 = vmul.f32 %v822, %v1333
      %v1699 = vmul.f32 %v823, %v1334
      %v1700 = vmul.f32 %v824, %v1335
      %v1701 = vmul.f32 %v825, %v1336
      %v1702 = vmul.f32 %v826, %v1337
      %v1703 = vmul.f32 %v827, %v1338
      %v1704 = vmul.f32 %v828, %v1339
      %v1705 = vmul.f32 %v829, %v1340
      %v1706 = vmul.f32 %v830, %v1341
      %v1707 = vsel %vm831, %v1635, 0.0
      %1708 = vadd.xlane.f32.xlu0 %v1707
      %v1709 = vpop.xlane.xlu0 %1708
      %v1710 = vsel %vm831, %v1636, 0.0
      %1711 = vadd.xlane.f32.xlu0 %v1710
      %v1712 = vpop.xlane.xlu0 %1711
      %v1713 = vsel %vm831, %v1637, 0.0
      %1714 = vadd.xlane.f32.xlu0 %v1713
      %v1715 = vpop.xlane.xlu0 %1714
      %v1716 = vsel %vm831, %v1638, 0.0
      %1717 = vadd.xlane.f32.xlu0 %v1716
      %v1718 = vpop.xlane.xlu0 %1717
      %v1719 = vsel %vm831, %v1639, 0.0
      %1720 = vadd.xlane.f32.xlu0 %v1719
      %v1721 = vpop.xlane.xlu0 %1720
      %v1722 = vsel %vm831, %v1640, 0.0
      %1723 = vadd.xlane.f32.xlu0 %v1722
      %v1724 = vpop.xlane.xlu0 %1723
      %v1725 = vsel %vm831, %v1641, 0.0
      %1726 = vadd.xlane.f32.xlu0 %v1725
      %v1727 = vpop.xlane.xlu0 %1726
      %v1728 = vsel %vm831, %v1642, 0.0
      %1729 = vadd.xlane.f32.xlu0 %v1728
      %v1730 = vpop.xlane.xlu0 %1729
      %v1731 = vsel %vm831, %v1643, 0.0
      %1732 = vadd.xlane.f32.xlu0 %v1731
      %v1733 = vpop.xlane.xlu0 %1732
      %v1734 = vsel %vm831, %v1644, 0.0
      %1735 = vadd.xlane.f32.xlu0 %v1734
      %v1736 = vpop.xlane.xlu0 %1735
      %v1737 = vsel %vm831, %v1645, 0.0
      %1738 = vadd.xlane.f32.xlu0 %v1737
      %v1739 = vpop.xlane.xlu0 %1738
      %v1740 = vsel %vm831, %v1646, 0.0
      %1741 = vadd.xlane.f32.xlu0 %v1740
      %v1742 = vpop.xlane.xlu0 %1741
      %v1743 = vsel %vm831, %v1647, 0.0
      %1744 = vadd.xlane.f32.xlu0 %v1743
      %v1745 = vpop.xlane.xlu0 %1744
      %v1746 = vsel %vm831, %v1648, 0.0
      %1747 = vadd.xlane.f32.xlu0 %v1746
      %v1748 = vpop.xlane.xlu0 %1747
      %v1749 = vsel %vm831, %v1649, 0.0
      %1750 = vadd.xlane.f32.xlu0 %v1749
      %v1751 = vpop.xlane.xlu0 %1750
      %v1752 = vsel %vm831, %v1650, 0.0
      %1753 = vadd.xlane.f32.xlu0 %v1752
      %v1754 = vpop.xlane.xlu0 %1753
      %v1755 = vsel %vm831, %v1651, 0.0
      %1756 = vadd.xlane.f32.xlu0 %v1755
      %v1757 = vpop.xlane.xlu0 %1756
      %v1758 = vsel %vm831, %v1652, 0.0
      %1759 = vadd.xlane.f32.xlu0 %v1758
      %v1760 = vpop.xlane.xlu0 %1759
      %v1761 = vsel %vm831, %v1653, 0.0
      %1762 = vadd.xlane.f32.xlu0 %v1761
      %v1763 = vpop.xlane.xlu0 %1762
      %v1764 = vsel %vm831, %v1654, 0.0
      %1765 = vadd.xlane.f32.xlu0 %v1764
      %v1766 = vpop.xlane.xlu0 %1765
      %v1767 = vsel %vm831, %v1655, 0.0
      %1768 = vadd.xlane.f32.xlu0 %v1767
      %v1769 = vpop.xlane.xlu0 %1768
      %v1770 = vsel %vm831, %v1656, 0.0
      %1771 = vadd.xlane.f32.xlu0 %v1770
      %v1772 = vpop.xlane.xlu0 %1771
      %v1773 = vsel %vm831, %v1657, 0.0
      %1774 = vadd.xlane.f32.xlu0 %v1773
      %v1775 = vpop.xlane.xlu0 %1774
      %v1776 = vsel %vm831, %v1658, 0.0
      %1777 = vadd.xlane.f32.xlu0 %v1776
      %v1778 = vpop.xlane.xlu0 %1777
      %v1779 = vsel %vm831, %v1659, 0.0
      %1780 = vadd.xlane.f32.xlu0 %v1779
      %v1781 = vpop.xlane.xlu0 %1780
      %v1782 = vsel %vm831, %v1660, 0.0
      %1783 = vadd.xlane.f32.xlu0 %v1782
      %v1784 = vpop.xlane.xlu0 %1783
      %v1785 = vsel %vm831, %v1661, 0.0
      %1786 = vadd.xlane.f32.xlu0 %v1785
      %v1787 = vpop.xlane.xlu0 %1786
      %v1788 = vsel %vm831, %v1662, 0.0
      %1789 = vadd.xlane.f32.xlu0 %v1788
      %v1790 = vpop.xlane.xlu0 %1789
      %v1791 = vsel %vm831, %v1663, 0.0
      %1792 = vadd.xlane.f32.xlu0 %v1791
      %v1793 = vpop.xlane.xlu0 %1792
      %v1794 = vsel %vm831, %v1664, 0.0
      %1795 = vadd.xlane.f32.xlu0 %v1794
      %v1796 = vpop.xlane.xlu0 %1795
      %v1797 = vsel %vm831, %v1665, 0.0
      %1798 = vadd.xlane.f32.xlu0 %v1797
      %v1799 = vpop.xlane.xlu0 %1798
      %v1800 = vsel %vm831, %v1666, 0.0
      %1801 = vadd.xlane.f32.xlu0 %v1800
      %v1802 = vpop.xlane.xlu0 %1801
      %v1803 = vsel %vm831, %v1667, 0.0
      %1804 = vadd.xlane.f32.xlu0 %v1803
      %v1805 = vpop.xlane.xlu0 %1804
      %v1806 = vsel %vm831, %v1668, 0.0
      %1807 = vadd.xlane.f32.xlu0 %v1806
      %v1808 = vpop.xlane.xlu0 %1807
      %v1809 = vsel %vm831, %v1669, 0.0
      %1810 = vadd.xlane.f32.xlu0 %v1809
      %v1811 = vpop.xlane.xlu0 %1810
      %v1812 = vsel %vm831, %v1670, 0.0
      %1813 = vadd.xlane.f32.xlu0 %v1812
      %v1814 = vpop.xlane.xlu0 %1813
      %v1815 = vsel %vm831, %v1671, 0.0
      %1816 = vadd.xlane.f32.xlu0 %v1815
      %v1817 = vpop.xlane.xlu0 %1816
      %v1818 = vsel %vm831, %v1672, 0.0
      %1819 = vadd.xlane.f32.xlu0 %v1818
      %v1820 = vpop.xlane.xlu0 %1819
      %v1821 = vsel %vm831, %v1673, 0.0
      %1822 = vadd.xlane.f32.xlu0 %v1821
      %v1823 = vpop.xlane.xlu0 %1822
      %v1824 = vsel %vm831, %v1674, 0.0
      %1825 = vadd.xlane.f32.xlu0 %v1824
      %v1826 = vpop.xlane.xlu0 %1825
      %v1827 = vsel %vm831, %v1675, 0.0
      %1828 = vadd.xlane.f32.xlu0 %v1827
      %v1829 = vpop.xlane.xlu0 %1828
      %v1830 = vsel %vm831, %v1676, 0.0
      %1831 = vadd.xlane.f32.xlu0 %v1830
      %v1832 = vpop.xlane.xlu0 %1831
      %v1833 = vsel %vm831, %v1677, 0.0
      %1834 = vadd.xlane.f32.xlu0 %v1833
      %v1835 = vpop.xlane.xlu0 %1834
      %v1836 = vsel %vm831, %v1678, 0.0
      %1837 = vadd.xlane.f32.xlu0 %v1836
      %v1838 = vpop.xlane.xlu0 %1837
      %v1839 = vsel %vm831, %v1679, 0.0
      %1840 = vadd.xlane.f32.xlu0 %v1839
      %v1841 = vpop.xlane.xlu0 %1840
      %v1842 = vsel %vm831, %v1680, 0.0
      %1843 = vadd.xlane.f32.xlu0 %v1842
      %v1844 = vpop.xlane.xlu0 %1843
      %v1845 = vsel %vm831, %v1681, 0.0
      %1846 = vadd.xlane.f32.xlu0 %v1845
      %v1847 = vpop.xlane.xlu0 %1846
      %v1848 = vsel %vm831, %v1682, 0.0
      %1849 = vadd.xlane.f32.xlu0 %v1848
      %v1850 = vpop.xlane.xlu0 %1849
      %v1851 = vsel %vm831, %v1683, 0.0
      %1852 = vadd.xlane.f32.xlu0 %v1851
      %v1853 = vpop.xlane.xlu0 %1852
      %v1854 = vsel %vm831, %v1684, 0.0
      %1855 = vadd.xlane.f32.xlu0 %v1854
      %v1856 = vpop.xlane.xlu0 %1855
      %v1857 = vsel %vm831, %v1685, 0.0
      %1858 = vadd.xlane.f32.xlu0 %v1857
      %v1859 = vpop.xlane.xlu0 %1858
      %v1860 = vsel %vm831, %v1686, 0.0
      %1861 = vadd.xlane.f32.xlu0 %v1860
      %v1862 = vpop.xlane.xlu0 %1861
      %v1863 = vsel %vm831, %v1687, 0.0
      %1864 = vadd.xlane.f32.xlu0 %v1863
      %v1865 = vpop.xlane.xlu0 %1864
      %v1866 = vsel %vm831, %v1688, 0.0
      %1867 = vadd.xlane.f32.xlu0 %v1866
      %v1868 = vpop.xlane.xlu0 %1867
      %v1869 = vsel %vm831, %v1689, 0.0
      %1870 = vadd.xlane.f32.xlu0 %v1869
      %v1871 = vpop.xlane.xlu0 %1870
      %v1872 = vsel %vm831, %v1690, 0.0
      %1873 = vadd.xlane.f32.xlu0 %v1872
      %v1874 = vpop.xlane.xlu0 %1873
      %v1875 = vsel %vm831, %v1691, 0.0
      %1876 = vadd.xlane.f32.xlu0 %v1875
      %v1877 = vpop.xlane.xlu0 %1876
      %v1878 = vsel %vm831, %v1692, 0.0
      %1879 = vadd.xlane.f32.xlu0 %v1878
      %v1880 = vpop.xlane.xlu0 %1879
      %v1881 = vsel %vm831, %v1693, 0.0
      %1882 = vadd.xlane.f32.xlu0 %v1881
      %v1883 = vpop.xlane.xlu0 %1882
      %v1884 = vsel %vm831, %v1694, 0.0
      %1885 = vadd.xlane.f32.xlu0 %v1884
      %v1886 = vpop.xlane.xlu0 %1885
      %v1887 = vsel %vm831, %v1695, 0.0
      %1888 = vadd.xlane.f32.xlu0 %v1887
      %v1889 = vpop.xlane.xlu0 %1888
      %v1890 = vsel %vm831, %v1696, 0.0
      %1891 = vadd.xlane.f32.xlu0 %v1890
      %v1892 = vpop.xlane.xlu0 %1891
      %v1893 = vsel %vm831, %v1697, 0.0
      %1894 = vadd.xlane.f32.xlu0 %v1893
      %v1895 = vpop.xlane.xlu0 %1894
      %v1896 = vsel %vm831, %v1698, 0.0
      %1897 = vadd.xlane.f32.xlu0 %v1896
      %v1898 = vpop.xlane.xlu0 %1897
      %v1899 = vsel %vm831, %v1699, 0.0
      %1900 = vadd.xlane.f32.xlu0 %v1899
      %v1901 = vpop.xlane.xlu0 %1900
      %v1902 = vsel %vm831, %v1700, 0.0
      %1903 = vadd.xlane.f32.xlu0 %v1902
      %v1904 = vpop.xlane.xlu0 %1903
      %v1905 = vsel %vm831, %v1701, 0.0
      %1906 = vadd.xlane.f32.xlu0 %v1905
      %v1907 = vpop.xlane.xlu0 %1906
      %v1908 = vsel %vm831, %v1702, 0.0
      %1909 = vadd.xlane.f32.xlu0 %v1908
      %v1910 = vpop.xlane.xlu0 %1909
      %v1911 = vsel %vm831, %v1703, 0.0
      %1912 = vadd.xlane.f32.xlu0 %v1911
      %v1913 = vpop.xlane.xlu0 %1912
      %v1914 = vsel %vm831, %v1704, 0.0
      %1915 = vadd.xlane.f32.xlu0 %v1914
      %v1916 = vpop.xlane.xlu0 %1915
      %v1917 = vsel %vm831, %v1705, 0.0
      %1918 = vadd.xlane.f32.xlu0 %v1917
      %v1919 = vpop.xlane.xlu0 %1918
      %v1920 = vsel %vm831, %v1706, 0.0
      %1921 = vadd.xlane.f32.xlu0 %v1920
      %v1922 = vpop.xlane.xlu0 %1921
      %v1923 = vadd.f32 %v1709, %v1712
      %v1924 = vadd.f32 %v1923, %v1715
      %v1925 = vadd.f32 %v1924, %v1718
      %v1926 = vadd.f32 %v1925, %v1721
      %v1927 = vadd.f32 %v1926, %v1724
      %v1928 = vadd.f32 %v1927, %v1727
      %v1929 = vadd.f32 %v1928, %v1730
      %v1930 = vadd.f32 %v1929, %v1733
      %v1931 = vadd.f32 %v1930, %v1736
      %v1932 = vadd.f32 %v1931, %v1739
      %v1933 = vadd.f32 %v1932, %v1742
      %v1934 = vadd.f32 %v1933, %v1745
      %v1935 = vadd.f32 %v1934, %v1748
      %v1936 = vadd.f32 %v1935, %v1751
      %v1937 = vadd.f32 %v1936, %v1754
      %v1938 = vadd.f32 %v1937, %v1757
      %v1939 = vadd.f32 %v1938, %v1760
      %v1940 = vadd.f32 %v1939, %v1763
      %v1941 = vadd.f32 %v1940, %v1766
      %v1942 = vadd.f32 %v1941, %v1769
      %v1943 = vadd.f32 %v1942, %v1772
      %v1944 = vadd.f32 %v1943, %v1775
      %v1945 = vadd.f32 %v1944, %v1778
      %v1946 = vadd.f32 %v1945, %v1781
      %v1947 = vadd.f32 %v1946, %v1784
      %v1948 = vadd.f32 %v1947, %v1787
      %v1949 = vadd.f32 %v1948, %v1790
      %v1950 = vadd.f32 %v1949, %v1793
      %v1951 = vadd.f32 %v1950, %v1796
      %v1952 = vadd.f32 %v1951, %v1799
      %v1953 = vadd.f32 %v1952, %v1802
      %v1954 = vadd.f32 %v1953, %v1805
      %v1955 = vadd.f32 %v1954, %v1808
      %v1956 = vadd.f32 %v1955, %v1811
      %v1957 = vadd.f32 %v1956, %v1814
      %v1958 = vadd.f32 %v1957, %v1817
      %v1959 = vadd.f32 %v1958, %v1820
      %v1960 = vadd.f32 %v1959, %v1823
      %v1961 = vadd.f32 %v1960, %v1826
      %v1962 = vadd.f32 %v1961, %v1829
      %v1963 = vadd.f32 %v1962, %v1832
      %v1964 = vadd.f32 %v1963, %v1835
      %v1965 = vadd.f32 %v1964, %v1838
      %v1966 = vadd.f32 %v1965, %v1841
      %v1967 = vadd.f32 %v1966, %v1844
      %v1968 = vadd.f32 %v1967, %v1847
      %v1969 = vadd.f32 %v1968, %v1850
      %v1970 = vadd.f32 %v1969, %v1853
      %v1971 = vadd.f32 %v1970, %v1856
      %v1972 = vadd.f32 %v1971, %v1859
      %v1973 = vadd.f32 %v1972, %v1862
      %v1974 = vadd.f32 %v1973, %v1865
      %v1975 = vadd.f32 %v1974, %v1868
      %v1976 = vadd.f32 %v1975, %v1871
      %v1977 = vadd.f32 %v1976, %v1874
      %v1978 = vadd.f32 %v1977, %v1877
      %v1979 = vadd.f32 %v1978, %v1880
      %v1980 = vadd.f32 %v1979, %v1883
      %v1981 = vadd.f32 %v1980, %v1886
      %v1982 = vadd.f32 %v1981, %v1889
      %v1983 = vadd.f32 %v1982, %v1892
      %v1984 = vadd.f32 %v1983, %v1895
      %v1985 = vadd.f32 %v1984, %v1898
      %v1986 = vadd.f32 %v1985, %v1901
      %v1987 = vadd.f32 %v1986, %v1904
      %v1988 = vadd.f32 %v1987, %v1907
      %v1989 = vadd.f32 %v1988, %v1910
      %v1990 = vadd.f32 %v1989, %v1913
      %v1991 = vadd.f32 %v1990, %v1916
      %v1992 = vadd.f32 %v1991, %v1919
      %v1993 = vadd.f32 %v1992, %v1922
      %v1994 = vrot.slane %v1993, 4
      %v1995 = vadd.f32 %v1993, %v1994
      %v1996 = vrot.slane %v1995, 2
      %v1997 = vadd.f32 %v1995, %v1996
      %v1998 = vrot.slane %v1997, 1
      %v1999 = vadd.f32 %v1997, %v1998
      %vm2000 = vcmp.gt.f32.partialorder %v1634, 0.0
      %v2001 = vmax.f32 %v1634, 1.0
      %v2002 = vrcp.pop %v2001
      %v2003 = vmul.f32 %v2001, %v2002
      %v2004 = vsub.f32 1.0, %v2003
      %v2005 = vmul.f32 %v2002, %v2004
      %v2006 = vadd.f32 %v2002, %v2005
      %vm2007 = vweird.f32 %v2001
      %vm2008 = vweird.f32 %v2002
      %vm2009 = vmor %vm2007, %vm2008
      %v2010 = vsel %vm2009, %v2002, %v2006
      %v2011 = vand.u32 2147483647, %v2001
      %vm2012 = vcmp.eq.f32.partialorder %v2011, 8.507059e+37
      %v2013 = vand.u32 %v2001, 2147483648
      %v2014 = vor.u32 1.1754944e-38, %v2013
      %v2015 = vsel %vm2012, %v2014, %v2010
      %v2016 = vmul.f32 %v1999, %v2015
      %v2017 = vsel %vm2000, %v2016, 0.0
      %vm2018 = vcmp.gt.f32.partialorder %v544, %v1125
      %vm2019 = vcmp.gt.f32.partialorder %v547, %v1125
      %vm2020 = vcmp.gt.f32.partialorder %v550, %v1125
      %vm2021 = vcmp.gt.f32.partialorder %v553, %v1125
      %vm2022 = vcmp.gt.f32.partialorder %v556, %v1125
      %vm2023 = vcmp.gt.f32.partialorder %v559, %v1125
      %vm2024 = vcmp.gt.f32.partialorder %v562, %v1125
      %vm2025 = vcmp.gt.f32.partialorder %v565, %v1125
      %vm2026 = vcmp.gt.f32.partialorder %v568, %v1125
      %vm2027 = vcmp.gt.f32.partialorder %v571, %v1125
      %vm2028 = vcmp.gt.f32.partialorder %v574, %v1125
      %vm2029 = vcmp.gt.f32.partialorder %v577, %v1125
      %vm2030 = vcmp.gt.f32.partialorder %v580, %v1125
      %vm2031 = vcmp.gt.f32.partialorder %v583, %v1125
      %vm2032 = vcmp.gt.f32.partialorder %v586, %v1125
      %vm2033 = vcmp.gt.f32.partialorder %v589, %v1125
      %vm2034 = vcmp.gt.f32.partialorder %v592, %v1125
      %vm2035 = vcmp.gt.f32.partialorder %v595, %v1125
      %vm2036 = vcmp.gt.f32.partialorder %v598, %v1125
      %vm2037 = vcmp.gt.f32.partialorder %v601, %v1125
      %vm2038 = vcmp.gt.f32.partialorder %v604, %v1125
      %vm2039 = vcmp.gt.f32.partialorder %v607, %v1125
      %vm2040 = vcmp.gt.f32.partialorder %v610, %v1125
      %vm2041 = vcmp.gt.f32.partialorder %v613, %v1125
      %vm2042 = vcmp.gt.f32.partialorder %v616, %v1125
      %vm2043 = vcmp.gt.f32.partialorder %v619, %v1125
      %vm2044 = vcmp.gt.f32.partialorder %v622, %v1125
      %vm2045 = vcmp.gt.f32.partialorder %v625, %v1125
      %vm2046 = vcmp.gt.f32.partialorder %v628, %v1125
      %vm2047 = vcmp.gt.f32.partialorder %v631, %v1125
      %vm2048 = vcmp.gt.f32.partialorder %v634, %v1125
      %vm2049 = vcmp.gt.f32.partialorder %v637, %v1125
      %vm2050 = vcmp.gt.f32.partialorder %v640, %v1125
      %vm2051 = vcmp.gt.f32.partialorder %v643, %v1125
      %vm2052 = vcmp.gt.f32.partialorder %v646, %v1125
      %vm2053 = vcmp.gt.f32.partialorder %v649, %v1125
      %vm2054 = vcmp.gt.f32.partialorder %v652, %v1125
      %vm2055 = vcmp.gt.f32.partialorder %v655, %v1125
      %vm2056 = vcmp.gt.f32.partialorder %v658, %v1125
      %vm2057 = vcmp.gt.f32.partialorder %v661, %v1125
      %vm2058 = vcmp.gt.f32.partialorder %v664, %v1125
      %vm2059 = vcmp.gt.f32.partialorder %v667, %v1125
      %vm2060 = vcmp.gt.f32.partialorder %v670, %v1125
      %vm2061 = vcmp.gt.f32.partialorder %v673, %v1125
      %vm2062 = vcmp.gt.f32.partialorder %v676, %v1125
      %vm2063 = vcmp.gt.f32.partialorder %v679, %v1125
      %vm2064 = vcmp.gt.f32.partialorder %v682, %v1125
      %vm2065 = vcmp.gt.f32.partialorder %v685, %v1125
      %vm2066 = vcmp.gt.f32.partialorder %v688, %v1125
      %vm2067 = vcmp.gt.f32.partialorder %v691, %v1125
      %vm2068 = vcmp.gt.f32.partialorder %v694, %v1125
      %vm2069 = vcmp.gt.f32.partialorder %v697, %v1125
      %vm2070 = vcmp.gt.f32.partialorder %v700, %v1125
      %vm2071 = vcmp.gt.f32.partialorder %v703, %v1125
      %vm2072 = vcmp.gt.f32.partialorder %v706, %v1125
      %vm2073 = vcmp.gt.f32.partialorder %v709, %v1125
      %vm2074 = vcmp.gt.f32.partialorder %v712, %v1125
      %vm2075 = vcmp.gt.f32.partialorder %v715, %v1125
      %vm2076 = vcmp.gt.f32.partialorder %v718, %v1125
      %vm2077 = vcmp.gt.f32.partialorder %v721, %v1125
      %vm2078 = vcmp.gt.f32.partialorder %v724, %v1125
      %vm2079 = vcmp.gt.f32.partialorder %v727, %v1125
      %vm2080 = vcmp.gt.f32.partialorder %v730, %v1125
      %vm2081 = vcmp.gt.f32.partialorder %v733, %v1125
      %vm2082 = vcmp.gt.f32.partialorder %v736, %v1125
      %vm2083 = vcmp.gt.f32.partialorder %v739, %v1125
      %vm2084 = vcmp.gt.f32.partialorder %v742, %v1125
      %vm2085 = vcmp.gt.f32.partialorder %v745, %v1125
      %vm2086 = vcmp.gt.f32.partialorder %v748, %v1125
      %vm2087 = vcmp.gt.f32.partialorder %v751, %v1125
      %vm2088 = vcmp.gt.f32.partialorder %v754, %v1125
      %vm2089 = vcmp.gt.f32.partialorder %v757, %v1125
      %v2090 = vsel %vm2018, 1, 0
      %v2091 = vsel %vm2019, 1, 0
      %v2092 = vsel %vm2020, 1, 0
      %v2093 = vsel %vm2021, 1, 0
      %v2094 = vsel %vm2022, 1, 0
      %v2095 = vsel %vm2023, 1, 0
      %v2096 = vsel %vm2024, 1, 0
      %v2097 = vsel %vm2025, 1, 0
      %v2098 = vsel %vm2026, 1, 0
      %v2099 = vsel %vm2027, 1, 0
      %v2100 = vsel %vm2028, 1, 0
      %v2101 = vsel %vm2029, 1, 0
      %v2102 = vsel %vm2030, 1, 0
      %v2103 = vsel %vm2031, 1, 0
      %v2104 = vsel %vm2032, 1, 0
      %v2105 = vsel %vm2033, 1, 0
      %v2106 = vsel %vm2034, 1, 0
      %v2107 = vsel %vm2035, 1, 0
      %v2108 = vsel %vm2036, 1, 0
      %v2109 = vsel %vm2037, 1, 0
      %v2110 = vsel %vm2038, 1, 0
      %v2111 = vsel %vm2039, 1, 0
      %v2112 = vsel %vm2040, 1, 0
      %v2113 = vsel %vm2041, 1, 0
      %v2114 = vsel %vm2042, 1, 0
      %v2115 = vsel %vm2043, 1, 0
      %v2116 = vsel %vm2044, 1, 0
      %v2117 = vsel %vm2045, 1, 0
      %v2118 = vsel %vm2046, 1, 0
      %v2119 = vsel %vm2047, 1, 0
      %v2120 = vsel %vm2048, 1, 0
      %v2121 = vsel %vm2049, 1, 0
      %v2122 = vsel %vm2050, 1, 0
      %v2123 = vsel %vm2051, 1, 0
      %v2124 = vsel %vm2052, 1, 0
      %v2125 = vsel %vm2053, 1, 0
      %v2126 = vsel %vm2054, 1, 0
      %v2127 = vsel %vm2055, 1, 0
      %v2128 = vsel %vm2056, 1, 0
      %v2129 = vsel %vm2057, 1, 0
      %v2130 = vsel %vm2058, 1, 0
      %v2131 = vsel %vm2059, 1, 0
      %v2132 = vsel %vm2060, 1, 0
      %v2133 = vsel %vm2061, 1, 0
      %v2134 = vsel %vm2062, 1, 0
      %v2135 = vsel %vm2063, 1, 0
      %v2136 = vsel %vm2064, 1, 0
      %v2137 = vsel %vm2065, 1, 0
      %v2138 = vsel %vm2066, 1, 0
      %v2139 = vsel %vm2067, 1, 0
      %v2140 = vsel %vm2068, 1, 0
      %v2141 = vsel %vm2069, 1, 0
      %v2142 = vsel %vm2070, 1, 0
      %v2143 = vsel %vm2071, 1, 0
      %v2144 = vsel %vm2072, 1, 0
      %v2145 = vsel %vm2073, 1, 0
      %v2146 = vsel %vm2074, 1, 0
      %v2147 = vsel %vm2075, 1, 0
      %v2148 = vsel %vm2076, 1, 0
      %v2149 = vsel %vm2077, 1, 0
      %v2150 = vsel %vm2078, 1, 0
      %v2151 = vsel %vm2079, 1, 0
      %v2152 = vsel %vm2080, 1, 0
      %v2153 = vsel %vm2081, 1, 0
      %v2154 = vsel %vm2082, 1, 0
      %v2155 = vsel %vm2083, 1, 0
      %v2156 = vsel %vm2084, 1, 0
      %v2157 = vsel %vm2085, 1, 0
      %v2158 = vsel %vm2086, 1, 0
      %v2159 = vsel %vm2087, 1, 0
      %v2160 = vsel %vm2088, 1, 0
      %v2161 = vsel %vm2089, 1, 0
      %v2162 = vcvt.s32.f32 %v2090
      %v2163 = vcvt.s32.f32 %v2091
      %v2164 = vcvt.s32.f32 %v2092
      %v2165 = vcvt.s32.f32 %v2093
      %v2166 = vcvt.s32.f32 %v2094
      %v2167 = vcvt.s32.f32 %v2095
      %v2168 = vcvt.s32.f32 %v2096
      %v2169 = vcvt.s32.f32 %v2097
      %v2170 = vcvt.s32.f32 %v2098
      %v2171 = vcvt.s32.f32 %v2099
      %v2172 = vcvt.s32.f32 %v2100
      %v2173 = vcvt.s32.f32 %v2101
      %v2174 = vcvt.s32.f32 %v2102
      %v2175 = vcvt.s32.f32 %v2103
      %v2176 = vcvt.s32.f32 %v2104
      %v2177 = vcvt.s32.f32 %v2105
      %v2178 = vcvt.s32.f32 %v2106
      %v2179 = vcvt.s32.f32 %v2107
      %v2180 = vcvt.s32.f32 %v2108
      %v2181 = vcvt.s32.f32 %v2109
      %v2182 = vcvt.s32.f32 %v2110
      %v2183 = vcvt.s32.f32 %v2111
      %v2184 = vcvt.s32.f32 %v2112
      %v2185 = vcvt.s32.f32 %v2113
      %v2186 = vcvt.s32.f32 %v2114
      %v2187 = vcvt.s32.f32 %v2115
      %v2188 = vcvt.s32.f32 %v2116
      %v2189 = vcvt.s32.f32 %v2117
      %v2190 = vcvt.s32.f32 %v2118
      %v2191 = vcvt.s32.f32 %v2119
      %v2192 = vcvt.s32.f32 %v2120
      %v2193 = vcvt.s32.f32 %v2121
      %v2194 = vcvt.s32.f32 %v2122
      %v2195 = vcvt.s32.f32 %v2123
      %v2196 = vcvt.s32.f32 %v2124
      %v2197 = vcvt.s32.f32 %v2125
      %v2198 = vcvt.s32.f32 %v2126
      %v2199 = vcvt.s32.f32 %v2127
      %v2200 = vcvt.s32.f32 %v2128
      %v2201 = vcvt.s32.f32 %v2129
      %v2202 = vcvt.s32.f32 %v2130
      %v2203 = vcvt.s32.f32 %v2131
      %v2204 = vcvt.s32.f32 %v2132
      %v2205 = vcvt.s32.f32 %v2133
      %v2206 = vcvt.s32.f32 %v2134
      %v2207 = vcvt.s32.f32 %v2135
      %v2208 = vcvt.s32.f32 %v2136
      %v2209 = vcvt.s32.f32 %v2137
      %v2210 = vcvt.s32.f32 %v2138
      %v2211 = vcvt.s32.f32 %v2139
      %v2212 = vcvt.s32.f32 %v2140
      %v2213 = vcvt.s32.f32 %v2141
      %v2214 = vcvt.s32.f32 %v2142
      %v2215 = vcvt.s32.f32 %v2143
      %v2216 = vcvt.s32.f32 %v2144
      %v2217 = vcvt.s32.f32 %v2145
      %v2218 = vcvt.s32.f32 %v2146
      %v2219 = vcvt.s32.f32 %v2147
      %v2220 = vcvt.s32.f32 %v2148
      %v2221 = vcvt.s32.f32 %v2149
      %v2222 = vcvt.s32.f32 %v2150
      %v2223 = vcvt.s32.f32 %v2151
      %v2224 = vcvt.s32.f32 %v2152
      %v2225 = vcvt.s32.f32 %v2153
      %v2226 = vcvt.s32.f32 %v2154
      %v2227 = vcvt.s32.f32 %v2155
      %v2228 = vcvt.s32.f32 %v2156
      %v2229 = vcvt.s32.f32 %v2157
      %v2230 = vcvt.s32.f32 %v2158
      %v2231 = vcvt.s32.f32 %v2159
      %v2232 = vcvt.s32.f32 %v2160
      %v2233 = vcvt.s32.f32 %v2161
      %v2234 = vsub.f32 0.0, %v1125
      %vm2235 = vcmp.lt.f32.partialorder %v544, %v2234
      %vm2236 = vcmp.lt.f32.partialorder %v547, %v2234
      %vm2237 = vcmp.lt.f32.partialorder %v550, %v2234
      %vm2238 = vcmp.lt.f32.partialorder %v553, %v2234
      %vm2239 = vcmp.lt.f32.partialorder %v556, %v2234
      %vm2240 = vcmp.lt.f32.partialorder %v559, %v2234
      %vm2241 = vcmp.lt.f32.partialorder %v562, %v2234
      %vm2242 = vcmp.lt.f32.partialorder %v565, %v2234
      %vm2243 = vcmp.lt.f32.partialorder %v568, %v2234
      %vm2244 = vcmp.lt.f32.partialorder %v571, %v2234
      %vm2245 = vcmp.lt.f32.partialorder %v574, %v2234
      %vm2246 = vcmp.lt.f32.partialorder %v577, %v2234
      %vm2247 = vcmp.lt.f32.partialorder %v580, %v2234
      %vm2248 = vcmp.lt.f32.partialorder %v583, %v2234
      %vm2249 = vcmp.lt.f32.partialorder %v586, %v2234
      %vm2250 = vcmp.lt.f32.partialorder %v589, %v2234
      %vm2251 = vcmp.lt.f32.partialorder %v592, %v2234
      %vm2252 = vcmp.lt.f32.partialorder %v595, %v2234
      %vm2253 = vcmp.lt.f32.partialorder %v598, %v2234
      %vm2254 = vcmp.lt.f32.partialorder %v601, %v2234
      %vm2255 = vcmp.lt.f32.partialorder %v604, %v2234
      %vm2256 = vcmp.lt.f32.partialorder %v607, %v2234
      %vm2257 = vcmp.lt.f32.partialorder %v610, %v2234
      %vm2258 = vcmp.lt.f32.partialorder %v613, %v2234
      %vm2259 = vcmp.lt.f32.partialorder %v616, %v2234
      %vm2260 = vcmp.lt.f32.partialorder %v619, %v2234
      %vm2261 = vcmp.lt.f32.partialorder %v622, %v2234
      %vm2262 = vcmp.lt.f32.partialorder %v625, %v2234
      %vm2263 = vcmp.lt.f32.partialorder %v628, %v2234
      %vm2264 = vcmp.lt.f32.partialorder %v631, %v2234
      %vm2265 = vcmp.lt.f32.partialorder %v634, %v2234
      %vm2266 = vcmp.lt.f32.partialorder %v637, %v2234
      %vm2267 = vcmp.lt.f32.partialorder %v640, %v2234
      %vm2268 = vcmp.lt.f32.partialorder %v643, %v2234
      %vm2269 = vcmp.lt.f32.partialorder %v646, %v2234
      %vm2270 = vcmp.lt.f32.partialorder %v649, %v2234
      %vm2271 = vcmp.lt.f32.partialorder %v652, %v2234
      %vm2272 = vcmp.lt.f32.partialorder %v655, %v2234
      %vm2273 = vcmp.lt.f32.partialorder %v658, %v2234
      %vm2274 = vcmp.lt.f32.partialorder %v661, %v2234
      %vm2275 = vcmp.lt.f32.partialorder %v664, %v2234
      %vm2276 = vcmp.lt.f32.partialorder %v667, %v2234
      %vm2277 = vcmp.lt.f32.partialorder %v670, %v2234
      %vm2278 = vcmp.lt.f32.partialorder %v673, %v2234
      %vm2279 = vcmp.lt.f32.partialorder %v676, %v2234
      %vm2280 = vcmp.lt.f32.partialorder %v679, %v2234
      %vm2281 = vcmp.lt.f32.partialorder %v682, %v2234
      %vm2282 = vcmp.lt.f32.partialorder %v685, %v2234
      %vm2283 = vcmp.lt.f32.partialorder %v688, %v2234
      %vm2284 = vcmp.lt.f32.partialorder %v691, %v2234
      %vm2285 = vcmp.lt.f32.partialorder %v694, %v2234
      %vm2286 = vcmp.lt.f32.partialorder %v697, %v2234
      %vm2287 = vcmp.lt.f32.partialorder %v700, %v2234
      %vm2288 = vcmp.lt.f32.partialorder %v703, %v2234
      %vm2289 = vcmp.lt.f32.partialorder %v706, %v2234
      %vm2290 = vcmp.lt.f32.partialorder %v709, %v2234
      %vm2291 = vcmp.lt.f32.partialorder %v712, %v2234
      %vm2292 = vcmp.lt.f32.partialorder %v715, %v2234
      %vm2293 = vcmp.lt.f32.partialorder %v718, %v2234
      %vm2294 = vcmp.lt.f32.partialorder %v721, %v2234
      %vm2295 = vcmp.lt.f32.partialorder %v724, %v2234
      %vm2296 = vcmp.lt.f32.partialorder %v727, %v2234
      %vm2297 = vcmp.lt.f32.partialorder %v730, %v2234
      %vm2298 = vcmp.lt.f32.partialorder %v733, %v2234
      %vm2299 = vcmp.lt.f32.partialorder %v736, %v2234
      %vm2300 = vcmp.lt.f32.partialorder %v739, %v2234
      %vm2301 = vcmp.lt.f32.partialorder %v742, %v2234
      %vm2302 = vcmp.lt.f32.partialorder %v745, %v2234
      %vm2303 = vcmp.lt.f32.partialorder %v748, %v2234
      %vm2304 = vcmp.lt.f32.partialorder %v751, %v2234
      %vm2305 = vcmp.lt.f32.partialorder %v754, %v2234
      %vm2306 = vcmp.lt.f32.partialorder %v757, %v2234
      %v2307 = vsel %vm2235, 1, 0
      %v2308 = vsel %vm2236, 1, 0
      %v2309 = vsel %vm2237, 1, 0
      %v2310 = vsel %vm2238, 1, 0
      %v2311 = vsel %vm2239, 1, 0
      %v2312 = vsel %vm2240, 1, 0
      %v2313 = vsel %vm2241, 1, 0
      %v2314 = vsel %vm2242, 1, 0
      %v2315 = vsel %vm2243, 1, 0
      %v2316 = vsel %vm2244, 1, 0
      %v2317 = vsel %vm2245, 1, 0
      %v2318 = vsel %vm2246, 1, 0
      %v2319 = vsel %vm2247, 1, 0
      %v2320 = vsel %vm2248, 1, 0
      %v2321 = vsel %vm2249, 1, 0
      %v2322 = vsel %vm2250, 1, 0
      %v2323 = vsel %vm2251, 1, 0
      %v2324 = vsel %vm2252, 1, 0
      %v2325 = vsel %vm2253, 1, 0
      %v2326 = vsel %vm2254, 1, 0
      %v2327 = vsel %vm2255, 1, 0
      %v2328 = vsel %vm2256, 1, 0
      %v2329 = vsel %vm2257, 1, 0
      %v2330 = vsel %vm2258, 1, 0
      %v2331 = vsel %vm2259, 1, 0
      %v2332 = vsel %vm2260, 1, 0
      %v2333 = vsel %vm2261, 1, 0
      %v2334 = vsel %vm2262, 1, 0
      %v2335 = vsel %vm2263, 1, 0
      %v2336 = vsel %vm2264, 1, 0
      %v2337 = vsel %vm2265, 1, 0
      %v2338 = vsel %vm2266, 1, 0
      %v2339 = vsel %vm2267, 1, 0
      %v2340 = vsel %vm2268, 1, 0
      %v2341 = vsel %vm2269, 1, 0
      %v2342 = vsel %vm2270, 1, 0
      %v2343 = vsel %vm2271, 1, 0
      %v2344 = vsel %vm2272, 1, 0
      %v2345 = vsel %vm2273, 1, 0
      %v2346 = vsel %vm2274, 1, 0
      %v2347 = vsel %vm2275, 1, 0
      %v2348 = vsel %vm2276, 1, 0
      %v2349 = vsel %vm2277, 1, 0
      %v2350 = vsel %vm2278, 1, 0
      %v2351 = vsel %vm2279, 1, 0
      %v2352 = vsel %vm2280, 1, 0
      %v2353 = vsel %vm2281, 1, 0
      %v2354 = vsel %vm2282, 1, 0
      %v2355 = vsel %vm2283, 1, 0
      %v2356 = vsel %vm2284, 1, 0
      %v2357 = vsel %vm2285, 1, 0
      %v2358 = vsel %vm2286, 1, 0
      %v2359 = vsel %vm2287, 1, 0
      %v2360 = vsel %vm2288, 1, 0
      %v2361 = vsel %vm2289, 1, 0
      %v2362 = vsel %vm2290, 1, 0
      %v2363 = vsel %vm2291, 1, 0
      %v2364 = vsel %vm2292, 1, 0
      %v2365 = vsel %vm2293, 1, 0
      %v2366 = vsel %vm2294, 1, 0
      %v2367 = vsel %vm2295, 1, 0
      %v2368 = vsel %vm2296, 1, 0
      %v2369 = vsel %vm2297, 1, 0
      %v2370 = vsel %vm2298, 1, 0
      %v2371 = vsel %vm2299, 1, 0
      %v2372 = vsel %vm2300, 1, 0
      %v2373 = vsel %vm2301, 1, 0
      %v2374 = vsel %vm2302, 1, 0
      %v2375 = vsel %vm2303, 1, 0
      %v2376 = vsel %vm2304, 1, 0
      %v2377 = vsel %vm2305, 1, 0
      %v2378 = vsel %vm2306, 1, 0
      %v2379 = vcvt.s32.f32 %v2307
      %v2380 = vcvt.s32.f32 %v2308
      %v2381 = vcvt.s32.f32 %v2309
      %v2382 = vcvt.s32.f32 %v2310
      %v2383 = vcvt.s32.f32 %v2311
      %v2384 = vcvt.s32.f32 %v2312
      %v2385 = vcvt.s32.f32 %v2313
      %v2386 = vcvt.s32.f32 %v2314
      %v2387 = vcvt.s32.f32 %v2315
      %v2388 = vcvt.s32.f32 %v2316
      %v2389 = vcvt.s32.f32 %v2317
      %v2390 = vcvt.s32.f32 %v2318
      %v2391 = vcvt.s32.f32 %v2319
      %v2392 = vcvt.s32.f32 %v2320
      %v2393 = vcvt.s32.f32 %v2321
      %v2394 = vcvt.s32.f32 %v2322
      %v2395 = vcvt.s32.f32 %v2323
      %v2396 = vcvt.s32.f32 %v2324
      %v2397 = vcvt.s32.f32 %v2325
      %v2398 = vcvt.s32.f32 %v2326
      %v2399 = vcvt.s32.f32 %v2327
      %v2400 = vcvt.s32.f32 %v2328
      %v2401 = vcvt.s32.f32 %v2329
      %v2402 = vcvt.s32.f32 %v2330
      %v2403 = vcvt.s32.f32 %v2331
      %v2404 = vcvt.s32.f32 %v2332
      %v2405 = vcvt.s32.f32 %v2333
      %v2406 = vcvt.s32.f32 %v2334
      %v2407 = vcvt.s32.f32 %v2335
      %v2408 = vcvt.s32.f32 %v2336
      %v2409 = vcvt.s32.f32 %v2337
      %v2410 = vcvt.s32.f32 %v2338
      %v2411 = vcvt.s32.f32 %v2339
      %v2412 = vcvt.s32.f32 %v2340
      %v2413 = vcvt.s32.f32 %v2341
      %v2414 = vcvt.s32.f32 %v2342
      %v2415 = vcvt.s32.f32 %v2343
      %v2416 = vcvt.s32.f32 %v2344
      %v2417 = vcvt.s32.f32 %v2345
      %v2418 = vcvt.s32.f32 %v2346
      %v2419 = vcvt.s32.f32 %v2347
      %v2420 = vcvt.s32.f32 %v2348
      %v2421 = vcvt.s32.f32 %v2349
      %v2422 = vcvt.s32.f32 %v2350
      %v2423 = vcvt.s32.f32 %v2351
      %v2424 = vcvt.s32.f32 %v2352
      %v2425 = vcvt.s32.f32 %v2353
      %v2426 = vcvt.s32.f32 %v2354
      %v2427 = vcvt.s32.f32 %v2355
      %v2428 = vcvt.s32.f32 %v2356
      %v2429 = vcvt.s32.f32 %v2357
      %v2430 = vcvt.s32.f32 %v2358
      %v2431 = vcvt.s32.f32 %v2359
      %v2432 = vcvt.s32.f32 %v2360
      %v2433 = vcvt.s32.f32 %v2361
      %v2434 = vcvt.s32.f32 %v2362
      %v2435 = vcvt.s32.f32 %v2363
      %v2436 = vcvt.s32.f32 %v2364
      %v2437 = vcvt.s32.f32 %v2365
      %v2438 = vcvt.s32.f32 %v2366
      %v2439 = vcvt.s32.f32 %v2367
      %v2440 = vcvt.s32.f32 %v2368
      %v2441 = vcvt.s32.f32 %v2369
      %v2442 = vcvt.s32.f32 %v2370
      %v2443 = vcvt.s32.f32 %v2371
      %v2444 = vcvt.s32.f32 %v2372
      %v2445 = vcvt.s32.f32 %v2373
      %v2446 = vcvt.s32.f32 %v2374
      %v2447 = vcvt.s32.f32 %v2375
      %v2448 = vcvt.s32.f32 %v2376
      %v2449 = vcvt.s32.f32 %v2377
      %v2450 = vcvt.s32.f32 %v2378
      %v2451 = vsub.f32 %v2162, %v2379
      %v2452 = vsub.f32 %v2163, %v2380
      %v2453 = vsub.f32 %v2164, %v2381
      %v2454 = vsub.f32 %v2165, %v2382
      %v2455 = vsub.f32 %v2166, %v2383
      %v2456 = vsub.f32 %v2167, %v2384
      %v2457 = vsub.f32 %v2168, %v2385
      %v2458 = vsub.f32 %v2169, %v2386
      %v2459 = vsub.f32 %v2170, %v2387
      %v2460 = vsub.f32 %v2171, %v2388
      %v2461 = vsub.f32 %v2172, %v2389
      %v2462 = vsub.f32 %v2173, %v2390
      %v2463 = vsub.f32 %v2174, %v2391
      %v2464 = vsub.f32 %v2175, %v2392
      %v2465 = vsub.f32 %v2176, %v2393
      %v2466 = vsub.f32 %v2177, %v2394
      %v2467 = vsub.f32 %v2178, %v2395
      %v2468 = vsub.f32 %v2179, %v2396
      %v2469 = vsub.f32 %v2180, %v2397
      %v2470 = vsub.f32 %v2181, %v2398
      %v2471 = vsub.f32 %v2182, %v2399
      %v2472 = vsub.f32 %v2183, %v2400
      %v2473 = vsub.f32 %v2184, %v2401
      %v2474 = vsub.f32 %v2185, %v2402
      %v2475 = vsub.f32 %v2186, %v2403
      %v2476 = vsub.f32 %v2187, %v2404
      %v2477 = vsub.f32 %v2188, %v2405
      %v2478 = vsub.f32 %v2189, %v2406
      %v2479 = vsub.f32 %v2190, %v2407
      %v2480 = vsub.f32 %v2191, %v2408
      %v2481 = vsub.f32 %v2192, %v2409
      %v2482 = vsub.f32 %v2193, %v2410
      %v2483 = vsub.f32 %v2194, %v2411
      %v2484 = vsub.f32 %v2195, %v2412
      %v2485 = vsub.f32 %v2196, %v2413
      %v2486 = vsub.f32 %v2197, %v2414
      %v2487 = vsub.f32 %v2198, %v2415
      %v2488 = vsub.f32 %v2199, %v2416
      %v2489 = vsub.f32 %v2200, %v2417
      %v2490 = vsub.f32 %v2201, %v2418
      %v2491 = vsub.f32 %v2202, %v2419
      %v2492 = vsub.f32 %v2203, %v2420
      %v2493 = vsub.f32 %v2204, %v2421
      %v2494 = vsub.f32 %v2205, %v2422
      %v2495 = vsub.f32 %v2206, %v2423
      %v2496 = vsub.f32 %v2207, %v2424
      %v2497 = vsub.f32 %v2208, %v2425
      %v2498 = vsub.f32 %v2209, %v2426
      %v2499 = vsub.f32 %v2210, %v2427
      %v2500 = vsub.f32 %v2211, %v2428
      %v2501 = vsub.f32 %v2212, %v2429
      %v2502 = vsub.f32 %v2213, %v2430
      %v2503 = vsub.f32 %v2214, %v2431
      %v2504 = vsub.f32 %v2215, %v2432
      %v2505 = vsub.f32 %v2216, %v2433
      %v2506 = vsub.f32 %v2217, %v2434
      %v2507 = vsub.f32 %v2218, %v2435
      %v2508 = vsub.f32 %v2219, %v2436
      %v2509 = vsub.f32 %v2220, %v2437
      %v2510 = vsub.f32 %v2221, %v2438
      %v2511 = vsub.f32 %v2222, %v2439
      %v2512 = vsub.f32 %v2223, %v2440
      %v2513 = vsub.f32 %v2224, %v2441
      %v2514 = vsub.f32 %v2225, %v2442
      %v2515 = vsub.f32 %v2226, %v2443
      %v2516 = vsub.f32 %v2227, %v2444
      %v2517 = vsub.f32 %v2228, %v2445
      %v2518 = vsub.f32 %v2229, %v2446
      %v2519 = vsub.f32 %v2230, %v2447
      %v2520 = vsub.f32 %v2231, %v2448
      %v2521 = vsub.f32 %v2232, %v2449
      %v2522 = vsub.f32 %v2233, %v2450
      %v2523 = vmul.f32 %v2017, %v2451
      %v2524 = vmul.f32 %v2017, %v2452
      %v2525 = vmul.f32 %v2017, %v2453
      %v2526 = vmul.f32 %v2017, %v2454
      %v2527 = vmul.f32 %v2017, %v2455
      %v2528 = vmul.f32 %v2017, %v2456
      %v2529 = vmul.f32 %v2017, %v2457
      %v2530 = vmul.f32 %v2017, %v2458
      %v2531 = vmul.f32 %v2017, %v2459
      %v2532 = vmul.f32 %v2017, %v2460
      %v2533 = vmul.f32 %v2017, %v2461
      %v2534 = vmul.f32 %v2017, %v2462
      %v2535 = vmul.f32 %v2017, %v2463
      %v2536 = vmul.f32 %v2017, %v2464
      %v2537 = vmul.f32 %v2017, %v2465
      %v2538 = vmul.f32 %v2017, %v2466
      %v2539 = vmul.f32 %v2017, %v2467
      %v2540 = vmul.f32 %v2017, %v2468
      %v2541 = vmul.f32 %v2017, %v2469
      %v2542 = vmul.f32 %v2017, %v2470
      %v2543 = vmul.f32 %v2017, %v2471
      %v2544 = vmul.f32 %v2017, %v2472
      %v2545 = vmul.f32 %v2017, %v2473
      %v2546 = vmul.f32 %v2017, %v2474
      %v2547 = vmul.f32 %v2017, %v2475
      %v2548 = vmul.f32 %v2017, %v2476
      %v2549 = vmul.f32 %v2017, %v2477
      %v2550 = vmul.f32 %v2017, %v2478
      %v2551 = vmul.f32 %v2017, %v2479
      %v2552 = vmul.f32 %v2017, %v2480
      %v2553 = vmul.f32 %v2017, %v2481
      %v2554 = vmul.f32 %v2017, %v2482
      %v2555 = vmul.f32 %v2017, %v2483
      %v2556 = vmul.f32 %v2017, %v2484
      %v2557 = vmul.f32 %v2017, %v2485
      %v2558 = vmul.f32 %v2017, %v2486
      %v2559 = vmul.f32 %v2017, %v2487
      %v2560 = vmul.f32 %v2017, %v2488
      %v2561 = vmul.f32 %v2017, %v2489
      %v2562 = vmul.f32 %v2017, %v2490
      %v2563 = vmul.f32 %v2017, %v2491
      %v2564 = vmul.f32 %v2017, %v2492
      %v2565 = vmul.f32 %v2017, %v2493
      %v2566 = vmul.f32 %v2017, %v2494
      %v2567 = vmul.f32 %v2017, %v2495
      %v2568 = vmul.f32 %v2017, %v2496
      %v2569 = vmul.f32 %v2017, %v2497
      %v2570 = vmul.f32 %v2017, %v2498
      %v2571 = vmul.f32 %v2017, %v2499
      %v2572 = vmul.f32 %v2017, %v2500
      %v2573 = vmul.f32 %v2017, %v2501
      %v2574 = vmul.f32 %v2017, %v2502
      %v2575 = vmul.f32 %v2017, %v2503
      %v2576 = vmul.f32 %v2017, %v2504
      %v2577 = vmul.f32 %v2017, %v2505
      %v2578 = vmul.f32 %v2017, %v2506
      %v2579 = vmul.f32 %v2017, %v2507
      %v2580 = vmul.f32 %v2017, %v2508
      %v2581 = vmul.f32 %v2017, %v2509
      %v2582 = vmul.f32 %v2017, %v2510
      %v2583 = vmul.f32 %v2017, %v2511
      %v2584 = vmul.f32 %v2017, %v2512
      %v2585 = vmul.f32 %v2017, %v2513
      %v2586 = vmul.f32 %v2017, %v2514
      %v2587 = vmul.f32 %v2017, %v2515
      %v2588 = vmul.f32 %v2017, %v2516
      %v2589 = vmul.f32 %v2017, %v2517
      %v2590 = vmul.f32 %v2017, %v2518
      %v2591 = vmul.f32 %v2017, %v2519
      %v2592 = vmul.f32 %v2017, %v2520
      %v2593 = vmul.f32 %v2017, %v2521
      %v2594 = vmul.f32 %v2017, %v2522
      %v2595 = vld [vmem:[%s3] sm:$0x1]
      %v2597 = vperm.slane %v2595, 0
      %v2599 = vmul.f32 %v2523, %v2597
      %v2600 = vmul.f32 %v2524, %v2597
      %v2601 = vmul.f32 %v2525, %v2597
      %v2602 = vmul.f32 %v2526, %v2597
      %v2603 = vmul.f32 %v2527, %v2597
      %v2604 = vmul.f32 %v2528, %v2597
      %v2605 = vmul.f32 %v2529, %v2597
      %v2606 = vmul.f32 %v2530, %v2597
      %v2607 = vmul.f32 %v2531, %v2597
      %v2608 = vmul.f32 %v2532, %v2597
      %v2609 = vmul.f32 %v2533, %v2597
      %v2610 = vmul.f32 %v2534, %v2597
      %v2611 = vmul.f32 %v2535, %v2597
      %v2612 = vmul.f32 %v2536, %v2597
      %v2613 = vmul.f32 %v2537, %v2597
      %v2614 = vmul.f32 %v2538, %v2597
      %v2615 = vmul.f32 %v2539, %v2597
      %v2616 = vmul.f32 %v2540, %v2597
      %v2617 = vmul.f32 %v2541, %v2597
      %v2618 = vmul.f32 %v2542, %v2597
      %v2619 = vmul.f32 %v2543, %v2597
      %v2620 = vmul.f32 %v2544, %v2597
      %v2621 = vmul.f32 %v2545, %v2597
      %v2622 = vmul.f32 %v2546, %v2597
      %v2623 = vmul.f32 %v2547, %v2597
      %v2624 = vmul.f32 %v2548, %v2597
      %v2625 = vmul.f32 %v2549, %v2597
      %v2626 = vmul.f32 %v2550, %v2597
      %v2627 = vmul.f32 %v2551, %v2597
      %v2628 = vmul.f32 %v2552, %v2597
      %v2629 = vmul.f32 %v2553, %v2597
      %v2630 = vmul.f32 %v2554, %v2597
      %v2631 = vmul.f32 %v2555, %v2597
      %v2632 = vmul.f32 %v2556, %v2597
      %v2633 = vmul.f32 %v2557, %v2597
      %v2634 = vmul.f32 %v2558, %v2597
      %v2635 = vmul.f32 %v2559, %v2597
      %v2636 = vmul.f32 %v2560, %v2597
      %v2637 = vmul.f32 %v2561, %v2597
      %v2638 = vmul.f32 %v2562, %v2597
      %v2639 = vmul.f32 %v2563, %v2597
      %v2640 = vmul.f32 %v2564, %v2597
      %v2641 = vmul.f32 %v2565, %v2597
      %v2642 = vmul.f32 %v2566, %v2597
      %v2643 = vmul.f32 %v2567, %v2597
      %v2644 = vmul.f32 %v2568, %v2597
      %v2645 = vmul.f32 %v2569, %v2597
      %v2646 = vmul.f32 %v2570, %v2597
      %v2647 = vmul.f32 %v2571, %v2597
      %v2648 = vmul.f32 %v2572, %v2597
      %v2649 = vmul.f32 %v2573, %v2597
      %v2650 = vmul.f32 %v2574, %v2597
      %v2651 = vmul.f32 %v2575, %v2597
      %v2652 = vmul.f32 %v2576, %v2597
      %v2653 = vmul.f32 %v2577, %v2597
      %v2654 = vmul.f32 %v2578, %v2597
      %v2655 = vmul.f32 %v2579, %v2597
      %v2656 = vmul.f32 %v2580, %v2597
      %v2657 = vmul.f32 %v2581, %v2597
      %v2658 = vmul.f32 %v2582, %v2597
      %v2659 = vmul.f32 %v2583, %v2597
      %v2660 = vmul.f32 %v2584, %v2597
      %v2661 = vmul.f32 %v2585, %v2597
      %v2662 = vmul.f32 %v2586, %v2597
      %v2663 = vmul.f32 %v2587, %v2597
      %v2664 = vmul.f32 %v2588, %v2597
      %v2665 = vmul.f32 %v2589, %v2597
      %v2666 = vmul.f32 %v2590, %v2597
      %v2667 = vmul.f32 %v2591, %v2597
      %v2668 = vmul.f32 %v2592, %v2597
      %v2669 = vmul.f32 %v2593, %v2597
      %v2670 = vmul.f32 %v2594, %v2597
      %v2671 = vld [vmem:[%s4] sm:$0x1]
      %v2673 = vperm.slane %v2671, 0
      %v2675 = vadd.f32 %v2599, %v2673
      %v2676 = vadd.f32 %v2600, %v2673
      %v2677 = vadd.f32 %v2601, %v2673
      %v2678 = vadd.f32 %v2602, %v2673
      %v2679 = vadd.f32 %v2603, %v2673
      %v2680 = vadd.f32 %v2604, %v2673
      %v2681 = vadd.f32 %v2605, %v2673
      %v2682 = vadd.f32 %v2606, %v2673
      %v2683 = vadd.f32 %v2607, %v2673
      %v2684 = vadd.f32 %v2608, %v2673
      %v2685 = vadd.f32 %v2609, %v2673
      %v2686 = vadd.f32 %v2610, %v2673
      %v2687 = vadd.f32 %v2611, %v2673
      %v2688 = vadd.f32 %v2612, %v2673
      %v2689 = vadd.f32 %v2613, %v2673
      %v2690 = vadd.f32 %v2614, %v2673
      %v2691 = vadd.f32 %v2615, %v2673
      %v2692 = vadd.f32 %v2616, %v2673
      %v2693 = vadd.f32 %v2617, %v2673
      %v2694 = vadd.f32 %v2618, %v2673
      %v2695 = vadd.f32 %v2619, %v2673
      %v2696 = vadd.f32 %v2620, %v2673
      %v2697 = vadd.f32 %v2621, %v2673
      %v2698 = vadd.f32 %v2622, %v2673
      %v2699 = vadd.f32 %v2623, %v2673
      %v2700 = vadd.f32 %v2624, %v2673
      %v2701 = vadd.f32 %v2625, %v2673
      %v2702 = vadd.f32 %v2626, %v2673
      %v2703 = vadd.f32 %v2627, %v2673
      %v2704 = vadd.f32 %v2628, %v2673
      %v2705 = vadd.f32 %v2629, %v2673
      %v2706 = vadd.f32 %v2630, %v2673
      %v2707 = vadd.f32 %v2631, %v2673
      %v2708 = vadd.f32 %v2632, %v2673
      %v2709 = vadd.f32 %v2633, %v2673
      %v2710 = vadd.f32 %v2634, %v2673
      %v2711 = vadd.f32 %v2635, %v2673
      %v2712 = vadd.f32 %v2636, %v2673
      %v2713 = vadd.f32 %v2637, %v2673
      %v2714 = vadd.f32 %v2638, %v2673
      %v2715 = vadd.f32 %v2639, %v2673
      %v2716 = vadd.f32 %v2640, %v2673
      %v2717 = vadd.f32 %v2641, %v2673
      %v2718 = vadd.f32 %v2642, %v2673
      %v2719 = vadd.f32 %v2643, %v2673
      %v2720 = vadd.f32 %v2644, %v2673
      %v2721 = vadd.f32 %v2645, %v2673
      %v2722 = vadd.f32 %v2646, %v2673
      %v2723 = vadd.f32 %v2647, %v2673
      %v2724 = vadd.f32 %v2648, %v2673
      %v2725 = vadd.f32 %v2649, %v2673
      %v2726 = vadd.f32 %v2650, %v2673
      %v2727 = vadd.f32 %v2651, %v2673
      %v2728 = vadd.f32 %v2652, %v2673
      %v2729 = vadd.f32 %v2653, %v2673
      %v2730 = vadd.f32 %v2654, %v2673
      %v2731 = vadd.f32 %v2655, %v2673
      %v2732 = vadd.f32 %v2656, %v2673
      %v2733 = vadd.f32 %v2657, %v2673
      %v2734 = vadd.f32 %v2658, %v2673
      %v2735 = vadd.f32 %v2659, %v2673
      %v2736 = vadd.f32 %v2660, %v2673
      %v2737 = vadd.f32 %v2661, %v2673
      %v2738 = vadd.f32 %v2662, %v2673
      %v2739 = vadd.f32 %v2663, %v2673
      %v2740 = vadd.f32 %v2664, %v2673
      %v2741 = vadd.f32 %v2665, %v2673
      %v2742 = vadd.f32 %v2666, %v2673
      %v2743 = vadd.f32 %v2667, %v2673
      %v2744 = vadd.f32 %v2668, %v2673
      %v2745 = vadd.f32 %v2669, %v2673
      %v2746 = vadd.f32 %v2670, %v2673
      %2747 = vst.msk [vmem:[%s224] sm:$0xff] %vm831, %v2675
      %2748 = vst.msk [vmem:[%s224 + $0x8] sm:$0xff] %vm831, %v2676
      %2749 = vst.msk [vmem:[%s224 + $0x10] sm:$0xff] %vm831, %v2677
      %2750 = vst.msk [vmem:[%s224 + $0x18] sm:$0xff] %vm831, %v2678
      %2751 = vst.msk [vmem:[%s224 + $0x20] sm:$0xff] %vm831, %v2679
      %2752 = vst.msk [vmem:[%s224 + $0x28] sm:$0xff] %vm831, %v2680
      %2753 = vst.msk [vmem:[%s224 + $0x30] sm:$0xff] %vm831, %v2681
      %2754 = vst.msk [vmem:[%s224 + $0x38] sm:$0xff] %vm831, %v2682
      %2755 = vst.msk [vmem:[%s224 + $0x40] sm:$0xff] %vm831, %v2683
      %2756 = vst.msk [vmem:[%s224 + $0x48] sm:$0xff] %vm831, %v2684
      %2757 = vst.msk [vmem:[%s224 + $0x50] sm:$0xff] %vm831, %v2685
      %2758 = vst.msk [vmem:[%s224 + $0x58] sm:$0xff] %vm831, %v2686
      %2759 = vst.msk [vmem:[%s224 + $0x60] sm:$0xff] %vm831, %v2687
      %2760 = vst.msk [vmem:[%s224 + $0x68] sm:$0xff] %vm831, %v2688
      %2761 = vst.msk [vmem:[%s224 + $0x70] sm:$0xff] %vm831, %v2689
      %2762 = vst.msk [vmem:[%s224 + $0x78] sm:$0xff] %vm831, %v2690
      %2763 = vst.msk [vmem:[%s224 + $0x80] sm:$0xff] %vm831, %v2691
      %2764 = vst.msk [vmem:[%s224 + $0x88] sm:$0xff] %vm831, %v2692
      %2765 = vst.msk [vmem:[%s224 + $0x90] sm:$0xff] %vm831, %v2693
      %2766 = vst.msk [vmem:[%s224 + $0x98] sm:$0xff] %vm831, %v2694
      %2767 = vst.msk [vmem:[%s224 + $0xa0] sm:$0xff] %vm831, %v2695
      %2768 = vst.msk [vmem:[%s224 + $0xa8] sm:$0xff] %vm831, %v2696
      %2769 = vst.msk [vmem:[%s224 + $0xb0] sm:$0xff] %vm831, %v2697
      %2770 = vst.msk [vmem:[%s224 + $0xb8] sm:$0xff] %vm831, %v2698
      %2771 = vst.msk [vmem:[%s224 + $0xc0] sm:$0xff] %vm831, %v2699
      %2772 = vst.msk [vmem:[%s224 + $0xc8] sm:$0xff] %vm831, %v2700
      %2773 = vst.msk [vmem:[%s224 + $0xd0] sm:$0xff] %vm831, %v2701
      %2774 = vst.msk [vmem:[%s224 + $0xd8] sm:$0xff] %vm831, %v2702
      %2775 = vst.msk [vmem:[%s224 + $0xe0] sm:$0xff] %vm831, %v2703
      %2776 = vst.msk [vmem:[%s224 + $0xe8] sm:$0xff] %vm831, %v2704
      %2777 = vst.msk [vmem:[%s224 + $0xf0] sm:$0xff] %vm831, %v2705
      %2778 = vst.msk [vmem:[%s224 + $0xf8] sm:$0xff] %vm831, %v2706
      %2779 = vst.msk [vmem:[%s224 + $0x100] sm:$0xff] %vm831, %v2707
      %2780 = vst.msk [vmem:[%s224 + $0x108] sm:$0xff] %vm831, %v2708
      %2781 = vst.msk [vmem:[%s224 + $0x110] sm:$0xff] %vm831, %v2709
      %2782 = vst.msk [vmem:[%s224 + $0x118] sm:$0xff] %vm831, %v2710
      %2783 = vst.msk [vmem:[%s224 + $0x120] sm:$0xff] %vm831, %v2711
      %2784 = vst.msk [vmem:[%s224 + $0x128] sm:$0xff] %vm831, %v2712
      %2785 = vst.msk [vmem:[%s224 + $0x130] sm:$0xff] %vm831, %v2713
      %2786 = vst.msk [vmem:[%s224 + $0x138] sm:$0xff] %vm831, %v2714
      %2787 = vst.msk [vmem:[%s224 + $0x140] sm:$0xff] %vm831, %v2715
      %2788 = vst.msk [vmem:[%s224 + $0x148] sm:$0xff] %vm831, %v2716
      %2789 = vst.msk [vmem:[%s224 + $0x150] sm:$0xff] %vm831, %v2717
      %2790 = vst.msk [vmem:[%s224 + $0x158] sm:$0xff] %vm831, %v2718
      %2791 = vst.msk [vmem:[%s224 + $0x160] sm:$0xff] %vm831, %v2719
      %2792 = vst.msk [vmem:[%s224 + $0x168] sm:$0xff] %vm831, %v2720
      %2793 = vst.msk [vmem:[%s224 + $0x170] sm:$0xff] %vm831, %v2721
      %2794 = vst.msk [vmem:[%s224 + $0x178] sm:$0xff] %vm831, %v2722
      %2795 = vst.msk [vmem:[%s224 + $0x180] sm:$0xff] %vm831, %v2723
      %2796 = vst.msk [vmem:[%s224 + $0x188] sm:$0xff] %vm831, %v2724
      %2797 = vst.msk [vmem:[%s224 + $0x190] sm:$0xff] %vm831, %v2725
      %2798 = vst.msk [vmem:[%s224 + $0x198] sm:$0xff] %vm831, %v2726
      %2799 = vst.msk [vmem:[%s224 + $0x1a0] sm:$0xff] %vm831, %v2727
      %2800 = vst.msk [vmem:[%s224 + $0x1a8] sm:$0xff] %vm831, %v2728
      %2801 = vst.msk [vmem:[%s224 + $0x1b0] sm:$0xff] %vm831, %v2729
      %2802 = vst.msk [vmem:[%s224 + $0x1b8] sm:$0xff] %vm831, %v2730
      %2803 = vst.msk [vmem:[%s224 + $0x1c0] sm:$0xff] %vm831, %v2731
      %2804 = vst.msk [vmem:[%s224 + $0x1c8] sm:$0xff] %vm831, %v2732
      %2805 = vst.msk [vmem:[%s224 + $0x1d0] sm:$0xff] %vm831, %v2733
      %2806 = vst.msk [vmem:[%s224 + $0x1d8] sm:$0xff] %vm831, %v2734
      %2807 = vst.msk [vmem:[%s224 + $0x1e0] sm:$0xff] %vm831, %v2735
      %2808 = vst.msk [vmem:[%s224 + $0x1e8] sm:$0xff] %vm831, %v2736
      %2809 = vst.msk [vmem:[%s224 + $0x1f0] sm:$0xff] %vm831, %v2737
      %2810 = vst.msk [vmem:[%s224 + $0x1f8] sm:$0xff] %vm831, %v2738
      %2811 = vst.msk [vmem:[%s224 + $0x200] sm:$0xff] %vm831, %v2739
      %2812 = vst.msk [vmem:[%s224 + $0x208] sm:$0xff] %vm831, %v2740
      %2813 = vst.msk [vmem:[%s224 + $0x210] sm:$0xff] %vm831, %v2741
      %2814 = vst.msk [vmem:[%s224 + $0x218] sm:$0xff] %vm831, %v2742
      %2815 = vst.msk [vmem:[%s224 + $0x220] sm:$0xff] %vm831, %v2743
      %2816 = vst.msk [vmem:[%s224 + $0x228] sm:$0xff] %vm831, %v2744
      %2817 = vst.msk [vmem:[%s224 + $0x230] sm:$0xff] %vm831, %v2745
      %2818 = vst.msk [vmem:[%s224 + $0x238] sm:$0xff] %vm831, %v2746
      %p2819 = scmp.lt.s32.totalorder %s16, 1
      %s2820 = scalar_select %p2819, %s16, 1
      %s2821 = smul.addr %s2820, 72
      %s2822 = smul.addr %s2821, 8
      %s2823 = scalar_lea.vmem %s5, %s2822
      // Predicated region
      $region41: #{lenet5_t_forward.4} parent=39 // pred_check
        %p2824 = pneg %p144
      $region42: #{lenet5_t_forward.4} parent=39 // pred_check_branch
        %2826 = sbr.rel (%p2824) target = $region44
      $region43: #{lenet5_t_forward.4} parent=39 // pred_region
        _
      $region44: #{lenet5_t_forward.4} parent=39 // pred_fallthru
        _
    $region40: #{lenet5_t_forward.4} parent=5 // pred_fallthru
      _
    %p2827 = scmp.le.s32.totalorder 2, %s11
    // Predicated region
    $region45: #{lenet5_t_forward.4} parent=5 // pred_check
      %p2828 = pneg %p2827
    $region46: #{lenet5_t_forward.4} parent=5 // pred_check_branch
      %2830 = sbr.rel (%p2828) target = $region48
    $region47: #{lenet5_t_forward.4} parent=5 // pred_region
      %s2831 = ssub.s32 %s11, 2
      // Predicated region
      $region49: #{lenet5_t_forward.4} parent=47 // pred_check
        %p2832 = pneg %p150
      $region50: #{lenet5_t_forward.4} parent=47 // pred_check_branch
        %2834 = sbr.rel (%p2832) target = $region52
      $region51: #{lenet5_t_forward.4} parent=47 // pred_region
        %p2835 = scmp.lt.s32.totalorder %s17, 1
        %s2836 = scalar_select %p2835, %s17, 1
        %s2837 = smul.addr %s2836, 72
        %s2838 = smul.addr %s2837, 8
        %s2839 = scalar_lea.vmem %s5, %s2838
      $region52: #{lenet5_t_forward.4} parent=47 // pred_fallthru
        _
    $region48: #{lenet5_t_forward.4} parent=5 // pred_fallthru
      _
  $region6: #{lenet5_t_forward.4} parent=0 // loop_footer
    %s15 = sadd.s32 1, %s11
  $region7: #{lenet5_t_forward.4} parent=0 // loop_footer_branch
    %10 = sbr.rel target = $region3
  $region8: #{lenet5_t_forward.4} parent=0 // loop_exit
    _

// kernel: lenet5_t_forward.5
$region0: #{lenet5_t_forward.5}
  #allocation0 [shape = 'u32[]', space=smem, size = 0x4, offset = 0x4, fixed_abs, tag = 'smem constant byte address 0x4 - core index']
  #allocation1 [shape = 'u32[72,128]{1,0:T(1,128)}', space=vmem, size = 0x9000, scoped, tag = 'internal scratch']
  %s0 = inlined_call_operand.vmem [shape: f32[2,64,800], index: 0, kind: input, shape index: {}]
  %s1 = inlined_call_operand.vmem [shape: f32[800,64], index: 1, kind: input, shape index: {}]
  %s2 = inlined_call_operand.vmem [shape: f32[1,64], index: 2, kind: input, shape index: {}]
  %s3 = inlined_call_operand.vmem [shape: f32[1,64], index: 3, kind: input, shape index: {}]
  %s4 = inlined_call_operand.vmem [shape: f32[1,64], index: 4, kind: input, shape index: {}]
  %s5 = inlined_call_operand.vmem [shape: f32[2,64,64], index: 5, kind: output, shape index: {}]
  %s6 = sld [smem:[#allocation0]]
  $region53: #{lenet5_t_forward.5} parent=0
    _
  %s8 = ssub.s32 1, %s6
  %s9 = scalar_select 0, %s8, %s6
  loop: start=0, step=1, limit=4
  $region2: #{lenet5_t_forward.5} parent=0 // loop_pre_header
    _
  $region3: #{lenet5_t_forward.5} parent=0 // loop_header
    %s11 = sphi 0, %s15
    %p12 = scmp.ge.s32.totalorder %s11, 4
    %s21 = sphi 0, %s23
    %s24 = sphi 0, %s21
    %s25 = sphi 0, %s24
    %s41 = sphi 0, %s25
    %s45 = sphi 0, %s45
    %s47 = sphi 0, %s45
    %s48 = sphi 0, %s47
    %s62 = sphi 0, %s48
    %s66 = sphi 0, %s66
    %s68 = sphi 0, %s66
    %s69 = sphi 0, %s68
    %s83 = sphi 0, %s69
    %s87 = sphi 0, %s87
    %s89 = sphi 0, %s87
    %s90 = sphi 0, %s89
    %s104 = sphi 0, %s90
    %s108 = sphi 0, %s108
    %s110 = sphi 0, %s108
    %s111 = sphi 0, %s110
    %s125 = sphi 0, %s111
    %s131 = sphi 0, %s133
    %s134 = sphi 0, %s131
    %s135 = sphi 0, %s134
    %s151 = sphi 0, %s135
  $region4: #{lenet5_t_forward.5} parent=0 // loop_header_branch
    %14 = sbr.rel (%p12) target = $region8
  $region5: #{lenet5_t_forward.5} parent=0 // loop_body
    %s16 = ssub.s32 %s11, 1
    %s17 = ssub.s32 %s11, 2
    %s18 = sadd.s32 %s11, 1
    %s19 = ssub.s32 %s11, %s18
    %p20 = scmp.eq.s32.totalorder %s19, 0
    %s22 = sadd.s32 %s21, 1
    %s23 = scalar_select %p20, %s21, %s22
    %p26 = pneg %p20
    %p27 = scmp.eq.s32.totalorder %s11, 1
    %p28 = por %p26, %p27
    %p29 = scmp.ne.s32.totalorder %s21, %s24
    %p30 = scmp.eq.s32.totalorder %s11, 0
    %p31 = por %p29, %p30
    %p32 = scmp.ne.s32.totalorder %s21, %s24
    %p33 = scmp.eq.s32.totalorder %s16, 1
    %p34 = por %p32, %p33
    %p35 = scmp.ne.s32.totalorder %s24, %s25
    %p36 = scmp.eq.s32.totalorder %s16, 0
    %p37 = por %p35, %p36
    %p38 = scmp.ne.s32.totalorder %s24, %s25
    %p39 = scmp.eq.s32.totalorder %s17, 1
    %p40 = por %p38, %p39
    %p42 = scmp.ne.s32.totalorder %s25, %s41
    %p43 = scmp.eq.s32.totalorder %s17, 0
    %p44 = por %p42, %p43
    %s46 = sadd.s32 %s45, 1
    %p49 = scmp.eq.s32.totalorder %s11, 1
    %p50 = scmp.ne.s32.totalorder %s45, %s47
    %p51 = scmp.eq.s32.totalorder %s11, 0
    %p52 = por %p50, %p51
    %p53 = scmp.ne.s32.totalorder %s45, %s47
    %p54 = scmp.eq.s32.totalorder %s16, 1
    %p55 = por %p53, %p54
    %p56 = scmp.ne.s32.totalorder %s47, %s48
    %p57 = scmp.eq.s32.totalorder %s16, 0
    %p58 = por %p56, %p57
    %p59 = scmp.ne.s32.totalorder %s47, %s48
    %p60 = scmp.eq.s32.totalorder %s17, 1
    %p61 = por %p59, %p60
    %p63 = scmp.ne.s32.totalorder %s48, %s62
    %p64 = scmp.eq.s32.totalorder %s17, 0
    %p65 = por %p63, %p64
    %s67 = sadd.s32 %s66, 1
    %p70 = scmp.eq.s32.totalorder %s11, 1
    %p71 = scmp.ne.s32.totalorder %s66, %s68
    %p72 = scmp.eq.s32.totalorder %s11, 0
    %p73 = por %p71, %p72
    %p74 = scmp.ne.s32.totalorder %s66, %s68
    %p75 = scmp.eq.s32.totalorder %s16, 1
    %p76 = por %p74, %p75
    %p77 = scmp.ne.s32.totalorder %s68, %s69
    %p78 = scmp.eq.s32.totalorder %s16, 0
    %p79 = por %p77, %p78
    %p80 = scmp.ne.s32.totalorder %s68, %s69
    %p81 = scmp.eq.s32.totalorder %s17, 1
    %p82 = por %p80, %p81
    %p84 = scmp.ne.s32.totalorder %s69, %s83
    %p85 = scmp.eq.s32.totalorder %s17, 0
    %p86 = por %p84, %p85
    %s88 = sadd.s32 %s87, 1
    %p91 = scmp.eq.s32.totalorder %s11, 1
    %p92 = scmp.ne.s32.totalorder %s87, %s89
    %p93 = scmp.eq.s32.totalorder %s11, 0
    %p94 = por %p92, %p93
    %p95 = scmp.ne.s32.totalorder %s87, %s89
    %p96 = scmp.eq.s32.totalorder %s16, 1
    %p97 = por %p95, %p96
    %p98 = scmp.ne.s32.totalorder %s89, %s90
    %p99 = scmp.eq.s32.totalorder %s16, 0
    %p100 = por %p98, %p99
    %p101 = scmp.ne.s32.totalorder %s89, %s90
    %p102 = scmp.eq.s32.totalorder %s17, 1
    %p103 = por %p101, %p102
    %p105 = scmp.ne.s32.totalorder %s90, %s104
    %p106 = scmp.eq.s32.totalorder %s17, 0
    %p107 = por %p105, %p106
    %s109 = sadd.s32 %s108, 1
    %p112 = scmp.eq.s32.totalorder %s11, 1
    %p113 = scmp.ne.s32.totalorder %s108, %s110
    %p114 = scmp.eq.s32.totalorder %s11, 0
    %p115 = por %p113, %p114
    %p116 = scmp.ne.s32.totalorder %s108, %s110
    %p117 = scmp.eq.s32.totalorder %s16, 1
    %p118 = por %p116, %p117
    %p119 = scmp.ne.s32.totalorder %s110, %s111
    %p120 = scmp.eq.s32.totalorder %s16, 0
    %p121 = por %p119, %p120
    %p122 = scmp.ne.s32.totalorder %s110, %s111
    %p123 = scmp.eq.s32.totalorder %s17, 1
    %p124 = por %p122, %p123
    %p126 = scmp.ne.s32.totalorder %s111, %s125
    %p127 = scmp.eq.s32.totalorder %s17, 0
    %p128 = por %p126, %p127
    %s129 = ssub.s32 %s11, %s18
    %p130 = scmp.eq.s32.totalorder %s129, 0
    %s132 = sadd.s32 %s131, 1
    %s133 = scalar_select %p130, %s131, %s132
    %p136 = pneg %p130
    %p137 = scmp.eq.s32.totalorder %s11, 1
    %p138 = por %p136, %p137
    %p139 = scmp.ne.s32.totalorder %s131, %s134
    %p140 = scmp.eq.s32.totalorder %s11, 0
    %p141 = por %p139, %p140
    %p142 = scmp.ne.s32.totalorder %s131, %s134
    %p143 = scmp.eq.s32.totalorder %s16, 1
    %p144 = por %p142, %p143
    %p145 = scmp.ne.s32.totalorder %s134, %s135
    %p146 = scmp.eq.s32.totalorder %s16, 0
    %p147 = por %p145, %p146
    %p148 = scmp.ne.s32.totalorder %s134, %s135
    %p149 = scmp.eq.s32.totalorder %s17, 1
    %p150 = por %p148, %p149
    %p152 = scmp.ne.s32.totalorder %s135, %s151
    %p153 = scmp.eq.s32.totalorder %s17, 0
    %p154 = por %p152, %p153
    %p155 = scmp.le.s32.totalorder 1, %s11
    %p156 = scmp.lt.s32.totalorder %s11, 3
    %p157 = pnand %p155, %p156
    %p158 = pneg %p157
    // Predicated region
    $region9: #{lenet5_t_forward.5} parent=5 // pred_check
      _
    $region10: #{lenet5_t_forward.5} parent=5 // pred_check_branch
      %160 = sbr.rel (%p157) target = $region12
    $region11: #{lenet5_t_forward.5} parent=5 // pred_region
      %s161 = ssub.s32 %s11, 1
      // Predicated region
      $region13: #{lenet5_t_forward.5} parent=11 // pred_check
        %p162 = pneg %p58
      $region14: #{lenet5_t_forward.5} parent=11 // pred_check_branch
        %164 = sbr.rel (%p162) target = $region16
      $region15: #{lenet5_t_forward.5} parent=11 // pred_region
        _
      $region16: #{lenet5_t_forward.5} parent=11 // pred_fallthru
        _
      // Predicated region
      $region17: #{lenet5_t_forward.5} parent=11 // pred_check
        %p165 = pneg %p79
      $region18: #{lenet5_t_forward.5} parent=11 // pred_check_branch
        %167 = sbr.rel (%p165) target = $region20
      $region19: #{lenet5_t_forward.5} parent=11 // pred_region
        _
      $region20: #{lenet5_t_forward.5} parent=11 // pred_fallthru
        _
      // Predicated region
      $region21: #{lenet5_t_forward.5} parent=11 // pred_check
        %p168 = pneg %p100
      $region22: #{lenet5_t_forward.5} parent=11 // pred_check_branch
        %170 = sbr.rel (%p168) target = $region24
      $region23: #{lenet5_t_forward.5} parent=11 // pred_region
        _
      $region24: #{lenet5_t_forward.5} parent=11 // pred_fallthru
        _
      // Predicated region
      $region25: #{lenet5_t_forward.5} parent=11 // pred_check
        %p171 = pneg %p121
      $region26: #{lenet5_t_forward.5} parent=11 // pred_check_branch
        %173 = sbr.rel (%p171) target = $region28
      $region27: #{lenet5_t_forward.5} parent=11 // pred_region
        _
      $region28: #{lenet5_t_forward.5} parent=11 // pred_fallthru
        _
    $region12: #{lenet5_t_forward.5} parent=5 // pred_fallthru
      _
    %p174 = scmp.lt.s32.totalorder %s11, 2
    // Predicated region
    $region29: #{lenet5_t_forward.5} parent=5 // pred_check
      %p175 = pneg %p174
    $region30: #{lenet5_t_forward.5} parent=5 // pred_check_branch
      %177 = sbr.rel (%p175) target = $region32
    $region31: #{lenet5_t_forward.5} parent=5 // pred_region
      // Predicated region
      $region33: #{lenet5_t_forward.5} parent=31 // pred_check
        %p178 = pneg %p31
      $region34: #{lenet5_t_forward.5} parent=31 // pred_check_branch
        %180 = sbr.rel (%p178) target = $region36
      $region35: #{lenet5_t_forward.5} parent=31 // pred_region
        %p181 = scmp.lt.s32.totalorder %s11, 1
        %s182 = scalar_select %p181, %s11, 1
        %s183 = smul.addr %s182, 56
        %s184 = smul.addr %s183, 8
        %s185 = scalar_lea.vmem %s0, %s184
      $region36: #{lenet5_t_forward.5} parent=31 // pred_fallthru
        _
    $region32: #{lenet5_t_forward.5} parent=5 // pred_fallthru
      _
    %p186 = scmp.le.s32.totalorder 1, %s11
    %p187 = scmp.lt.s32.totalorder %s11, 3
    %p188 = pnand %p186, %p187
    %p189 = pneg %p188
    // Predicated region
    $region37: #{lenet5_t_forward.5} parent=5 // pred_check
      _
    $region38: #{lenet5_t_forward.5} parent=5 // pred_check_branch
      %191 = sbr.rel (%p188) target = $region40
    $region39: #{lenet5_t_forward.5} parent=5 // pred_region
      %s192 = ssub.s32 %s11, 1
      %p193 = scmp.lt.s32.totalorder %s16, 1
      %s194 = scalar_select %p193, %s16, 1
      %s195 = smul.addr %s194, 56
      %s196 = smul.addr %s195, 8
      %s197 = scalar_lea.vmem %s0, %s196
      %p198 = pneg %p37
      %p199 = pneg %p34
      %p200 = pneg %p58
      %p201 = pneg %p55
      %p202 = pneg %p79
      %p203 = pneg %p76
      %p204 = pneg %p100
      %p205 = pneg %p97
      %p206 = pneg %p121
      %p207 = pneg %p118
      %p208 = pneg %p147
      %p209 = pneg %p144
      %p210 = scmp.lt.s32.totalorder %s16, 1
      %s211 = scalar_select %p210, %s16, 1
      %s212 = smul.addr %s211, 8
      %s213 = smul.addr %s212, 8
      %s214 = scalar_lea.vmem %s5, %s213
      %p215 = scmp.lt.s32.totalorder %s16, 1
      %s216 = scalar_select %p215, %s16, 1
      %s217 = smul.addr %s216, 56
      %s218 = smul.addr %s217, 8
      %s219 = scalar_lea.vmem %s0, %s218
      %p220 = scmp.lt.s32.totalorder %s16, 1
      %s221 = scalar_select %p220, %s16, 1
      %s222 = smul.addr %s221, 8
      %s223 = smul.addr %s222, 8
      %s224 = scalar_lea.vmem %s5, %s223
      %v225 = vld [vmem:[%s219] sm:$0xff]
      %v226 = vld [vmem:[%s219 + $0x8] sm:$0xff]
      %v227 = vld [vmem:[%s219 + $0x10] sm:$0xff]
      %v228 = vld [vmem:[%s219 + $0x18] sm:$0xff]
      %v229 = vld [vmem:[%s219 + $0x20] sm:$0xff]
      %v230 = vld [vmem:[%s219 + $0x28] sm:$0xff]
      %v231 = vld [vmem:[%s219 + $0x30] sm:$0xff]
      %v232 = vld [vmem:[%s219 + $0x38] sm:$0xff]
      %v233 = vld [vmem:[%s219 + $0x40] sm:$0xff]
      %v234 = vld [vmem:[%s219 + $0x48] sm:$0xff]
      %v235 = vld [vmem:[%s219 + $0x50] sm:$0xff]
      %v236 = vld [vmem:[%s219 + $0x58] sm:$0xff]
      %v237 = vld [vmem:[%s219 + $0x60] sm:$0xff]
      %v238 = vld [vmem:[%s219 + $0x68] sm:$0xff]
      %v239 = vld [vmem:[%s219 + $0x70] sm:$0xff]
      %v240 = vld [vmem:[%s219 + $0x78] sm:$0xff]
      %v241 = vld [vmem:[%s219 + $0x80] sm:$0xff]
      %v242 = vld [vmem:[%s219 + $0x88] sm:$0xff]
      %v243 = vld [vmem:[%s219 + $0x90] sm:$0xff]
      %v244 = vld [vmem:[%s219 + $0x98] sm:$0xff]
      %v245 = vld [vmem:[%s219 + $0xa0] sm:$0xff]
      %v246 = vld [vmem:[%s219 + $0xa8] sm:$0xff]
      %v247 = vld [vmem:[%s219 + $0xb0] sm:$0xff]
      %v248 = vld [vmem:[%s219 + $0xb8] sm:$0xff]
      %v249 = vld [vmem:[%s219 + $0xc0] sm:$0xff]
      %v250 = vld [vmem:[%s219 + $0xc8] sm:$0xff]
      %v251 = vld [vmem:[%s219 + $0xd0] sm:$0xff]
      %v252 = vld [vmem:[%s219 + $0xd8] sm:$0xff]
      %v253 = vld [vmem:[%s219 + $0xe0] sm:$0xff]
      %v254 = vld [vmem:[%s219 + $0xe8] sm:$0xff]
      %v255 = vld [vmem:[%s219 + $0xf0] sm:$0xff]
      %v256 = vld [vmem:[%s219 + $0xf8] sm:$0xff]
      %v257 = vld [vmem:[%s219 + $0x100] sm:$0xff]
      %v258 = vld [vmem:[%s219 + $0x108] sm:$0xff]
      %v259 = vld [vmem:[%s219 + $0x110] sm:$0xff]
      %v260 = vld [vmem:[%s219 + $0x118] sm:$0xff]
      %v261 = vld [vmem:[%s219 + $0x120] sm:$0xff]
      %v262 = vld [vmem:[%s219 + $0x128] sm:$0xff]
      %v263 = vld [vmem:[%s219 + $0x130] sm:$0xff]
      %v264 = vld [vmem:[%s219 + $0x138] sm:$0xff]
      %v265 = vld [vmem:[%s219 + $0x140] sm:$0xff]
      %v266 = vld [vmem:[%s219 + $0x148] sm:$0xff]
      %v267 = vld [vmem:[%s219 + $0x150] sm:$0xff]
      %v268 = vld [vmem:[%s219 + $0x158] sm:$0xff]
      %v269 = vld [vmem:[%s219 + $0x160] sm:$0xff]
      %v270 = vld [vmem:[%s219 + $0x168] sm:$0xff]
      %v271 = vld [vmem:[%s219 + $0x170] sm:$0xff]
      %v272 = vld [vmem:[%s219 + $0x178] sm:$0xff]
      %v273 = vld [vmem:[%s219 + $0x180] sm:$0xff]
      %v274 = vld [vmem:[%s219 + $0x188] sm:$0xff]
      %v275 = vld [vmem:[%s219 + $0x190] sm:$0xff]
      %v276 = vld [vmem:[%s219 + $0x198] sm:$0xff]
      %v277 = vld [vmem:[%s219 + $0x1a0] sm:$0xff]
      %v278 = vld [vmem:[%s219 + $0x1a8] sm:$0xff]
      %v279 = vld [vmem:[%s219 + $0x1b0] sm:$0xff]
      %v280 = vld [vmem:[%s219 + $0x1b8] sm:$0xff]
      %v281 = vld [vmem:[%s1] sm:$0xff]
      %v282 = vld [vmem:[%s1 + $0x8] sm:$0xff]
      %v283 = vld [vmem:[%s1 + $0x10] sm:$0xff]
      %v284 = vld [vmem:[%s1 + $0x18] sm:$0xff]
      %v285 = vld [vmem:[%s1 + $0x20] sm:$0xff]
      %v286 = vld [vmem:[%s1 + $0x28] sm:$0xff]
      %v287 = vld [vmem:[%s1 + $0x30] sm:$0xff]
      %v288 = vld [vmem:[%s1 + $0x38] sm:$0xff]
      %v289 = vld [vmem:[%s1 + $0x40] sm:$0xff]
      %v290 = vld [vmem:[%s1 + $0x48] sm:$0xff]
      %v291 = vld [vmem:[%s1 + $0x50] sm:$0xff]
      %v292 = vld [vmem:[%s1 + $0x58] sm:$0xff]
      %v293 = vld [vmem:[%s1 + $0x60] sm:$0xff]
      %v294 = vld [vmem:[%s1 + $0x68] sm:$0xff]
      %v295 = vld [vmem:[%s1 + $0x70] sm:$0xff]
      %v296 = vld [vmem:[%s1 + $0x78] sm:$0xff]
      %v297 = vld [vmem:[%s1 + $0x80] sm:$0xff]
      %v298 = vld [vmem:[%s1 + $0x88] sm:$0xff]
      %v299 = vld [vmem:[%s1 + $0x90] sm:$0xff]
      %v300 = vld [vmem:[%s1 + $0x98] sm:$0xff]
      %v301 = vld [vmem:[%s1 + $0xa0] sm:$0xff]
      %v302 = vld [vmem:[%s1 + $0xa8] sm:$0xff]
      %v303 = vld [vmem:[%s1 + $0xb0] sm:$0xff]
      %v304 = vld [vmem:[%s1 + $0xb8] sm:$0xff]
      %v305 = vld [vmem:[%s1 + $0xc0] sm:$0xff]
      %v306 = vld [vmem:[%s1 + $0xc8] sm:$0xff]
      %v307 = vld [vmem:[%s1 + $0xd0] sm:$0xff]
      %v308 = vld [vmem:[%s1 + $0xd8] sm:$0xff]
      %v309 = vld [vmem:[%s1 + $0xe0] sm:$0xff]
      %v310 = vld [vmem:[%s1 + $0xe8] sm:$0xff]
      %v311 = vld [vmem:[%s1 + $0xf0] sm:$0xff]
      %v312 = vld [vmem:[%s1 + $0xf8] sm:$0xff]
      %v313 = vld [vmem:[%s1 + $0x100] sm:$0xff]
      %v314 = vld [vmem:[%s1 + $0x108] sm:$0xff]
      %v315 = vld [vmem:[%s1 + $0x110] sm:$0xff]
      %v316 = vld [vmem:[%s1 + $0x118] sm:$0xff]
      %v317 = vld [vmem:[%s1 + $0x120] sm:$0xff]
      %v318 = vld [vmem:[%s1 + $0x128] sm:$0xff]
      %v319 = vld [vmem:[%s1 + $0x130] sm:$0xff]
      %v320 = vld [vmem:[%s1 + $0x138] sm:$0xff]
      %v321 = vld [vmem:[%s1 + $0x140] sm:$0xff]
      %v322 = vld [vmem:[%s1 + $0x148] sm:$0xff]
      %v323 = vld [vmem:[%s1 + $0x150] sm:$0xff]
      %v324 = vld [vmem:[%s1 + $0x158] sm:$0xff]
      %v325 = vld [vmem:[%s1 + $0x160] sm:$0xff]
      %v326 = vld [vmem:[%s1 + $0x168] sm:$0xff]
      %v327 = vld [vmem:[%s1 + $0x170] sm:$0xff]
      %v328 = vld [vmem:[%s1 + $0x178] sm:$0xff]
      %v329 = vld [vmem:[%s1 + $0x180] sm:$0xff]
      %v330 = vld [vmem:[%s1 + $0x188] sm:$0xff]
      %v331 = vld [vmem:[%s1 + $0x190] sm:$0xff]
      %v332 = vld [vmem:[%s1 + $0x198] sm:$0xff]
      %v333 = vld [vmem:[%s1 + $0x1a0] sm:$0xff]
      %v334 = vld [vmem:[%s1 + $0x1a8] sm:$0xff]
      %v335 = vld [vmem:[%s1 + $0x1b0] sm:$0xff]
      %v336 = vld [vmem:[%s1 + $0x1b8] sm:$0xff]
      %v337 = vld [vmem:[%s1 + $0x1c0] sm:$0xff]
      %v338 = vld [vmem:[%s1 + $0x1c8] sm:$0xff]
      %v339 = vld [vmem:[%s1 + $0x1d0] sm:$0xff]
      %v340 = vld [vmem:[%s1 + $0x1d8] sm:$0xff]
      %v341 = vld [vmem:[%s1 + $0x1e0] sm:$0xff]
      %v342 = vld [vmem:[%s1 + $0x1e8] sm:$0xff]
      %v343 = vld [vmem:[%s1 + $0x1f0] sm:$0xff]
      %v344 = vld [vmem:[%s1 + $0x1f8] sm:$0xff]
      %v345 = vld [vmem:[%s1 + $0x200] sm:$0xff]
      %v346 = vld [vmem:[%s1 + $0x208] sm:$0xff]
      %v347 = vld [vmem:[%s1 + $0x210] sm:$0xff]
      %v348 = vld [vmem:[%s1 + $0x218] sm:$0xff]
      %v349 = vld [vmem:[%s1 + $0x220] sm:$0xff]
      %v350 = vld [vmem:[%s1 + $0x228] sm:$0xff]
      %v351 = vld [vmem:[%s1 + $0x230] sm:$0xff]
      %v352 = vld [vmem:[%s1 + $0x238] sm:$0xff]
      %v353 = vld [vmem:[%s1 + $0x240] sm:$0xff]
      %v354 = vld [vmem:[%s1 + $0x248] sm:$0xff]
      %v355 = vld [vmem:[%s1 + $0x250] sm:$0xff]
      %v356 = vld [vmem:[%s1 + $0x258] sm:$0xff]
      %v357 = vld [vmem:[%s1 + $0x260] sm:$0xff]
      %v358 = vld [vmem:[%s1 + $0x268] sm:$0xff]
      %v359 = vld [vmem:[%s1 + $0x270] sm:$0xff]
      %v360 = vld [vmem:[%s1 + $0x278] sm:$0xff]
      %v361 = vld [vmem:[%s1 + $0x280] sm:$0xff]
      %v362 = vld [vmem:[%s1 + $0x288] sm:$0xff]
      %v363 = vld [vmem:[%s1 + $0x290] sm:$0xff]
      %v364 = vld [vmem:[%s1 + $0x298] sm:$0xff]
      %v365 = vld [vmem:[%s1 + $0x2a0] sm:$0xff]
      %v366 = vld [vmem:[%s1 + $0x2a8] sm:$0xff]
      %v367 = vld [vmem:[%s1 + $0x2b0] sm:$0xff]
      %v368 = vld [vmem:[%s1 + $0x2b8] sm:$0xff]
      %v369 = vld [vmem:[%s1 + $0x2c0] sm:$0xff]
      %v370 = vld [vmem:[%s1 + $0x2c8] sm:$0xff]
      %v371 = vld [vmem:[%s1 + $0x2d0] sm:$0xff]
      %v372 = vld [vmem:[%s1 + $0x2d8] sm:$0xff]
      %v373 = vld [vmem:[%s1 + $0x2e0] sm:$0xff]
      %v374 = vld [vmem:[%s1 + $0x2e8] sm:$0xff]
      %v375 = vld [vmem:[%s1 + $0x2f0] sm:$0xff]
      %v376 = vld [vmem:[%s1 + $0x2f8] sm:$0xff]
      %v377 = vld [vmem:[%s1 + $0x300] sm:$0xff]
      %v378 = vld [vmem:[%s1 + $0x308] sm:$0xff]
      %v379 = vld [vmem:[%s1 + $0x310] sm:$0xff]
      %v380 = vld [vmem:[%s1 + $0x318] sm:$0xff]
      %v381 = vld [vmem:[%s2] sm:$0x1]
      %v383 = vperm.slane %v381, 0
      %vm385 = vcmask 261120
      %v387 = vsel %vm385, %v231, 0
      %v390 = vsel %vm385, %v238, 0
      %v393 = vsel %vm385, %v245, 0
      %v396 = vsel %vm385, %v252, 0
      %v399 = vsel %vm385, %v259, 0
      %v402 = vsel %vm385, %v266, 0
      %v405 = vsel %vm385, %v273, 0
      %v408 = vsel %vm385, %v280, 0
      %410 = vmatpush.msra.mxu0 %v296
      %411 = vmatpush.msra.mxu0 %v295
      %412 = vmatpush.msra.mxu0 %v294
      %413 = vmatpush.msra.mxu0 %v293
      %414 = vmatpush.msra.mxu0 %v292
      %415 = vmatpush.msra.mxu0 %v291
      %416 = vmatpush.msra.mxu0 %v290
      %417 = vmatpush.msra.mxu0 %v289
      %418 = vmatpush.msra.mxu0 %v288
      %419 = vmatpush.msra.mxu0 %v287
      %420 = vmatpush.msra.mxu0 %v286
      %421 = vmatpush.msra.mxu0 %v285
      %422 = vmatpush.msra.mxu0 %v284
      %423 = vmatpush.msra.mxu0 %v283
      %424 = vmatpush.msra.mxu0 %v282
      %425 = vmatpush.msra.mxu0 %v281
      %426 = vmatmul.f32.gmra.mxu0 %v225
      %v427 = vpop.f32.mrf.mxu0
      %v428 = vadd.f32 %v383, %v427
      %429 = vmatmul.f32.gmra.mxu0 %v232
      %v430 = vpop.f32.mrf.mxu0
      %v431 = vadd.f32 %v383, %v430
      %432 = vmatmul.f32.gmra.mxu0 %v239
      %v433 = vpop.f32.mrf.mxu0
      %v434 = vadd.f32 %v383, %v433
      %435 = vmatmul.f32.gmra.mxu0 %v246
      %v436 = vpop.f32.mrf.mxu0
      %v437 = vadd.f32 %v383, %v436
      %438 = vmatmul.f32.gmra.mxu0 %v253
      %v439 = vpop.f32.mrf.mxu0
      %v440 = vadd.f32 %v383, %v439
      %441 = vmatmul.f32.gmra.mxu0 %v260
      %v442 = vpop.f32.mrf.mxu0
      %v443 = vadd.f32 %v383, %v442
      %444 = vmatmul.f32.gmra.mxu0 %v267
      %v445 = vpop.f32.mrf.mxu0
      %v446 = vadd.f32 %v383, %v445
      %447 = vmatmul.f32.gmra.mxu0 %v274
      %v448 = vpop.f32.mrf.mxu0
      %v449 = vadd.f32 %v383, %v448
      %450 = vdwg.mxu0
      %451 = vmatpush.msra.mxu0 %v312
      %452 = vmatpush.msra.mxu0 %v311
      %453 = vmatpush.msra.mxu0 %v310
      %454 = vmatpush.msra.mxu0 %v309
      %455 = vmatpush.msra.mxu0 %v308
      %456 = vmatpush.msra.mxu0 %v307
      %457 = vmatpush.msra.mxu0 %v306
      %458 = vmatpush.msra.mxu0 %v305
      %459 = vmatpush.msra.mxu0 %v304
      %460 = vmatpush.msra.mxu0 %v303
      %461 = vmatpush.msra.mxu0 %v302
      %462 = vmatpush.msra.mxu0 %v301
      %463 = vmatpush.msra.mxu0 %v300
      %464 = vmatpush.msra.mxu0 %v299
      %465 = vmatpush.msra.mxu0 %v298
      %466 = vmatpush.msra.mxu0 %v297
      %467 = vmatmul.f32.gmra.mxu0 %v226
      %v468 = vpop.f32.mrf.mxu0
      %v469 = vadd.f32 %v428, %v468
      %470 = vmatmul.f32.gmra.mxu0 %v233
      %v471 = vpop.f32.mrf.mxu0
      %v472 = vadd.f32 %v431, %v471
      %473 = vmatmul.f32.gmra.mxu0 %v240
      %v474 = vpop.f32.mrf.mxu0
      %v475 = vadd.f32 %v434, %v474
      %476 = vmatmul.f32.gmra.mxu0 %v247
      %v477 = vpop.f32.mrf.mxu0
      %v478 = vadd.f32 %v437, %v477
      %479 = vmatmul.f32.gmra.mxu0 %v254
      %v480 = vpop.f32.mrf.mxu0
      %v481 = vadd.f32 %v440, %v480
      %482 = vmatmul.f32.gmra.mxu0 %v261
      %v483 = vpop.f32.mrf.mxu0
      %v484 = vadd.f32 %v443, %v483
      %485 = vmatmul.f32.gmra.mxu0 %v268
      %v486 = vpop.f32.mrf.mxu0
      %v487 = vadd.f32 %v446, %v486
      %488 = vmatmul.f32.gmra.mxu0 %v275
      %v489 = vpop.f32.mrf.mxu0
      %v490 = vadd.f32 %v449, %v489
      %491 = vdwg.mxu0
      %492 = vmatpush.msra.mxu0 %v328
      %493 = vmatpush.msra.mxu0 %v327
      %494 = vmatpush.msra.mxu0 %v326
      %495 = vmatpush.msra.mxu0 %v325
      %496 = vmatpush.msra.mxu0 %v324
      %497 = vmatpush.msra.mxu0 %v323
      %498 = vmatpush.msra.mxu0 %v322
      %499 = vmatpush.msra.mxu0 %v321
      %500 = vmatpush.msra.mxu0 %v320
      %501 = vmatpush.msra.mxu0 %v319
      %502 = vmatpush.msra.mxu0 %v318
      %503 = vmatpush.msra.mxu0 %v317
      %504 = vmatpush.msra.mxu0 %v316
      %505 = vmatpush.msra.mxu0 %v315
      %506 = vmatpush.msra.mxu0 %v314
      %507 = vmatpush.msra.mxu0 %v313
      %508 = vmatmul.f32.gmra.mxu0 %v227
      %v509 = vpop.f32.mrf.mxu0
      %v510 = vadd.f32 %v469, %v509
      %511 = vmatmul.f32.gmra.mxu0 %v234
      %v512 = vpop.f32.mrf.mxu0
      %v513 = vadd.f32 %v472, %v512
      %514 = vmatmul.f32.gmra.mxu0 %v241
      %v515 = vpop.f32.mrf.mxu0
      %v516 = vadd.f32 %v475, %v515
      %517 = vmatmul.f32.gmra.mxu0 %v248
      %v518 = vpop.f32.mrf.mxu0
      %v519 = vadd.f32 %v478, %v518
      %520 = vmatmul.f32.gmra.mxu0 %v255
      %v521 = vpop.f32.mrf.mxu0
      %v522 = vadd.f32 %v481, %v521
      %523 = vmatmul.f32.gmra.mxu0 %v262
      %v524 = vpop.f32.mrf.mxu0
      %v525 = vadd.f32 %v484, %v524
      %526 = vmatmul.f32.gmra.mxu0 %v269
      %v527 = vpop.f32.mrf.mxu0
      %v528 = vadd.f32 %v487, %v527
      %529 = vmatmul.f32.gmra.mxu0 %v276
      %v530 = vpop.f32.mrf.mxu0
      %v531 = vadd.f32 %v490, %v530
      %532 = vdwg.mxu0
      %533 = vmatpush.msra.mxu0 %v344
      %534 = vmatpush.msra.mxu0 %v343
      %535 = vmatpush.msra.mxu0 %v342
      %536 = vmatpush.msra.mxu0 %v341
      %537 = vmatpush.msra.mxu0 %v340
      %538 = vmatpush.msra.mxu0 %v339
      %539 = vmatpush.msra.mxu0 %v338
      %540 = vmatpush.msra.mxu0 %v337
      %541 = vmatpush.msra.mxu0 %v336
      %542 = vmatpush.msra.mxu0 %v335
      %543 = vmatpush.msra.mxu0 %v334
      %544 = vmatpush.msra.mxu0 %v333
      %545 = vmatpush.msra.mxu0 %v332
      %546 = vmatpush.msra.mxu0 %v331
      %547 = vmatpush.msra.mxu0 %v330
      %548 = vmatpush.msra.mxu0 %v329
      %549 = vmatmul.f32.gmra.mxu0 %v228
      %v550 = vpop.f32.mrf.mxu0
      %v551 = vadd.f32 %v510, %v550
      %552 = vmatmul.f32.gmra.mxu0 %v235
      %v553 = vpop.f32.mrf.mxu0
      %v554 = vadd.f32 %v513, %v553
      %555 = vmatmul.f32.gmra.mxu0 %v242
      %v556 = vpop.f32.mrf.mxu0
      %v557 = vadd.f32 %v516, %v556
      %558 = vmatmul.f32.gmra.mxu0 %v249
      %v559 = vpop.f32.mrf.mxu0
      %v560 = vadd.f32 %v519, %v559
      %561 = vmatmul.f32.gmra.mxu0 %v256
      %v562 = vpop.f32.mrf.mxu0
      %v563 = vadd.f32 %v522, %v562
      %564 = vmatmul.f32.gmra.mxu0 %v263
      %v565 = vpop.f32.mrf.mxu0
      %v566 = vadd.f32 %v525, %v565
      %567 = vmatmul.f32.gmra.mxu0 %v270
      %v568 = vpop.f32.mrf.mxu0
      %v569 = vadd.f32 %v528, %v568
      %570 = vmatmul.f32.gmra.mxu0 %v277
      %v571 = vpop.f32.mrf.mxu0
      %v572 = vadd.f32 %v531, %v571
      %573 = vdwg.mxu0
      %574 = vmatpush.msra.mxu0 %v360
      %575 = vmatpush.msra.mxu0 %v359
      %576 = vmatpush.msra.mxu0 %v358
      %577 = vmatpush.msra.mxu0 %v357
      %578 = vmatpush.msra.mxu0 %v356
      %579 = vmatpush.msra.mxu0 %v355
      %580 = vmatpush.msra.mxu0 %v354
      %581 = vmatpush.msra.mxu0 %v353
      %582 = vmatpush.msra.mxu0 %v352
      %583 = vmatpush.msra.mxu0 %v351
      %584 = vmatpush.msra.mxu0 %v350
      %585 = vmatpush.msra.mxu0 %v349
      %586 = vmatpush.msra.mxu0 %v348
      %587 = vmatpush.msra.mxu0 %v347
      %588 = vmatpush.msra.mxu0 %v346
      %589 = vmatpush.msra.mxu0 %v345
      %590 = vmatmul.f32.gmra.mxu0 %v229
      %v591 = vpop.f32.mrf.mxu0
      %v592 = vadd.f32 %v551, %v591
      %593 = vmatmul.f32.gmra.mxu0 %v236
      %v594 = vpop.f32.mrf.mxu0
      %v595 = vadd.f32 %v554, %v594
      %596 = vmatmul.f32.gmra.mxu0 %v243
      %v597 = vpop.f32.mrf.mxu0
      %v598 = vadd.f32 %v557, %v597
      %599 = vmatmul.f32.gmra.mxu0 %v250
      %v600 = vpop.f32.mrf.mxu0
      %v601 = vadd.f32 %v560, %v600
      %602 = vmatmul.f32.gmra.mxu0 %v257
      %v603 = vpop.f32.mrf.mxu0
      %v604 = vadd.f32 %v563, %v603
      %605 = vmatmul.f32.gmra.mxu0 %v264
      %v606 = vpop.f32.mrf.mxu0
      %v607 = vadd.f32 %v566, %v606
      %608 = vmatmul.f32.gmra.mxu0 %v271
      %v609 = vpop.f32.mrf.mxu0
      %v610 = vadd.f32 %v569, %v609
      %611 = vmatmul.f32.gmra.mxu0 %v278
      %v612 = vpop.f32.mrf.mxu0
      %v613 = vadd.f32 %v572, %v612
      %614 = vdwg.mxu0
      %615 = vmatpush.msra.mxu0 %v376
      %616 = vmatpush.msra.mxu0 %v375
      %617 = vmatpush.msra.mxu0 %v374
      %618 = vmatpush.msra.mxu0 %v373
      %619 = vmatpush.msra.mxu0 %v372
      %620 = vmatpush.msra.mxu0 %v371
      %621 = vmatpush.msra.mxu0 %v370
      %622 = vmatpush.msra.mxu0 %v369
      %623 = vmatpush.msra.mxu0 %v368
      %624 = vmatpush.msra.mxu0 %v367
      %625 = vmatpush.msra.mxu0 %v366
      %626 = vmatpush.msra.mxu0 %v365
      %627 = vmatpush.msra.mxu0 %v364
      %628 = vmatpush.msra.mxu0 %v363
      %629 = vmatpush.msra.mxu0 %v362
      %630 = vmatpush.msra.mxu0 %v361
      %631 = vmatmul.f32.gmra.mxu0 %v230
      %v632 = vpop.f32.mrf.mxu0
      %v633 = vadd.f32 %v592, %v632
      %634 = vmatmul.f32.gmra.mxu0 %v237
      %v635 = vpop.f32.mrf.mxu0
      %v636 = vadd.f32 %v595, %v635
      %637 = vmatmul.f32.gmra.mxu0 %v244
      %v638 = vpop.f32.mrf.mxu0
      %v639 = vadd.f32 %v598, %v638
      %640 = vmatmul.f32.gmra.mxu0 %v251
      %v641 = vpop.f32.mrf.mxu0
      %v642 = vadd.f32 %v601, %v641
      %643 = vmatmul.f32.gmra.mxu0 %v258
      %v644 = vpop.f32.mrf.mxu0
      %v645 = vadd.f32 %v604, %v644
      %646 = vmatmul.f32.gmra.mxu0 %v265
      %v647 = vpop.f32.mrf.mxu0
      %v648 = vadd.f32 %v607, %v647
      %649 = vmatmul.f32.gmra.mxu0 %v272
      %v650 = vpop.f32.mrf.mxu0
      %v651 = vadd.f32 %v610, %v650
      %652 = vmatmul.f32.gmra.mxu0 %v279
      %v653 = vpop.f32.mrf.mxu0
      %v654 = vadd.f32 %v613, %v653
      %655 = vdwg.mxu0
      %656 = vmatpush.msra.mxu0 0.0
      %657 = vmatpush.msra.mxu0 0.0
      %658 = vmatpush.msra.mxu0 0.0
      %659 = vmatpush.msra.mxu0 0.0
      %660 = vmatpush.msra.mxu0 0.0
      %661 = vmatpush.msra.mxu0 0.0
      %662 = vmatpush.msra.mxu0 0.0
      %663 = vmatpush.msra.mxu0 0.0
      %664 = vmatpush.msra.mxu0 0.0
      %665 = vmatpush.msra.mxu0 0.0
      %666 = vmatpush.msra.mxu0 0.0
      %667 = vmatpush.msra.mxu0 0.0
      %668 = vmatpush.msra.mxu0 %v380
      %669 = vmatpush.msra.mxu0 %v379
      %670 = vmatpush.msra.mxu0 %v378
      %671 = vmatpush.msra.mxu0 %v377
      %672 = vmatmul.f32.gmra.mxu0 %v387
      %v673 = vpop.f32.mrf.mxu0
      %v674 = vadd.f32 %v633, %v673
      %675 = vmatmul.f32.gmra.mxu0 %v390
      %v676 = vpop.f32.mrf.mxu0
      %v677 = vadd.f32 %v636, %v676
      %678 = vmatmul.f32.gmra.mxu0 %v393
      %v679 = vpop.f32.mrf.mxu0
      %v680 = vadd.f32 %v639, %v679
      %681 = vmatmul.f32.gmra.mxu0 %v396
      %v682 = vpop.f32.mrf.mxu0
      %v683 = vadd.f32 %v642, %v682
      %684 = vmatmul.f32.gmra.mxu0 %v399
      %v685 = vpop.f32.mrf.mxu0
      %v686 = vadd.f32 %v645, %v685
      %687 = vmatmul.f32.gmra.mxu0 %v402
      %v688 = vpop.f32.mrf.mxu0
      %v689 = vadd.f32 %v648, %v688
      %690 = vmatmul.f32.gmra.mxu0 %v405
      %v691 = vpop.f32.mrf.mxu0
      %v692 = vadd.f32 %v651, %v691
      %693 = vmatmul.f32.gmra.mxu0 %v408
      %v694 = vpop.f32.mrf.mxu0
      %v695 = vadd.f32 %v654, %v694
      %696 = vdwg.mxu0
      %v697 = vand.u32 2147483647, %v674
      %v698 = vand.u32 2147483647, %v677
      %v699 = vand.u32 2147483647, %v680
      %v700 = vand.u32 2147483647, %v683
      %v701 = vand.u32 2147483647, %v686
      %v702 = vand.u32 2147483647, %v689
      %v703 = vand.u32 2147483647, %v692
      %v704 = vand.u32 2147483647, %v695
      %vm705 = vcmask 523264
      %v706 = vsel %vm705, %v697, 0.0
      %707 = vadd.xlane.f32.xlu0 %v706
      %v708 = vpop.xlane.xlu0 %707
      %v709 = vsel %vm705, %v698, 0.0
      %710 = vadd.xlane.f32.xlu0 %v709
      %v711 = vpop.xlane.xlu0 %710
      %v712 = vsel %vm705, %v699, 0.0
      %713 = vadd.xlane.f32.xlu0 %v712
      %v714 = vpop.xlane.xlu0 %713
      %v715 = vsel %vm705, %v700, 0.0
      %716 = vadd.xlane.f32.xlu0 %v715
      %v717 = vpop.xlane.xlu0 %716
      %v718 = vsel %vm705, %v701, 0.0
      %719 = vadd.xlane.f32.xlu0 %v718
      %v720 = vpop.xlane.xlu0 %719
      %v721 = vsel %vm705, %v702, 0.0
      %722 = vadd.xlane.f32.xlu0 %v721
      %v723 = vpop.xlane.xlu0 %722
      %v724 = vsel %vm705, %v703, 0.0
      %725 = vadd.xlane.f32.xlu0 %v724
      %v726 = vpop.xlane.xlu0 %725
      %v727 = vsel %vm705, %v704, 0.0
      %728 = vadd.xlane.f32.xlu0 %v727
      %v729 = vpop.xlane.xlu0 %728
      %v730 = vadd.f32 %v708, %v711
      %v731 = vadd.f32 %v730, %v714
      %v732 = vadd.f32 %v731, %v717
      %v733 = vadd.f32 %v732, %v720
      %v734 = vadd.f32 %v733, %v723
      %v735 = vadd.f32 %v734, %v726
      %v736 = vadd.f32 %v735, %v729
      %v737 = vrot.slane %v736, 4
      %v738 = vadd.f32 %v736, %v737
      %v739 = vrot.slane %v738, 2
      %v740 = vadd.f32 %v738, %v739
      %v741 = vrot.slane %v740, 1
      %v742 = vadd.f32 %v740, %v741
      %v743 = vmul.f32 %v742, 0.00017089843
      %vm744 = vcmp.gt.f32.partialorder %v697, %v743
      %vm745 = vcmp.gt.f32.partialorder %v698, %v743
      %vm746 = vcmp.gt.f32.partialorder %v699, %v743
      %vm747 = vcmp.gt.f32.partialorder %v700, %v743
      %vm748 = vcmp.gt.f32.partialorder %v701, %v743
      %vm749 = vcmp.gt.f32.partialorder %v702, %v743
      %vm750 = vcmp.gt.f32.partialorder %v703, %v743
      %vm751 = vcmp.gt.f32.partialorder %v704, %v743
      %v752 = vsel %vm744, 1, 0
      %v753 = vsel %vm745, 1, 0
      %v754 = vsel %vm746, 1, 0
      %v755 = vsel %vm747, 1, 0
      %v756 = vsel %vm748, 1, 0
      %v757 = vsel %vm749, 1, 0
      %v758 = vsel %vm750, 1, 0
      %v759 = vsel %vm751, 1, 0
      %v760 = vcvt.s32.f32 %v752
      %v761 = vcvt.s32.f32 %v753
      %v762 = vcvt.s32.f32 %v754
      %v763 = vcvt.s32.f32 %v755
      %v764 = vcvt.s32.f32 %v756
      %v765 = vcvt.s32.f32 %v757
      %v766 = vcvt.s32.f32 %v758
      %v767 = vcvt.s32.f32 %v759
      %v768 = vsel %vm705, %v760, 0.0
      %769 = vadd.xlane.f32.xlu0 %v768
      %v770 = vpop.xlane.xlu0 %769
      %v771 = vsel %vm705, %v761, 0.0
      %772 = vadd.xlane.f32.xlu0 %v771
      %v773 = vpop.xlane.xlu0 %772
      %v774 = vsel %vm705, %v762, 0.0
      %775 = vadd.xlane.f32.xlu0 %v774
      %v776 = vpop.xlane.xlu0 %775
      %v777 = vsel %vm705, %v763, 0.0
      %778 = vadd.xlane.f32.xlu0 %v777
      %v779 = vpop.xlane.xlu0 %778
      %v780 = vsel %vm705, %v764, 0.0
      %781 = vadd.xlane.f32.xlu0 %v780
      %v782 = vpop.xlane.xlu0 %781
      %v783 = vsel %vm705, %v765, 0.0
      %784 = vadd.xlane.f32.xlu0 %v783
      %v785 = vpop.xlane.xlu0 %784
      %v786 = vsel %vm705, %v766, 0.0
      %787 = vadd.xlane.f32.xlu0 %v786
      %v788 = vpop.xlane.xlu0 %787
      %v789 = vsel %vm705, %v767, 0.0
      %790 = vadd.xlane.f32.xlu0 %v789
      %v791 = vpop.xlane.xlu0 %790
      %v792 = vadd.f32 %v770, %v773
      %v793 = vadd.f32 %v792, %v776
      %v794 = vadd.f32 %v793, %v779
      %v795 = vadd.f32 %v794, %v782
      %v796 = vadd.f32 %v795, %v785
      %v797 = vadd.f32 %v796, %v788
      %v798 = vadd.f32 %v797, %v791
      %v799 = vrot.slane %v798, 4
      %v800 = vadd.f32 %v798, %v799
      %v801 = vrot.slane %v800, 2
      %v802 = vadd.f32 %v800, %v801
      %v803 = vrot.slane %v802, 1
      %v804 = vadd.f32 %v802, %v803
      %v805 = vmul.f32 %v697, %v760
      %v806 = vmul.f32 %v698, %v761
      %v807 = vmul.f32 %v699, %v762
      %v808 = vmul.f32 %v700, %v763
      %v809 = vmul.f32 %v701, %v764
      %v810 = vmul.f32 %v702, %v765
      %v811 = vmul.f32 %v703, %v766
      %v812 = vmul.f32 %v704, %v767
      %v813 = vsel %vm705, %v805, 0.0
      %814 = vadd.xlane.f32.xlu0 %v813
      %v815 = vpop.xlane.xlu0 %814
      %v816 = vsel %vm705, %v806, 0.0
      %817 = vadd.xlane.f32.xlu0 %v816
      %v818 = vpop.xlane.xlu0 %817
      %v819 = vsel %vm705, %v807, 0.0
      %820 = vadd.xlane.f32.xlu0 %v819
      %v821 = vpop.xlane.xlu0 %820
      %v822 = vsel %vm705, %v808, 0.0
      %823 = vadd.xlane.f32.xlu0 %v822
      %v824 = vpop.xlane.xlu0 %823
      %v825 = vsel %vm705, %v809, 0.0
      %826 = vadd.xlane.f32.xlu0 %v825
      %v827 = vpop.xlane.xlu0 %826
      %v828 = vsel %vm705, %v810, 0.0
      %829 = vadd.xlane.f32.xlu0 %v828
      %v830 = vpop.xlane.xlu0 %829
      %v831 = vsel %vm705, %v811, 0.0
      %832 = vadd.xlane.f32.xlu0 %v831
      %v833 = vpop.xlane.xlu0 %832
      %v834 = vsel %vm705, %v812, 0.0
      %835 = vadd.xlane.f32.xlu0 %v834
      %v836 = vpop.xlane.xlu0 %835
      %v837 = vadd.f32 %v815, %v818
      %v838 = vadd.f32 %v837, %v821
      %v839 = vadd.f32 %v838, %v824
      %v840 = vadd.f32 %v839, %v827
      %v841 = vadd.f32 %v840, %v830
      %v842 = vadd.f32 %v841, %v833
      %v843 = vadd.f32 %v842, %v836
      %v844 = vrot.slane %v843, 4
      %v845 = vadd.f32 %v843, %v844
      %v846 = vrot.slane %v845, 2
      %v847 = vadd.f32 %v845, %v846
      %v848 = vrot.slane %v847, 1
      %v849 = vadd.f32 %v847, %v848
      %vm850 = vcmp.gt.f32.partialorder %v804, 0.0
      %v851 = vmax.f32 %v804, 1.0
      %v852 = vrcp.pop %v851
      %v853 = vmul.f32 %v851, %v852
      %v854 = vsub.f32 1.0, %v853
      %v855 = vmul.f32 %v852, %v854
      %v856 = vadd.f32 %v852, %v855
      %vm857 = vweird.f32 %v851
      %vm858 = vweird.f32 %v852
      %vm859 = vmor %vm857, %vm858
      %v860 = vsel %vm859, %v852, %v856
      %v861 = vand.u32 2147483647, %v851
      %vm862 = vcmp.eq.f32.partialorder %v861, 8.507059e+37
      %v863 = vand.u32 %v851, 2147483648
      %v864 = vor.u32 1.1754944e-38, %v863
      %v865 = vsel %vm862, %v864, %v860
      %v866 = vmul.f32 %v849, %v865
      %v867 = vsel %vm850, %v866, 0.0
      %vm868 = vcmp.gt.f32.partialorder %v674, %v743
      %vm869 = vcmp.gt.f32.partialorder %v677, %v743
      %vm870 = vcmp.gt.f32.partialorder %v680, %v743
      %vm871 = vcmp.gt.f32.partialorder %v683, %v743
      %vm872 = vcmp.gt.f32.partialorder %v686, %v743
      %vm873 = vcmp.gt.f32.partialorder %v689, %v743
      %vm874 = vcmp.gt.f32.partialorder %v692, %v743
      %vm875 = vcmp.gt.f32.partialorder %v695, %v743
      %v876 = vsel %vm868, 1, 0
      %v877 = vsel %vm869, 1, 0
      %v878 = vsel %vm870, 1, 0
      %v879 = vsel %vm871, 1, 0
      %v880 = vsel %vm872, 1, 0
      %v881 = vsel %vm873, 1, 0
      %v882 = vsel %vm874, 1, 0
      %v883 = vsel %vm875, 1, 0
      %v884 = vcvt.s32.f32 %v876
      %v885 = vcvt.s32.f32 %v877
      %v886 = vcvt.s32.f32 %v878
      %v887 = vcvt.s32.f32 %v879
      %v888 = vcvt.s32.f32 %v880
      %v889 = vcvt.s32.f32 %v881
      %v890 = vcvt.s32.f32 %v882
      %v891 = vcvt.s32.f32 %v883
      %v892 = vsub.f32 0.0, %v743
      %vm893 = vcmp.lt.f32.partialorder %v674, %v892
      %vm894 = vcmp.lt.f32.partialorder %v677, %v892
      %vm895 = vcmp.lt.f32.partialorder %v680, %v892
      %vm896 = vcmp.lt.f32.partialorder %v683, %v892
      %vm897 = vcmp.lt.f32.partialorder %v686, %v892
      %vm898 = vcmp.lt.f32.partialorder %v689, %v892
      %vm899 = vcmp.lt.f32.partialorder %v692, %v892
      %vm900 = vcmp.lt.f32.partialorder %v695, %v892
      %v901 = vsel %vm893, 1, 0
      %v902 = vsel %vm894, 1, 0
      %v903 = vsel %vm895, 1, 0
      %v904 = vsel %vm896, 1, 0
      %v905 = vsel %vm897, 1, 0
      %v906 = vsel %vm898, 1, 0
      %v907 = vsel %vm899, 1, 0
      %v908 = vsel %vm900, 1, 0
      %v909 = vcvt.s32.f32 %v901
      %v910 = vcvt.s32.f32 %v902
      %v911 = vcvt.s32.f32 %v903
      %v912 = vcvt.s32.f32 %v904
      %v913 = vcvt.s32.f32 %v905
      %v914 = vcvt.s32.f32 %v906
      %v915 = vcvt.s32.f32 %v907
      %v916 = vcvt.s32.f32 %v908
      %v917 = vsub.f32 %v884, %v909
      %v918 = vsub.f32 %v885, %v910
      %v919 = vsub.f32 %v886, %v911
      %v920 = vsub.f32 %v887, %v912
      %v921 = vsub.f32 %v888, %v913
      %v922 = vsub.f32 %v889, %v914
      %v923 = vsub.f32 %v890, %v915
      %v924 = vsub.f32 %v891, %v916
      %v925 = vmul.f32 %v867, %v917
      %v926 = vmul.f32 %v867, %v918
      %v927 = vmul.f32 %v867, %v919
      %v928 = vmul.f32 %v867, %v920
      %v929 = vmul.f32 %v867, %v921
      %v930 = vmul.f32 %v867, %v922
      %v931 = vmul.f32 %v867, %v923
      %v932 = vmul.f32 %v867, %v924
      %v933 = vld [vmem:[%s3] sm:$0x1]
      %v935 = vperm.slane %v933, 0
      %v937 = vmul.f32 %v925, %v935
      %v938 = vmul.f32 %v926, %v935
      %v939 = vmul.f32 %v927, %v935
      %v940 = vmul.f32 %v928, %v935
      %v941 = vmul.f32 %v929, %v935
      %v942 = vmul.f32 %v930, %v935
      %v943 = vmul.f32 %v931, %v935
      %v944 = vmul.f32 %v932, %v935
      %v945 = vld [vmem:[%s4] sm:$0x1]
      %v947 = vperm.slane %v945, 0
      %v949 = vadd.f32 %v937, %v947
      %v950 = vadd.f32 %v938, %v947
      %v951 = vadd.f32 %v939, %v947
      %v952 = vadd.f32 %v940, %v947
      %v953 = vadd.f32 %v941, %v947
      %v954 = vadd.f32 %v942, %v947
      %v955 = vadd.f32 %v943, %v947
      %v956 = vadd.f32 %v944, %v947
      %957 = vst.msk [vmem:[%s224] sm:$0xff] %vm705, %v949
      %958 = vst.msk [vmem:[%s224 + $0x8] sm:$0xff] %vm705, %v950
      %959 = vst.msk [vmem:[%s224 + $0x10] sm:$0xff] %vm705, %v951
      %960 = vst.msk [vmem:[%s224 + $0x18] sm:$0xff] %vm705, %v952
      %961 = vst.msk [vmem:[%s224 + $0x20] sm:$0xff] %vm705, %v953
      %962 = vst.msk [vmem:[%s224 + $0x28] sm:$0xff] %vm705, %v954
      %963 = vst.msk [vmem:[%s224 + $0x30] sm:$0xff] %vm705, %v955
      %964 = vst.msk [vmem:[%s224 + $0x38] sm:$0xff] %vm705, %v956
      %p965 = scmp.lt.s32.totalorder %s16, 1
      %s966 = scalar_select %p965, %s16, 1
      %s967 = smul.addr %s966, 8
      %s968 = smul.addr %s967, 8
      %s969 = scalar_lea.vmem %s5, %s968
      // Predicated region
      $region41: #{lenet5_t_forward.5} parent=39 // pred_check
        %p970 = pneg %p144
      $region42: #{lenet5_t_forward.5} parent=39 // pred_check_branch
        %972 = sbr.rel (%p970) target = $region44
      $region43: #{lenet5_t_forward.5} parent=39 // pred_region
        _
      $region44: #{lenet5_t_forward.5} parent=39 // pred_fallthru
        _
    $region40: #{lenet5_t_forward.5} parent=5 // pred_fallthru
      _
    %p973 = scmp.le.s32.totalorder 2, %s11
    // Predicated region
    $region45: #{lenet5_t_forward.5} parent=5 // pred_check
      %p974 = pneg %p973
    $region46: #{lenet5_t_forward.5} parent=5 // pred_check_branch
      %976 = sbr.rel (%p974) target = $region48
    $region47: #{lenet5_t_forward.5} parent=5 // pred_region
      %s977 = ssub.s32 %s11, 2
      // Predicated region
      $region49: #{lenet5_t_forward.5} parent=47 // pred_check
        %p978 = pneg %p150
      $region50: #{lenet5_t_forward.5} parent=47 // pred_check_branch
        %980 = sbr.rel (%p978) target = $region52
      $region51: #{lenet5_t_forward.5} parent=47 // pred_region
        %p981 = scmp.lt.s32.totalorder %s17, 1
        %s982 = scalar_select %p981, %s17, 1
        %s983 = smul.addr %s982, 8
        %s984 = smul.addr %s983, 8
        %s985 = scalar_lea.vmem %s5, %s984
      $region52: #{lenet5_t_forward.5} parent=47 // pred_fallthru
        _
    $region48: #{lenet5_t_forward.5} parent=5 // pred_fallthru
      _
  $region6: #{lenet5_t_forward.5} parent=0 // loop_footer
    %s15 = sadd.s32 1, %s11
  $region7: #{lenet5_t_forward.5} parent=0 // loop_footer_branch
    %10 = sbr.rel target = $region3
  $region8: #{lenet5_t_forward.5} parent=0 // loop_exit
    _

// kernel: lenet5_t_forward.7
$region0: #{lenet5_t_forward.7}
  #allocation0 [shape = 'u32[]', space=smem, size = 0x4, offset = 0x4, fixed_abs, tag = 'smem constant byte address 0x4 - core index']
  #allocation1 [shape = 'u32[72,128]{1,0:T(1,128)}', space=vmem, size = 0x9000, scoped, tag = 'internal scratch']
  %s0 = inlined_call_operand.vmem [shape: f32[2,512], index: 0, kind: input, shape index: {}]
  %s1 = inlined_call_operand.vmem [shape: f32[512,10], index: 1, kind: input, shape index: {}]
  %s2 = inlined_call_operand.vmem [shape: f32[1,10], index: 2, kind: input, shape index: {}]
  %s3 = inlined_call_operand.hbm [shape: f32[2,10], index: 3, kind: output, shape index: {}]
  %s4 = sld [smem:[#allocation0]]
  $region22: #{lenet5_t_forward.7} parent=0
    _
  %s6 = ssub.s32 1, %s4
  %s7 = scalar_select 0, %s6, %s4
  $region1: #{lenet5_t_forward.7} parent=0
    #allocation2 [shape = 'u8[1024]{0}', space=vmem, size = 0x400, scoped, tag = 'output window, operand 0, single buffered']
    #allocation3 [shape = 's32[1]{0}', space=sflag, size = 0x4, scoped, tag = 'scoped memory for lenet5_t_forward.7']
    %8 = vsyncpa [#allocation3], 0
    // Predicated region
    $region2: #{lenet5_t_forward.7} parent=1 // pred_check
      _
    $region3: #{lenet5_t_forward.7} parent=1 // pred_check_branch
      %10 = sbr.rel (0) target = $region5
    $region4: #{lenet5_t_forward.7} parent=1 // pred_region
      _
    $region5: #{lenet5_t_forward.7} parent=1 // pred_fallthru
      _
    // Predicated region
    $region6: #{lenet5_t_forward.7} parent=1 // pred_check
      _
    $region7: #{lenet5_t_forward.7} parent=1 // pred_check_branch
      %12 = sbr.rel (0) target = $region9
    $region8: #{lenet5_t_forward.7} parent=1 // pred_region
      _
    $region9: #{lenet5_t_forward.7} parent=1 // pred_fallthru
      _
    // Predicated region
    $region10: #{lenet5_t_forward.7} parent=1 // pred_check
      _
    $region11: #{lenet5_t_forward.7} parent=1 // pred_check_branch
      %14 = sbr.rel (0) target = $region13
    $region12: #{lenet5_t_forward.7} parent=1 // pred_region
      _
    $region13: #{lenet5_t_forward.7} parent=1 // pred_fallthru
      _
    %v15 = vld [vmem:[%s0] sm:$0xff]
    %v16 = vld [vmem:[%s1] sm:$0xff]
    %v17 = vld [vmem:[%s1 + $0x8] sm:$0xff]
    %v18 = vld [vmem:[%s1 + $0x10] sm:$0xff]
    %v19 = vld [vmem:[%s1 + $0x18] sm:$0xff]
    %v20 = vld [vmem:[%s1 + $0x20] sm:$0xff]
    %v21 = vld [vmem:[%s1 + $0x28] sm:$0xff]
    %v22 = vld [vmem:[%s1 + $0x30] sm:$0xff]
    %v23 = vld [vmem:[%s1 + $0x38] sm:$0xff]
    %v24 = vld [vmem:[%s1 + $0x40] sm:$0xff]
    %v25 = vld [vmem:[%s1 + $0x48] sm:$0xff]
    %v26 = vld [vmem:[%s1 + $0x50] sm:$0xff]
    %v27 = vld [vmem:[%s1 + $0x58] sm:$0xff]
    %v28 = vld [vmem:[%s1 + $0x60] sm:$0xff]
    %v29 = vld [vmem:[%s1 + $0x68] sm:$0xff]
    %v30 = vld [vmem:[%s1 + $0x70] sm:$0xff]
    %v31 = vld [vmem:[%s1 + $0x78] sm:$0xff]
    %v32 = vld [vmem:[%s1 + $0x80] sm:$0xff]
    %v33 = vld [vmem:[%s1 + $0x88] sm:$0xff]
    %v34 = vld [vmem:[%s1 + $0x90] sm:$0xff]
    %v35 = vld [vmem:[%s1 + $0x98] sm:$0xff]
    %v36 = vld [vmem:[%s1 + $0xa0] sm:$0xff]
    %v37 = vld [vmem:[%s1 + $0xa8] sm:$0xff]
    %v38 = vld [vmem:[%s1 + $0xb0] sm:$0xff]
    %v39 = vld [vmem:[%s1 + $0xb8] sm:$0xff]
    %v40 = vld [vmem:[%s1 + $0xc0] sm:$0xff]
    %v41 = vld [vmem:[%s1 + $0xc8] sm:$0xff]
    %v42 = vld [vmem:[%s1 + $0xd0] sm:$0xff]
    %v43 = vld [vmem:[%s1 + $0xd8] sm:$0xff]
    %v44 = vld [vmem:[%s1 + $0xe0] sm:$0xff]
    %v45 = vld [vmem:[%s1 + $0xe8] sm:$0xff]
    %v46 = vld [vmem:[%s1 + $0xf0] sm:$0xff]
    %v47 = vld [vmem:[%s1 + $0xf8] sm:$0xff]
    %v48 = vld [vmem:[%s1 + $0x100] sm:$0xff]
    %v49 = vld [vmem:[%s1 + $0x108] sm:$0xff]
    %v50 = vld [vmem:[%s1 + $0x110] sm:$0xff]
    %v51 = vld [vmem:[%s1 + $0x118] sm:$0xff]
    %v52 = vld [vmem:[%s1 + $0x120] sm:$0xff]
    %v53 = vld [vmem:[%s1 + $0x128] sm:$0xff]
    %v54 = vld [vmem:[%s1 + $0x130] sm:$0xff]
    %v55 = vld [vmem:[%s1 + $0x138] sm:$0xff]
    %v56 = vld [vmem:[%s1 + $0x140] sm:$0xff]
    %v57 = vld [vmem:[%s1 + $0x148] sm:$0xff]
    %v58 = vld [vmem:[%s1 + $0x150] sm:$0xff]
    %v59 = vld [vmem:[%s1 + $0x158] sm:$0xff]
    %v60 = vld [vmem:[%s1 + $0x160] sm:$0xff]
    %v61 = vld [vmem:[%s1 + $0x168] sm:$0xff]
    %v62 = vld [vmem:[%s1 + $0x170] sm:$0xff]
    %v63 = vld [vmem:[%s1 + $0x178] sm:$0xff]
    %v64 = vld [vmem:[%s1 + $0x180] sm:$0xff]
    %v65 = vld [vmem:[%s1 + $0x188] sm:$0xff]
    %v66 = vld [vmem:[%s1 + $0x190] sm:$0xff]
    %v67 = vld [vmem:[%s1 + $0x198] sm:$0xff]
    %v68 = vld [vmem:[%s1 + $0x1a0] sm:$0xff]
    %v69 = vld [vmem:[%s1 + $0x1a8] sm:$0xff]
    %v70 = vld [vmem:[%s1 + $0x1b0] sm:$0xff]
    %v71 = vld [vmem:[%s1 + $0x1b8] sm:$0xff]
    %v72 = vld [vmem:[%s1 + $0x1c0] sm:$0xff]
    %v73 = vld [vmem:[%s1 + $0x1c8] sm:$0xff]
    %v74 = vld [vmem:[%s1 + $0x1d0] sm:$0xff]
    %v75 = vld [vmem:[%s1 + $0x1d8] sm:$0xff]
    %v76 = vld [vmem:[%s1 + $0x1e0] sm:$0xff]
    %v77 = vld [vmem:[%s1 + $0x1e8] sm:$0xff]
    %v78 = vld [vmem:[%s1 + $0x1f0] sm:$0xff]
    %v79 = vld [vmem:[%s1 + $0x1f8] sm:$0xff]
    %v80 = vld [vmem:[%s2] sm:$0x1]
    %v82 = vperm.slane %v80, 0
    %85 = vst [vmem:[#allocation1] ss:$4 sm:$0xff] %v15
    %v86 = vld.sshfl [vmem:[#allocation1] sm:$0xff pattern:$0x73625140]
    %v87 = vld.sshfl [vmem:[#allocation1 + $0x8] sm:$0xff pattern:$0x73625140]
    %v88 = vld.sshfl [vmem:[#allocation1 + $0x10] sm:$0xff pattern:$0x73625140]
    %v89 = vld.sshfl [vmem:[#allocation1 + $0x18] sm:$0xff pattern:$0x73625140]
    %94 = vmatpush.msra.mxu0 %v31
    %95 = vmatpush.msra.mxu0 %v30
    %96 = vmatpush.msra.mxu0 %v29
    %97 = vmatpush.msra.mxu0 %v28
    %98 = vmatpush.msra.mxu0 %v27
    %99 = vmatpush.msra.mxu0 %v26
    %100 = vmatpush.msra.mxu0 %v25
    %101 = vmatpush.msra.mxu0 %v24
    %102 = vmatpush.msra.mxu0 %v23
    %103 = vmatpush.msra.mxu0 %v22
    %104 = vmatpush.msra.mxu0 %v21
    %105 = vmatpush.msra.mxu0 %v20
    %106 = vmatpush.msra.mxu0 %v19
    %107 = vmatpush.msra.mxu0 %v18
    %108 = vmatpush.msra.mxu0 %v17
    %109 = vmatpush.msra.mxu0 %v16
    %110 = vmatmul.f32.gmra.mxu0 %v86
    %v111 = vpop.f32.mrf.mxu0
    %v112 = vadd.f32 %v82, %v111
    %113 = vdwg.mxu0
    %114 = vmatpush.msra.mxu0 %v47
    %115 = vmatpush.msra.mxu0 %v46
    %116 = vmatpush.msra.mxu0 %v45
    %117 = vmatpush.msra.mxu0 %v44
    %118 = vmatpush.msra.mxu0 %v43
    %119 = vmatpush.msra.mxu0 %v42
    %120 = vmatpush.msra.mxu0 %v41
    %121 = vmatpush.msra.mxu0 %v40
    %122 = vmatpush.msra.mxu0 %v39
    %123 = vmatpush.msra.mxu0 %v38
    %124 = vmatpush.msra.mxu0 %v37
    %125 = vmatpush.msra.mxu0 %v36
    %126 = vmatpush.msra.mxu0 %v35
    %127 = vmatpush.msra.mxu0 %v34
    %128 = vmatpush.msra.mxu0 %v33
    %129 = vmatpush.msra.mxu0 %v32
    %130 = vmatmul.f32.gmra.mxu0 %v87
    %v131 = vpop.f32.mrf.mxu0
    %v132 = vadd.f32 %v112, %v131
    %133 = vdwg.mxu0
    %134 = vmatpush.msra.mxu0 %v63
    %135 = vmatpush.msra.mxu0 %v62
    %136 = vmatpush.msra.mxu0 %v61
    %137 = vmatpush.msra.mxu0 %v60
    %138 = vmatpush.msra.mxu0 %v59
    %139 = vmatpush.msra.mxu0 %v58
    %140 = vmatpush.msra.mxu0 %v57
    %141 = vmatpush.msra.mxu0 %v56
    %142 = vmatpush.msra.mxu0 %v55
    %143 = vmatpush.msra.mxu0 %v54
    %144 = vmatpush.msra.mxu0 %v53
    %145 = vmatpush.msra.mxu0 %v52
    %146 = vmatpush.msra.mxu0 %v51
    %147 = vmatpush.msra.mxu0 %v50
    %148 = vmatpush.msra.mxu0 %v49
    %149 = vmatpush.msra.mxu0 %v48
    %150 = vmatmul.f32.gmra.mxu0 %v88
    %v151 = vpop.f32.mrf.mxu0
    %v152 = vadd.f32 %v132, %v151
    %153 = vdwg.mxu0
    %154 = vmatpush.msra.mxu0 %v79
    %155 = vmatpush.msra.mxu0 %v78
    %156 = vmatpush.msra.mxu0 %v77
    %157 = vmatpush.msra.mxu0 %v76
    %158 = vmatpush.msra.mxu0 %v75
    %159 = vmatpush.msra.mxu0 %v74
    %160 = vmatpush.msra.mxu0 %v73
    %161 = vmatpush.msra.mxu0 %v72
    %162 = vmatpush.msra.mxu0 %v71
    %163 = vmatpush.msra.mxu0 %v70
    %164 = vmatpush.msra.mxu0 %v69
    %165 = vmatpush.msra.mxu0 %v68
    %166 = vmatpush.msra.mxu0 %v67
    %167 = vmatpush.msra.mxu0 %v66
    %168 = vmatpush.msra.mxu0 %v65
    %169 = vmatpush.msra.mxu0 %v64
    %170 = vmatmul.f32.gmra.mxu0 %v89
    %v171 = vpop.f32.mrf.mxu0
    %v172 = vadd.f32 %v152, %v171
    %173 = vdwg.mxu0
    %v174 = vand.u32 2147483647, %v172
    %vm175 = vcmask 74752
    %v176 = vsel %vm175, %v174, 0.0
    %177 = vadd.xlane.f32.xlu0 %v176
    %v178 = vpop.xlane.xlu0 %177
    %v179 = vmul.f32 %v178, 0.07
    %vm180 = vcmp.gt.f32.partialorder %v174, %v179
    %v181 = vsel %vm180, 1, 0
    %v182 = vcvt.s32.f32 %v181
    %v183 = vsel %vm175, %v182, 0.0
    %184 = vadd.xlane.f32.xlu0 %v183
    %v185 = vpop.xlane.xlu0 %184
    %v186 = vmul.f32 %v174, %v182
    %v187 = vsel %vm175, %v186, 0.0
    %188 = vadd.xlane.f32.xlu0 %v187
    %v189 = vpop.xlane.xlu0 %188
    %vm190 = vcmp.gt.f32.partialorder %v185, 0.0
    %v191 = vmax.f32 %v185, 1.0
    %v192 = vrcp.pop %v191
    %v193 = vmul.f32 %v191, %v192
    %v194 = vsub.f32 1.0, %v193
    %v195 = vmul.f32 %v192, %v194
    %v196 = vadd.f32 %v192, %v195
    %vm197 = vweird.f32 %v191
    %vm198 = vweird.f32 %v192
    %vm199 = vmor %vm197, %vm198
    %v200 = vsel %vm199, %v192, %v196
    %v201 = vand.u32 2147483647, %v191
    %vm202 = vcmp.eq.f32.partialorder %v201, 8.507059e+37
    %v203 = vand.u32 %v191, 2147483648
    %v204 = vor.u32 1.1754944e-38, %v203
    %v205 = vsel %vm202, %v204, %v200
    %v206 = vmul.f32 %v189, %v205
    %v207 = vsel %vm190, %v206, 0.0
    %vm208 = vcmp.gt.f32.partialorder %v172, %v179
    %v209 = vsel %vm208, 1, 0
    %v210 = vcvt.s32.f32 %v209
    %v211 = vsub.f32 0.0, %v179
    %vm212 = vcmp.lt.f32.partialorder %v172, %v211
    %v213 = vsel %vm212, 1, 0
    %v214 = vcvt.s32.f32 %v213
    %v215 = vsub.f32 %v210, %v214
    %v216 = vmul.f32 %v207, %v215
    %217 = vst.msk [vmem:[#allocation2] sm:$0x3] %vm175, %v216
    // Predicated region
    $region14: #{lenet5_t_forward.7} parent=1 // pred_check
      _
    $region15: #{lenet5_t_forward.7} parent=1 // pred_check_branch
      %219 = sbr.rel (0) target = $region17
    $region16: #{lenet5_t_forward.7} parent=1 // pred_region
      %221 = vsyncadd [#allocation3], 0
      %s223 = sshll.u32 [#allocation2], 4
      %s224 = int_to_ptr.vmem [resolvable:$true] %s223
      %s225 = sshll.u32 %s3, 4
      %s226 = int_to_ptr.hbm [resolvable:$true] %s225
      %228 = dma.vmem_to_hbm [thread:$0]  %s224, 32, %s226, [#allocation3]
    $region17: #{lenet5_t_forward.7} parent=1 // pred_fallthru
      _
    // Predicated region
    $region18: #{lenet5_t_forward.7} parent=1 // pred_check
      _
    $region19: #{lenet5_t_forward.7} parent=1 // pred_check_branch
      %230 = sbr.rel (0) target = $region21
    $region20: #{lenet5_t_forward.7} parent=1 // pred_region
      %232 = dma.done [#allocation3], 32
    $region21: #{lenet5_t_forward.7} parent=1 // pred_fallthru
      _
    %233 = vsyncpa [#allocation3], 1

// kernel: lenet5_t_forward.6
$region0: #{lenet5_t_forward.6}
  #allocation0 [shape = 'u32[]', space=smem, size = 0x4, offset = 0x4, fixed_abs, tag = 'smem constant byte address 0x4 - core index']
  #allocation1 [shape = 'u32[72,128]{1,0:T(1,128)}', space=vmem, size = 0x9000, scoped, tag = 'internal scratch']
  %s0 = inlined_call_operand.vmem [shape: f32[2,1024], index: 0, kind: input, shape index: {}]
  %s1 = inlined_call_operand.vmem [shape: f32[1024,512], index: 1, kind: input, shape index: {}]
  %s2 = inlined_call_operand.vmem [shape: f32[1,512], index: 2, kind: input, shape index: {}]
  %s3 = inlined_call_operand.vmem [shape: f32[2,512], index: 3, kind: output, shape index: {}]
  %s4 = sld [smem:[#allocation0]]
  $region22: #{lenet5_t_forward.6} parent=0
    _
  %s6 = ssub.s32 1, %s4
  %s7 = scalar_select 0, %s6, %s4
  // Predicated region
  $region2: #{lenet5_t_forward.6} parent=0 // pred_check
    _
  $region3: #{lenet5_t_forward.6} parent=0 // pred_check_branch
    %9 = sbr.rel (0) target = $region5
  $region4: #{lenet5_t_forward.6} parent=0 // pred_region
    _
  $region5: #{lenet5_t_forward.6} parent=0 // pred_fallthru
    _
  // Predicated region
  $region6: #{lenet5_t_forward.6} parent=0 // pred_check
    _
  $region7: #{lenet5_t_forward.6} parent=0 // pred_check_branch
    %11 = sbr.rel (0) target = $region9
  $region8: #{lenet5_t_forward.6} parent=0 // pred_region
    _
  $region9: #{lenet5_t_forward.6} parent=0 // pred_fallthru
    _
  // Predicated region
  $region10: #{lenet5_t_forward.6} parent=0 // pred_check
    _
  $region11: #{lenet5_t_forward.6} parent=0 // pred_check_branch
    %13 = sbr.rel (0) target = $region13
  $region12: #{lenet5_t_forward.6} parent=0 // pred_region
    _
  $region13: #{lenet5_t_forward.6} parent=0 // pred_fallthru
    _
  %v14 = vld [vmem:[%s0] sm:$0xff]
  %v15 = vld [vmem:[%s0 + $0x8] sm:$0xff]
  %v16 = vld [vmem:[%s1] sm:$0xff]
  %v17 = vld [vmem:[%s1 + $0x8] sm:$0xff]
  %v18 = vld [vmem:[%s1 + $0x10] sm:$0xff]
  %v19 = vld [vmem:[%s1 + $0x18] sm:$0xff]
  %v20 = vld [vmem:[%s1 + $0x20] sm:$0xff]
  %v21 = vld [vmem:[%s1 + $0x28] sm:$0xff]
  %v22 = vld [vmem:[%s1 + $0x30] sm:$0xff]
  %v23 = vld [vmem:[%s1 + $0x38] sm:$0xff]
  %v24 = vld [vmem:[%s1 + $0x40] sm:$0xff]
  %v25 = vld [vmem:[%s1 + $0x48] sm:$0xff]
  %v26 = vld [vmem:[%s1 + $0x50] sm:$0xff]
  %v27 = vld [vmem:[%s1 + $0x58] sm:$0xff]
  %v28 = vld [vmem:[%s1 + $0x60] sm:$0xff]
  %v29 = vld [vmem:[%s1 + $0x68] sm:$0xff]
  %v30 = vld [vmem:[%s1 + $0x70] sm:$0xff]
  %v31 = vld [vmem:[%s1 + $0x78] sm:$0xff]
  %v32 = vld [vmem:[%s1 + $0x80] sm:$0xff]
  %v33 = vld [vmem:[%s1 + $0x88] sm:$0xff]
  %v34 = vld [vmem:[%s1 + $0x90] sm:$0xff]
  %v35 = vld [vmem:[%s1 + $0x98] sm:$0xff]
  %v36 = vld [vmem:[%s1 + $0xa0] sm:$0xff]
  %v37 = vld [vmem:[%s1 + $0xa8] sm:$0xff]
  %v38 = vld [vmem:[%s1 + $0xb0] sm:$0xff]
  %v39 = vld [vmem:[%s1 + $0xb8] sm:$0xff]
  %v40 = vld [vmem:[%s1 + $0xc0] sm:$0xff]
  %v41 = vld [vmem:[%s1 + $0xc8] sm:$0xff]
  %v42 = vld [vmem:[%s1 + $0xd0] sm:$0xff]
  %v43 = vld [vmem:[%s1 + $0xd8] sm:$0xff]
  %v44 = vld [vmem:[%s1 + $0xe0] sm:$0xff]
  %v45 = vld [vmem:[%s1 + $0xe8] sm:$0xff]
  %v46 = vld [vmem:[%s1 + $0xf0] sm:$0xff]
  %v47 = vld [vmem:[%s1 + $0xf8] sm:$0xff]
  %v48 = vld [vmem:[%s1 + $0x100] sm:$0xff]
  %v49 = vld [vmem:[%s1 + $0x108] sm:$0xff]
  %v50 = vld [vmem:[%s1 + $0x110] sm:$0xff]
  %v51 = vld [vmem:[%s1 + $0x118] sm:$0xff]
  %v52 = vld [vmem:[%s1 + $0x120] sm:$0xff]
  %v53 = vld [vmem:[%s1 + $0x128] sm:$0xff]
  %v54 = vld [vmem:[%s1 + $0x130] sm:$0xff]
  %v55 = vld [vmem:[%s1 + $0x138] sm:$0xff]
  %v56 = vld [vmem:[%s1 + $0x140] sm:$0xff]
  %v57 = vld [vmem:[%s1 + $0x148] sm:$0xff]
  %v58 = vld [vmem:[%s1 + $0x150] sm:$0xff]
  %v59 = vld [vmem:[%s1 + $0x158] sm:$0xff]
  %v60 = vld [vmem:[%s1 + $0x160] sm:$0xff]
  %v61 = vld [vmem:[%s1 + $0x168] sm:$0xff]
  %v62 = vld [vmem:[%s1 + $0x170] sm:$0xff]
  %v63 = vld [vmem:[%s1 + $0x178] sm:$0xff]
  %v64 = vld [vmem:[%s1 + $0x180] sm:$0xff]
  %v65 = vld [vmem:[%s1 + $0x188] sm:$0xff]
  %v66 = vld [vmem:[%s1 + $0x190] sm:$0xff]
  %v67 = vld [vmem:[%s1 + $0x198] sm:$0xff]
  %v68 = vld [vmem:[%s1 + $0x1a0] sm:$0xff]
  %v69 = vld [vmem:[%s1 + $0x1a8] sm:$0xff]
  %v70 = vld [vmem:[%s1 + $0x1b0] sm:$0xff]
  %v71 = vld [vmem:[%s1 + $0x1b8] sm:$0xff]
  %v72 = vld [vmem:[%s1 + $0x1c0] sm:$0xff]
  %v73 = vld [vmem:[%s1 + $0x1c8] sm:$0xff]
  %v74 = vld [vmem:[%s1 + $0x1d0] sm:$0xff]
  %v75 = vld [vmem:[%s1 + $0x1d8] sm:$0xff]
  %v76 = vld [vmem:[%s1 + $0x1e0] sm:$0xff]
  %v77 = vld [vmem:[%s1 + $0x1e8] sm:$0xff]
  %v78 = vld [vmem:[%s1 + $0x1f0] sm:$0xff]
  %v79 = vld [vmem:[%s1 + $0x1f8] sm:$0xff]
  %v80 = vld [vmem:[%s1 + $0x200] sm:$0xff]
  %v81 = vld [vmem:[%s1 + $0x208] sm:$0xff]
  %v82 = vld [vmem:[%s1 + $0x210] sm:$0xff]
  %v83 = vld [vmem:[%s1 + $0x218] sm:$0xff]
  %v84 = vld [vmem:[%s1 + $0x220] sm:$0xff]
  %v85 = vld [vmem:[%s1 + $0x228] sm:$0xff]
  %v86 = vld [vmem:[%s1 + $0x230] sm:$0xff]
  %v87 = vld [vmem:[%s1 + $0x238] sm:$0xff]
  %v88 = vld [vmem:[%s1 + $0x240] sm:$0xff]
  %v89 = vld [vmem:[%s1 + $0x248] sm:$0xff]
  %v90 = vld [vmem:[%s1 + $0x250] sm:$0xff]
  %v91 = vld [vmem:[%s1 + $0x258] sm:$0xff]
  %v92 = vld [vmem:[%s1 + $0x260] sm:$0xff]
  %v93 = vld [vmem:[%s1 + $0x268] sm:$0xff]
  %v94 = vld [vmem:[%s1 + $0x270] sm:$0xff]
  %v95 = vld [vmem:[%s1 + $0x278] sm:$0xff]
  %v96 = vld [vmem:[%s1 + $0x280] sm:$0xff]
  %v97 = vld [vmem:[%s1 + $0x288] sm:$0xff]
  %v98 = vld [vmem:[%s1 + $0x290] sm:$0xff]
  %v99 = vld [vmem:[%s1 + $0x298] sm:$0xff]
  %v100 = vld [vmem:[%s1 + $0x2a0] sm:$0xff]
  %v101 = vld [vmem:[%s1 + $0x2a8] sm:$0xff]
  %v102 = vld [vmem:[%s1 + $0x2b0] sm:$0xff]
  %v103 = vld [vmem:[%s1 + $0x2b8] sm:$0xff]
  %v104 = vld [vmem:[%s1 + $0x2c0] sm:$0xff]
  %v105 = vld [vmem:[%s1 + $0x2c8] sm:$0xff]
  %v106 = vld [vmem:[%s1 + $0x2d0] sm:$0xff]
  %v107 = vld [vmem:[%s1 + $0x2d8] sm:$0xff]
  %v108 = vld [vmem:[%s1 + $0x2e0] sm:$0xff]
  %v109 = vld [vmem:[%s1 + $0x2e8] sm:$0xff]
  %v110 = vld [vmem:[%s1 + $0x2f0] sm:$0xff]
  %v111 = vld [vmem:[%s1 + $0x2f8] sm:$0xff]
  %v112 = vld [vmem:[%s1 + $0x300] sm:$0xff]
  %v113 = vld [vmem:[%s1 + $0x308] sm:$0xff]
  %v114 = vld [vmem:[%s1 + $0x310] sm:$0xff]
  %v115 = vld [vmem:[%s1 + $0x318] sm:$0xff]
  %v116 = vld [vmem:[%s1 + $0x320] sm:$0xff]
  %v117 = vld [vmem:[%s1 + $0x328] sm:$0xff]
  %v118 = vld [vmem:[%s1 + $0x330] sm:$0xff]
  %v119 = vld [vmem:[%s1 + $0x338] sm:$0xff]
  %v120 = vld [vmem:[%s1 + $0x340] sm:$0xff]
  %v121 = vld [vmem:[%s1 + $0x348] sm:$0xff]
  %v122 = vld [vmem:[%s1 + $0x350] sm:$0xff]
  %v123 = vld [vmem:[%s1 + $0x358] sm:$0xff]
  %v124 = vld [vmem:[%s1 + $0x360] sm:$0xff]
  %v125 = vld [vmem:[%s1 + $0x368] sm:$0xff]
  %v126 = vld [vmem:[%s1 + $0x370] sm:$0xff]
  %v127 = vld [vmem:[%s1 + $0x378] sm:$0xff]
  %v128 = vld [vmem:[%s1 + $0x380] sm:$0xff]
  %v129 = vld [vmem:[%s1 + $0x388] sm:$0xff]
  %v130 = vld [vmem:[%s1 + $0x390] sm:$0xff]
  %v131 = vld [vmem:[%s1 + $0x398] sm:$0xff]
  %v132 = vld [vmem:[%s1 + $0x3a0] sm:$0xff]
  %v133 = vld [vmem:[%s1 + $0x3a8] sm:$0xff]
  %v134 = vld [vmem:[%s1 + $0x3b0] sm:$0xff]
  %v135 = vld [vmem:[%s1 + $0x3b8] sm:$0xff]
  %v136 = vld [vmem:[%s1 + $0x3c0] sm:$0xff]
  %v137 = vld [vmem:[%s1 + $0x3c8] sm:$0xff]
  %v138 = vld [vmem:[%s1 + $0x3d0] sm:$0xff]
  %v139 = vld [vmem:[%s1 + $0x3d8] sm:$0xff]
  %v140 = vld [vmem:[%s1 + $0x3e0] sm:$0xff]
  %v141 = vld [vmem:[%s1 + $0x3e8] sm:$0xff]
  %v142 = vld [vmem:[%s1 + $0x3f0] sm:$0xff]
  %v143 = vld [vmem:[%s1 + $0x3f8] sm:$0xff]
  %v144 = vld [vmem:[%s1 + $0x400] sm:$0xff]
  %v145 = vld [vmem:[%s1 + $0x408] sm:$0xff]
  %v146 = vld [vmem:[%s1 + $0x410] sm:$0xff]
  %v147 = vld [vmem:[%s1 + $0x418] sm:$0xff]
  %v148 = vld [vmem:[%s1 + $0x420] sm:$0xff]
  %v149 = vld [vmem:[%s1 + $0x428] sm:$0xff]
  %v150 = vld [vmem:[%s1 + $0x430] sm:$0xff]
  %v151 = vld [vmem:[%s1 + $0x438] sm:$0xff]
  %v152 = vld [vmem:[%s1 + $0x440] sm:$0xff]
  %v153 = vld [vmem:[%s1 + $0x448] sm:$0xff]
  %v154 = vld [vmem:[%s1 + $0x450] sm:$0xff]
  %v155 = vld [vmem:[%s1 + $0x458] sm:$0xff]
  %v156 = vld [vmem:[%s1 + $0x460] sm:$0xff]
  %v157 = vld [vmem:[%s1 + $0x468] sm:$0xff]
  %v158 = vld [vmem:[%s1 + $0x470] sm:$0xff]
  %v159 = vld [vmem:[%s1 + $0x478] sm:$0xff]
  %v160 = vld [vmem:[%s1 + $0x480] sm:$0xff]
  %v161 = vld [vmem:[%s1 + $0x488] sm:$0xff]
  %v162 = vld [vmem:[%s1 + $0x490] sm:$0xff]
  %v163 = vld [vmem:[%s1 + $0x498] sm:$0xff]
  %v164 = vld [vmem:[%s1 + $0x4a0] sm:$0xff]
  %v165 = vld [vmem:[%s1 + $0x4a8] sm:$0xff]
  %v166 = vld [vmem:[%s1 + $0x4b0] sm:$0xff]
  %v167 = vld [vmem:[%s1 + $0x4b8] sm:$0xff]
  %v168 = vld [vmem:[%s1 + $0x4c0] sm:$0xff]
  %v169 = vld [vmem:[%s1 + $0x4c8] sm:$0xff]
  %v170 = vld [vmem:[%s1 + $0x4d0] sm:$0xff]
  %v171 = vld [vmem:[%s1 + $0x4d8] sm:$0xff]
  %v172 = vld [vmem:[%s1 + $0x4e0] sm:$0xff]
  %v173 = vld [vmem:[%s1 + $0x4e8] sm:$0xff]
  %v174 = vld [vmem:[%s1 + $0x4f0] sm:$0xff]
  %v175 = vld [vmem:[%s1 + $0x4f8] sm:$0xff]
  %v176 = vld [vmem:[%s1 + $0x500] sm:$0xff]
  %v177 = vld [vmem:[%s1 + $0x508] sm:$0xff]
  %v178 = vld [vmem:[%s1 + $0x510] sm:$0xff]
  %v179 = vld [vmem:[%s1 + $0x518] sm:$0xff]
  %v180 = vld [vmem:[%s1 + $0x520] sm:$0xff]
  %v181 = vld [vmem:[%s1 + $0x528] sm:$0xff]
  %v182 = vld [vmem:[%s1 + $0x530] sm:$0xff]
  %v183 = vld [vmem:[%s1 + $0x538] sm:$0xff]
  %v184 = vld [vmem:[%s1 + $0x540] sm:$0xff]
  %v185 = vld [vmem:[%s1 + $0x548] sm:$0xff]
  %v186 = vld [vmem:[%s1 + $0x550] sm:$0xff]
  %v187 = vld [vmem:[%s1 + $0x558] sm:$0xff]
  %v188 = vld [vmem:[%s1 + $0x560] sm:$0xff]
  %v189 = vld [vmem:[%s1 + $0x568] sm:$0xff]
  %v190 = vld [vmem:[%s1 + $0x570] sm:$0xff]
  %v191 = vld [vmem:[%s1 + $0x578] sm:$0xff]
  %v192 = vld [vmem:[%s1 + $0x580] sm:$0xff]
  %v193 = vld [vmem:[%s1 + $0x588] sm:$0xff]
  %v194 = vld [vmem:[%s1 + $0x590] sm:$0xff]
  %v195 = vld [vmem:[%s1 + $0x598] sm:$0xff]
  %v196 = vld [vmem:[%s1 + $0x5a0] sm:$0xff]
  %v197 = vld [vmem:[%s1 + $0x5a8] sm:$0xff]
  %v198 = vld [vmem:[%s1 + $0x5b0] sm:$0xff]
  %v199 = vld [vmem:[%s1 + $0x5b8] sm:$0xff]
  %v200 = vld [vmem:[%s1 + $0x5c0] sm:$0xff]
  %v201 = vld [vmem:[%s1 + $0x5c8] sm:$0xff]
  %v202 = vld [vmem:[%s1 + $0x5d0] sm:$0xff]
  %v203 = vld [vmem:[%s1 + $0x5d8] sm:$0xff]
  %v204 = vld [vmem:[%s1 + $0x5e0] sm:$0xff]
  %v205 = vld [vmem:[%s1 + $0x5e8] sm:$0xff]
  %v206 = vld [vmem:[%s1 + $0x5f0] sm:$0xff]
  %v207 = vld [vmem:[%s1 + $0x5f8] sm:$0xff]
  %v208 = vld [vmem:[%s1 + $0x600] sm:$0xff]
  %v209 = vld [vmem:[%s1 + $0x608] sm:$0xff]
  %v210 = vld [vmem:[%s1 + $0x610] sm:$0xff]
  %v211 = vld [vmem:[%s1 + $0x618] sm:$0xff]
  %v212 = vld [vmem:[%s1 + $0x620] sm:$0xff]
  %v213 = vld [vmem:[%s1 + $0x628] sm:$0xff]
  %v214 = vld [vmem:[%s1 + $0x630] sm:$0xff]
  %v215 = vld [vmem:[%s1 + $0x638] sm:$0xff]
  %v216 = vld [vmem:[%s1 + $0x640] sm:$0xff]
  %v217 = vld [vmem:[%s1 + $0x648] sm:$0xff]
  %v218 = vld [vmem:[%s1 + $0x650] sm:$0xff]
  %v219 = vld [vmem:[%s1 + $0x658] sm:$0xff]
  %v220 = vld [vmem:[%s1 + $0x660] sm:$0xff]
  %v221 = vld [vmem:[%s1 + $0x668] sm:$0xff]
  %v222 = vld [vmem:[%s1 + $0x670] sm:$0xff]
  %v223 = vld [vmem:[%s1 + $0x678] sm:$0xff]
  %v224 = vld [vmem:[%s1 + $0x680] sm:$0xff]
  %v225 = vld [vmem:[%s1 + $0x688] sm:$0xff]
  %v226 = vld [vmem:[%s1 + $0x690] sm:$0xff]
  %v227 = vld [vmem:[%s1 + $0x698] sm:$0xff]
  %v228 = vld [vmem:[%s1 + $0x6a0] sm:$0xff]
  %v229 = vld [vmem:[%s1 + $0x6a8] sm:$0xff]
  %v230 = vld [vmem:[%s1 + $0x6b0] sm:$0xff]
  %v231 = vld [vmem:[%s1 + $0x6b8] sm:$0xff]
  %v232 = vld [vmem:[%s1 + $0x6c0] sm:$0xff]
  %v233 = vld [vmem:[%s1 + $0x6c8] sm:$0xff]
  %v234 = vld [vmem:[%s1 + $0x6d0] sm:$0xff]
  %v235 = vld [vmem:[%s1 + $0x6d8] sm:$0xff]
  %v236 = vld [vmem:[%s1 + $0x6e0] sm:$0xff]
  %v237 = vld [vmem:[%s1 + $0x6e8] sm:$0xff]
  %v238 = vld [vmem:[%s1 + $0x6f0] sm:$0xff]
  %v239 = vld [vmem:[%s1 + $0x6f8] sm:$0xff]
  %v240 = vld [vmem:[%s1 + $0x700] sm:$0xff]
  %v241 = vld [vmem:[%s1 + $0x708] sm:$0xff]
  %v242 = vld [vmem:[%s1 + $0x710] sm:$0xff]
  %v243 = vld [vmem:[%s1 + $0x718] sm:$0xff]
  %v244 = vld [vmem:[%s1 + $0x720] sm:$0xff]
  %v245 = vld [vmem:[%s1 + $0x728] sm:$0xff]
  %v246 = vld [vmem:[%s1 + $0x730] sm:$0xff]
  %v247 = vld [vmem:[%s1 + $0x738] sm:$0xff]
  %v248 = vld [vmem:[%s1 + $0x740] sm:$0xff]
  %v249 = vld [vmem:[%s1 + $0x748] sm:$0xff]
  %v250 = vld [vmem:[%s1 + $0x750] sm:$0xff]
  %v251 = vld [vmem:[%s1 + $0x758] sm:$0xff]
  %v252 = vld [vmem:[%s1 + $0x760] sm:$0xff]
  %v253 = vld [vmem:[%s1 + $0x768] sm:$0xff]
  %v254 = vld [vmem:[%s1 + $0x770] sm:$0xff]
  %v255 = vld [vmem:[%s1 + $0x778] sm:$0xff]
  %v256 = vld [vmem:[%s1 + $0x780] sm:$0xff]
  %v257 = vld [vmem:[%s1 + $0x788] sm:$0xff]
  %v258 = vld [vmem:[%s1 + $0x790] sm:$0xff]
  %v259 = vld [vmem:[%s1 + $0x798] sm:$0xff]
  %v260 = vld [vmem:[%s1 + $0x7a0] sm:$0xff]
  %v261 = vld [vmem:[%s1 + $0x7a8] sm:$0xff]
  %v262 = vld [vmem:[%s1 + $0x7b0] sm:$0xff]
  %v263 = vld [vmem:[%s1 + $0x7b8] sm:$0xff]
  %v264 = vld [vmem:[%s1 + $0x7c0] sm:$0xff]
  %v265 = vld [vmem:[%s1 + $0x7c8] sm:$0xff]
  %v266 = vld [vmem:[%s1 + $0x7d0] sm:$0xff]
  %v267 = vld [vmem:[%s1 + $0x7d8] sm:$0xff]
  %v268 = vld [vmem:[%s1 + $0x7e0] sm:$0xff]
  %v269 = vld [vmem:[%s1 + $0x7e8] sm:$0xff]
  %v270 = vld [vmem:[%s1 + $0x7f0] sm:$0xff]
  %v271 = vld [vmem:[%s1 + $0x7f8] sm:$0xff]
  %v272 = vld [vmem:[%s1 + $0x800] sm:$0xff]
  %v273 = vld [vmem:[%s1 + $0x808] sm:$0xff]
  %v274 = vld [vmem:[%s1 + $0x810] sm:$0xff]
  %v275 = vld [vmem:[%s1 + $0x818] sm:$0xff]
  %v276 = vld [vmem:[%s1 + $0x820] sm:$0xff]
  %v277 = vld [vmem:[%s1 + $0x828] sm:$0xff]
  %v278 = vld [vmem:[%s1 + $0x830] sm:$0xff]
  %v279 = vld [vmem:[%s1 + $0x838] sm:$0xff]
  %v280 = vld [vmem:[%s1 + $0x840] sm:$0xff]
  %v281 = vld [vmem:[%s1 + $0x848] sm:$0xff]
  %v282 = vld [vmem:[%s1 + $0x850] sm:$0xff]
  %v283 = vld [vmem:[%s1 + $0x858] sm:$0xff]
  %v284 = vld [vmem:[%s1 + $0x860] sm:$0xff]
  %v285 = vld [vmem:[%s1 + $0x868] sm:$0xff]
  %v286 = vld [vmem:[%s1 + $0x870] sm:$0xff]
  %v287 = vld [vmem:[%s1 + $0x878] sm:$0xff]
  %v288 = vld [vmem:[%s1 + $0x880] sm:$0xff]
  %v289 = vld [vmem:[%s1 + $0x888] sm:$0xff]
  %v290 = vld [vmem:[%s1 + $0x890] sm:$0xff]
  %v291 = vld [vmem:[%s1 + $0x898] sm:$0xff]
  %v292 = vld [vmem:[%s1 + $0x8a0] sm:$0xff]
  %v293 = vld [vmem:[%s1 + $0x8a8] sm:$0xff]
  %v294 = vld [vmem:[%s1 + $0x8b0] sm:$0xff]
  %v295 = vld [vmem:[%s1 + $0x8b8] sm:$0xff]
  %v296 = vld [vmem:[%s1 + $0x8c0] sm:$0xff]
  %v297 = vld [vmem:[%s1 + $0x8c8] sm:$0xff]
  %v298 = vld [vmem:[%s1 + $0x8d0] sm:$0xff]
  %v299 = vld [vmem:[%s1 + $0x8d8] sm:$0xff]
  %v300 = vld [vmem:[%s1 + $0x8e0] sm:$0xff]
  %v301 = vld [vmem:[%s1 + $0x8e8] sm:$0xff]
  %v302 = vld [vmem:[%s1 + $0x8f0] sm:$0xff]
  %v303 = vld [vmem:[%s1 + $0x8f8] sm:$0xff]
  %v304 = vld [vmem:[%s1 + $0x900] sm:$0xff]
  %v305 = vld [vmem:[%s1 + $0x908] sm:$0xff]
  %v306 = vld [vmem:[%s1 + $0x910] sm:$0xff]
  %v307 = vld [vmem:[%s1 + $0x918] sm:$0xff]
  %v308 = vld [vmem:[%s1 + $0x920] sm:$0xff]
  %v309 = vld [vmem:[%s1 + $0x928] sm:$0xff]
  %v310 = vld [vmem:[%s1 + $0x930] sm:$0xff]
  %v311 = vld [vmem:[%s1 + $0x938] sm:$0xff]
  %v312 = vld [vmem:[%s1 + $0x940] sm:$0xff]
  %v313 = vld [vmem:[%s1 + $0x948] sm:$0xff]
  %v314 = vld [vmem:[%s1 + $0x950] sm:$0xff]
  %v315 = vld [vmem:[%s1 + $0x958] sm:$0xff]
  %v316 = vld [vmem:[%s1 + $0x960] sm:$0xff]
  %v317 = vld [vmem:[%s1 + $0x968] sm:$0xff]
  %v318 = vld [vmem:[%s1 + $0x970] sm:$0xff]
  %v319 = vld [vmem:[%s1 + $0x978] sm:$0xff]
  %v320 = vld [vmem:[%s1 + $0x980] sm:$0xff]
  %v321 = vld [vmem:[%s1 + $0x988] sm:$0xff]
  %v322 = vld [vmem:[%s1 + $0x990] sm:$0xff]
  %v323 = vld [vmem:[%s1 + $0x998] sm:$0xff]
  %v324 = vld [vmem:[%s1 + $0x9a0] sm:$0xff]
  %v325 = vld [vmem:[%s1 + $0x9a8] sm:$0xff]
  %v326 = vld [vmem:[%s1 + $0x9b0] sm:$0xff]
  %v327 = vld [vmem:[%s1 + $0x9b8] sm:$0xff]
  %v328 = vld [vmem:[%s1 + $0x9c0] sm:$0xff]
  %v329 = vld [vmem:[%s1 + $0x9c8] sm:$0xff]
  %v330 = vld [vmem:[%s1 + $0x9d0] sm:$0xff]
  %v331 = vld [vmem:[%s1 + $0x9d8] sm:$0xff]
  %v332 = vld [vmem:[%s1 + $0x9e0] sm:$0xff]
  %v333 = vld [vmem:[%s1 + $0x9e8] sm:$0xff]
  %v334 = vld [vmem:[%s1 + $0x9f0] sm:$0xff]
  %v335 = vld [vmem:[%s1 + $0x9f8] sm:$0xff]
  %v336 = vld [vmem:[%s1 + $0xa00] sm:$0xff]
  %v337 = vld [vmem:[%s1 + $0xa08] sm:$0xff]
  %v338 = vld [vmem:[%s1 + $0xa10] sm:$0xff]
  %v339 = vld [vmem:[%s1 + $0xa18] sm:$0xff]
  %v340 = vld [vmem:[%s1 + $0xa20] sm:$0xff]
  %v341 = vld [vmem:[%s1 + $0xa28] sm:$0xff]
  %v342 = vld [vmem:[%s1 + $0xa30] sm:$0xff]
  %v343 = vld [vmem:[%s1 + $0xa38] sm:$0xff]
  %v344 = vld [vmem:[%s1 + $0xa40] sm:$0xff]
  %v345 = vld [vmem:[%s1 + $0xa48] sm:$0xff]
  %v346 = vld [vmem:[%s1 + $0xa50] sm:$0xff]
  %v347 = vld [vmem:[%s1 + $0xa58] sm:$0xff]
  %v348 = vld [vmem:[%s1 + $0xa60] sm:$0xff]
  %v349 = vld [vmem:[%s1 + $0xa68] sm:$0xff]
  %v350 = vld [vmem:[%s1 + $0xa70] sm:$0xff]
  %v351 = vld [vmem:[%s1 + $0xa78] sm:$0xff]
  %v352 = vld [vmem:[%s1 + $0xa80] sm:$0xff]
  %v353 = vld [vmem:[%s1 + $0xa88] sm:$0xff]
  %v354 = vld [vmem:[%s1 + $0xa90] sm:$0xff]
  %v355 = vld [vmem:[%s1 + $0xa98] sm:$0xff]
  %v356 = vld [vmem:[%s1 + $0xaa0] sm:$0xff]
  %v357 = vld [vmem:[%s1 + $0xaa8] sm:$0xff]
  %v358 = vld [vmem:[%s1 + $0xab0] sm:$0xff]
  %v359 = vld [vmem:[%s1 + $0xab8] sm:$0xff]
  %v360 = vld [vmem:[%s1 + $0xac0] sm:$0xff]
  %v361 = vld [vmem:[%s1 + $0xac8] sm:$0xff]
  %v362 = vld [vmem:[%s1 + $0xad0] sm:$0xff]
  %v363 = vld [vmem:[%s1 + $0xad8] sm:$0xff]
  %v364 = vld [vmem:[%s1 + $0xae0] sm:$0xff]
  %v365 = vld [vmem:[%s1 + $0xae8] sm:$0xff]
  %v366 = vld [vmem:[%s1 + $0xaf0] sm:$0xff]
  %v367 = vld [vmem:[%s1 + $0xaf8] sm:$0xff]
  %v368 = vld [vmem:[%s1 + $0xb00] sm:$0xff]
  %v369 = vld [vmem:[%s1 + $0xb08] sm:$0xff]
  %v370 = vld [vmem:[%s1 + $0xb10] sm:$0xff]
  %v371 = vld [vmem:[%s1 + $0xb18] sm:$0xff]
  %v372 = vld [vmem:[%s1 + $0xb20] sm:$0xff]
  %v373 = vld [vmem:[%s1 + $0xb28] sm:$0xff]
  %v374 = vld [vmem:[%s1 + $0xb30] sm:$0xff]
  %v375 = vld [vmem:[%s1 + $0xb38] sm:$0xff]
  %v376 = vld [vmem:[%s1 + $0xb40] sm:$0xff]
  %v377 = vld [vmem:[%s1 + $0xb48] sm:$0xff]
  %v378 = vld [vmem:[%s1 + $0xb50] sm:$0xff]
  %v379 = vld [vmem:[%s1 + $0xb58] sm:$0xff]
  %v380 = vld [vmem:[%s1 + $0xb60] sm:$0xff]
  %v381 = vld [vmem:[%s1 + $0xb68] sm:$0xff]
  %v382 = vld [vmem:[%s1 + $0xb70] sm:$0xff]
  %v383 = vld [vmem:[%s1 + $0xb78] sm:$0xff]
  %v384 = vld [vmem:[%s1 + $0xb80] sm:$0xff]
  %v385 = vld [vmem:[%s1 + $0xb88] sm:$0xff]
  %v386 = vld [vmem:[%s1 + $0xb90] sm:$0xff]
  %v387 = vld [vmem:[%s1 + $0xb98] sm:$0xff]
  %v388 = vld [vmem:[%s1 + $0xba0] sm:$0xff]
  %v389 = vld [vmem:[%s1 + $0xba8] sm:$0xff]
  %v390 = vld [vmem:[%s1 + $0xbb0] sm:$0xff]
  %v391 = vld [vmem:[%s1 + $0xbb8] sm:$0xff]
  %v392 = vld [vmem:[%s1 + $0xbc0] sm:$0xff]
  %v393 = vld [vmem:[%s1 + $0xbc8] sm:$0xff]
  %v394 = vld [vmem:[%s1 + $0xbd0] sm:$0xff]
  %v395 = vld [vmem:[%s1 + $0xbd8] sm:$0xff]
  %v396 = vld [vmem:[%s1 + $0xbe0] sm:$0xff]
  %v397 = vld [vmem:[%s1 + $0xbe8] sm:$0xff]
  %v398 = vld [vmem:[%s1 + $0xbf0] sm:$0xff]
  %v399 = vld [vmem:[%s1 + $0xbf8] sm:$0xff]
  %v400 = vld [vmem:[%s1 + $0xc00] sm:$0xff]
  %v401 = vld [vmem:[%s1 + $0xc08] sm:$0xff]
  %v402 = vld [vmem:[%s1 + $0xc10] sm:$0xff]
  %v403 = vld [vmem:[%s1 + $0xc18] sm:$0xff]
  %v404 = vld [vmem:[%s1 + $0xc20] sm:$0xff]
  %v405 = vld [vmem:[%s1 + $0xc28] sm:$0xff]
  %v406 = vld [vmem:[%s1 + $0xc30] sm:$0xff]
  %v407 = vld [vmem:[%s1 + $0xc38] sm:$0xff]
  %v408 = vld [vmem:[%s1 + $0xc40] sm:$0xff]
  %v409 = vld [vmem:[%s1 + $0xc48] sm:$0xff]
  %v410 = vld [vmem:[%s1 + $0xc50] sm:$0xff]
  %v411 = vld [vmem:[%s1 + $0xc58] sm:$0xff]
  %v412 = vld [vmem:[%s1 + $0xc60] sm:$0xff]
  %v413 = vld [vmem:[%s1 + $0xc68] sm:$0xff]
  %v414 = vld [vmem:[%s1 + $0xc70] sm:$0xff]
  %v415 = vld [vmem:[%s1 + $0xc78] sm:$0xff]
  %v416 = vld [vmem:[%s1 + $0xc80] sm:$0xff]
  %v417 = vld [vmem:[%s1 + $0xc88] sm:$0xff]
  %v418 = vld [vmem:[%s1 + $0xc90] sm:$0xff]
  %v419 = vld [vmem:[%s1 + $0xc98] sm:$0xff]
  %v420 = vld [vmem:[%s1 + $0xca0] sm:$0xff]
  %v421 = vld [vmem:[%s1 + $0xca8] sm:$0xff]
  %v422 = vld [vmem:[%s1 + $0xcb0] sm:$0xff]
  %v423 = vld [vmem:[%s1 + $0xcb8] sm:$0xff]
  %v424 = vld [vmem:[%s1 + $0xcc0] sm:$0xff]
  %v425 = vld [vmem:[%s1 + $0xcc8] sm:$0xff]
  %v426 = vld [vmem:[%s1 + $0xcd0] sm:$0xff]
  %v427 = vld [vmem:[%s1 + $0xcd8] sm:$0xff]
  %v428 = vld [vmem:[%s1 + $0xce0] sm:$0xff]
  %v429 = vld [vmem:[%s1 + $0xce8] sm:$0xff]
  %v430 = vld [vmem:[%s1 + $0xcf0] sm:$0xff]
  %v431 = vld [vmem:[%s1 + $0xcf8] sm:$0xff]
  %v432 = vld [vmem:[%s1 + $0xd00] sm:$0xff]
  %v433 = vld [vmem:[%s1 + $0xd08] sm:$0xff]
  %v434 = vld [vmem:[%s1 + $0xd10] sm:$0xff]
  %v435 = vld [vmem:[%s1 + $0xd18] sm:$0xff]
  %v436 = vld [vmem:[%s1 + $0xd20] sm:$0xff]
  %v437 = vld [vmem:[%s1 + $0xd28] sm:$0xff]
  %v438 = vld [vmem:[%s1 + $0xd30] sm:$0xff]
  %v439 = vld [vmem:[%s1 + $0xd38] sm:$0xff]
  %v440 = vld [vmem:[%s1 + $0xd40] sm:$0xff]
  %v441 = vld [vmem:[%s1 + $0xd48] sm:$0xff]
  %v442 = vld [vmem:[%s1 + $0xd50] sm:$0xff]
  %v443 = vld [vmem:[%s1 + $0xd58] sm:$0xff]
  %v444 = vld [vmem:[%s1 + $0xd60] sm:$0xff]
  %v445 = vld [vmem:[%s1 + $0xd68] sm:$0xff]
  %v446 = vld [vmem:[%s1 + $0xd70] sm:$0xff]
  %v447 = vld [vmem:[%s1 + $0xd78] sm:$0xff]
  %v448 = vld [vmem:[%s1 + $0xd80] sm:$0xff]
  %v449 = vld [vmem:[%s1 + $0xd88] sm:$0xff]
  %v450 = vld [vmem:[%s1 + $0xd90] sm:$0xff]
  %v451 = vld [vmem:[%s1 + $0xd98] sm:$0xff]
  %v452 = vld [vmem:[%s1 + $0xda0] sm:$0xff]
  %v453 = vld [vmem:[%s1 + $0xda8] sm:$0xff]
  %v454 = vld [vmem:[%s1 + $0xdb0] sm:$0xff]
  %v455 = vld [vmem:[%s1 + $0xdb8] sm:$0xff]
  %v456 = vld [vmem:[%s1 + $0xdc0] sm:$0xff]
  %v457 = vld [vmem:[%s1 + $0xdc8] sm:$0xff]
  %v458 = vld [vmem:[%s1 + $0xdd0] sm:$0xff]
  %v459 = vld [vmem:[%s1 + $0xdd8] sm:$0xff]
  %v460 = vld [vmem:[%s1 + $0xde0] sm:$0xff]
  %v461 = vld [vmem:[%s1 + $0xde8] sm:$0xff]
  %v462 = vld [vmem:[%s1 + $0xdf0] sm:$0xff]
  %v463 = vld [vmem:[%s1 + $0xdf8] sm:$0xff]
  %v464 = vld [vmem:[%s1 + $0xe00] sm:$0xff]
  %v465 = vld [vmem:[%s1 + $0xe08] sm:$0xff]
  %v466 = vld [vmem:[%s1 + $0xe10] sm:$0xff]
  %v467 = vld [vmem:[%s1 + $0xe18] sm:$0xff]
  %v468 = vld [vmem:[%s1 + $0xe20] sm:$0xff]
  %v469 = vld [vmem:[%s1 + $0xe28] sm:$0xff]
  %v470 = vld [vmem:[%s1 + $0xe30] sm:$0xff]
  %v471 = vld [vmem:[%s1 + $0xe38] sm:$0xff]
  %v472 = vld [vmem:[%s1 + $0xe40] sm:$0xff]
  %v473 = vld [vmem:[%s1 + $0xe48] sm:$0xff]
  %v474 = vld [vmem:[%s1 + $0xe50] sm:$0xff]
  %v475 = vld [vmem:[%s1 + $0xe58] sm:$0xff]
  %v476 = vld [vmem:[%s1 + $0xe60] sm:$0xff]
  %v477 = vld [vmem:[%s1 + $0xe68] sm:$0xff]
  %v478 = vld [vmem:[%s1 + $0xe70] sm:$0xff]
  %v479 = vld [vmem:[%s1 + $0xe78] sm:$0xff]
  %v480 = vld [vmem:[%s1 + $0xe80] sm:$0xff]
  %v481 = vld [vmem:[%s1 + $0xe88] sm:$0xff]
  %v482 = vld [vmem:[%s1 + $0xe90] sm:$0xff]
  %v483 = vld [vmem:[%s1 + $0xe98] sm:$0xff]
  %v484 = vld [vmem:[%s1 + $0xea0] sm:$0xff]
  %v485 = vld [vmem:[%s1 + $0xea8] sm:$0xff]
  %v486 = vld [vmem:[%s1 + $0xeb0] sm:$0xff]
  %v487 = vld [vmem:[%s1 + $0xeb8] sm:$0xff]
  %v488 = vld [vmem:[%s1 + $0xec0] sm:$0xff]
  %v489 = vld [vmem:[%s1 + $0xec8] sm:$0xff]
  %v490 = vld [vmem:[%s1 + $0xed0] sm:$0xff]
  %v491 = vld [vmem:[%s1 + $0xed8] sm:$0xff]
  %v492 = vld [vmem:[%s1 + $0xee0] sm:$0xff]
  %v493 = vld [vmem:[%s1 + $0xee8] sm:$0xff]
  %v494 = vld [vmem:[%s1 + $0xef0] sm:$0xff]
  %v495 = vld [vmem:[%s1 + $0xef8] sm:$0xff]
  %v496 = vld [vmem:[%s1 + $0xf00] sm:$0xff]
  %v497 = vld [vmem:[%s1 + $0xf08] sm:$0xff]
  %v498 = vld [vmem:[%s1 + $0xf10] sm:$0xff]
  %v499 = vld [vmem:[%s1 + $0xf18] sm:$0xff]
  %v500 = vld [vmem:[%s1 + $0xf20] sm:$0xff]
  %v501 = vld [vmem:[%s1 + $0xf28] sm:$0xff]
  %v502 = vld [vmem:[%s1 + $0xf30] sm:$0xff]
  %v503 = vld [vmem:[%s1 + $0xf38] sm:$0xff]
  %v504 = vld [vmem:[%s1 + $0xf40] sm:$0xff]
  %v505 = vld [vmem:[%s1 + $0xf48] sm:$0xff]
  %v506 = vld [vmem:[%s1 + $0xf50] sm:$0xff]
  %v507 = vld [vmem:[%s1 + $0xf58] sm:$0xff]
  %v508 = vld [vmem:[%s1 + $0xf60] sm:$0xff]
  %v509 = vld [vmem:[%s1 + $0xf68] sm:$0xff]
  %v510 = vld [vmem:[%s1 + $0xf70] sm:$0xff]
  %v511 = vld [vmem:[%s1 + $0xf78] sm:$0xff]
  %v512 = vld [vmem:[%s1 + $0xf80] sm:$0xff]
  %v513 = vld [vmem:[%s1 + $0xf88] sm:$0xff]
  %v514 = vld [vmem:[%s1 + $0xf90] sm:$0xff]
  %v515 = vld [vmem:[%s1 + $0xf98] sm:$0xff]
  %v516 = vld [vmem:[%s1 + $0xfa0] sm:$0xff]
  %v517 = vld [vmem:[%s1 + $0xfa8] sm:$0xff]
  %v518 = vld [vmem:[%s1 + $0xfb0] sm:$0xff]
  %v519 = vld [vmem:[%s1 + $0xfb8] sm:$0xff]
  %v520 = vld [vmem:[%s1 + $0xfc0] sm:$0xff]
  %v521 = vld [vmem:[%s1 + $0xfc8] sm:$0xff]
  %v522 = vld [vmem:[%s1 + $0xfd0] sm:$0xff]
  %v523 = vld [vmem:[%s1 + $0xfd8] sm:$0xff]
  %v524 = vld [vmem:[%s1 + $0xfe0] sm:$0xff]
  %v525 = vld [vmem:[%s1 + $0xfe8] sm:$0xff]
  %v526 = vld [vmem:[%s1 + $0xff0] sm:$0xff]
  %v527 = vld [vmem:[%s1 + $0xff8] sm:$0xff]
  %v528 = vld [vmem:[%s2] sm:$0xf]
  %v530 = vperm.slane %v528, 0
  %v531 = vperm.slane %v528, 1
  %v532 = vperm.slane %v528, 2
  %v533 = vperm.slane %v528, 3
  %540 = vst [vmem:[#allocation1] ss:$4 sm:$0xff] %v14
  %s541 = scalar_lea.vmem [#allocation1], 32
  %542 = vst [vmem:[%s541] ss:$4 sm:$0xff] %v15
  %v543 = vld.sshfl [vmem:[#allocation1] sm:$0xff pattern:$0x73625140]
  %v544 = vld.sshfl [vmem:[#allocation1 + $0x8] sm:$0xff pattern:$0x73625140]
  %v545 = vld.sshfl [vmem:[#allocation1 + $0x10] sm:$0xff pattern:$0x73625140]
  %v546 = vld.sshfl [vmem:[#allocation1 + $0x18] sm:$0xff pattern:$0x73625140]
  %v547 = vld.sshfl [vmem:[#allocation1 + $0x20] sm:$0xff pattern:$0x73625140]
  %v548 = vld.sshfl [vmem:[#allocation1 + $0x28] sm:$0xff pattern:$0x73625140]
  %v549 = vld.sshfl [vmem:[#allocation1 + $0x30] sm:$0xff pattern:$0x73625140]
  %v550 = vld.sshfl [vmem:[#allocation1 + $0x38] sm:$0xff pattern:$0x73625140]
  %559 = vmatpush.msra.mxu0 %v76
  %560 = vmatpush.msra.mxu0 %v72
  %561 = vmatpush.msra.mxu0 %v68
  %562 = vmatpush.msra.mxu0 %v64
  %563 = vmatpush.msra.mxu0 %v60
  %564 = vmatpush.msra.mxu0 %v56
  %565 = vmatpush.msra.mxu0 %v52
  %566 = vmatpush.msra.mxu0 %v48
  %567 = vmatpush.msra.mxu0 %v44
  %568 = vmatpush.msra.mxu0 %v40
  %569 = vmatpush.msra.mxu0 %v36
  %570 = vmatpush.msra.mxu0 %v32
  %571 = vmatpush.msra.mxu0 %v28
  %572 = vmatpush.msra.mxu0 %v24
  %573 = vmatpush.msra.mxu0 %v20
  %574 = vmatpush.msra.mxu0 %v16
  %575 = vmatmul.f32.gmra.mxu0 %v543
  %v576 = vpop.f32.mrf.mxu0
  %v577 = vadd.f32 %v530, %v576
  %578 = vdwg.mxu0
  %579 = vmatpush.msra.mxu0 %v140
  %580 = vmatpush.msra.mxu0 %v136
  %581 = vmatpush.msra.mxu0 %v132
  %582 = vmatpush.msra.mxu0 %v128
  %583 = vmatpush.msra.mxu0 %v124
  %584 = vmatpush.msra.mxu0 %v120
  %585 = vmatpush.msra.mxu0 %v116
  %586 = vmatpush.msra.mxu0 %v112
  %587 = vmatpush.msra.mxu0 %v108
  %588 = vmatpush.msra.mxu0 %v104
  %589 = vmatpush.msra.mxu0 %v100
  %590 = vmatpush.msra.mxu0 %v96
  %591 = vmatpush.msra.mxu0 %v92
  %592 = vmatpush.msra.mxu0 %v88
  %593 = vmatpush.msra.mxu0 %v84
  %594 = vmatpush.msra.mxu0 %v80
  %595 = vmatmul.f32.gmra.mxu0 %v544
  %v596 = vpop.f32.mrf.mxu0
  %v597 = vadd.f32 %v577, %v596
  %598 = vdwg.mxu0
  %599 = vmatpush.msra.mxu0 %v204
  %600 = vmatpush.msra.mxu0 %v200
  %601 = vmatpush.msra.mxu0 %v196
  %602 = vmatpush.msra.mxu0 %v192
  %603 = vmatpush.msra.mxu0 %v188
  %604 = vmatpush.msra.mxu0 %v184
  %605 = vmatpush.msra.mxu0 %v180
  %606 = vmatpush.msra.mxu0 %v176
  %607 = vmatpush.msra.mxu0 %v172
  %608 = vmatpush.msra.mxu0 %v168
  %609 = vmatpush.msra.mxu0 %v164
  %610 = vmatpush.msra.mxu0 %v160
  %611 = vmatpush.msra.mxu0 %v156
  %612 = vmatpush.msra.mxu0 %v152
  %613 = vmatpush.msra.mxu0 %v148
  %614 = vmatpush.msra.mxu0 %v144
  %615 = vmatmul.f32.gmra.mxu0 %v545
  %v616 = vpop.f32.mrf.mxu0
  %v617 = vadd.f32 %v597, %v616
  %618 = vdwg.mxu0
  %619 = vmatpush.msra.mxu0 %v268
  %620 = vmatpush.msra.mxu0 %v264
  %621 = vmatpush.msra.mxu0 %v260
  %622 = vmatpush.msra.mxu0 %v256
  %623 = vmatpush.msra.mxu0 %v252
  %624 = vmatpush.msra.mxu0 %v248
  %625 = vmatpush.msra.mxu0 %v244
  %626 = vmatpush.msra.mxu0 %v240
  %627 = vmatpush.msra.mxu0 %v236
  %628 = vmatpush.msra.mxu0 %v232
  %629 = vmatpush.msra.mxu0 %v228
  %630 = vmatpush.msra.mxu0 %v224
  %631 = vmatpush.msra.mxu0 %v220
  %632 = vmatpush.msra.mxu0 %v216
  %633 = vmatpush.msra.mxu0 %v212
  %634 = vmatpush.msra.mxu0 %v208
  %635 = vmatmul.f32.gmra.mxu0 %v546
  %v636 = vpop.f32.mrf.mxu0
  %v637 = vadd.f32 %v617, %v636
  %638 = vdwg.mxu0
  %639 = vmatpush.msra.mxu0 %v332
  %640 = vmatpush.msra.mxu0 %v328
  %641 = vmatpush.msra.mxu0 %v324
  %642 = vmatpush.msra.mxu0 %v320
  %643 = vmatpush.msra.mxu0 %v316
  %644 = vmatpush.msra.mxu0 %v312
  %645 = vmatpush.msra.mxu0 %v308
  %646 = vmatpush.msra.mxu0 %v304
  %647 = vmatpush.msra.mxu0 %v300
  %648 = vmatpush.msra.mxu0 %v296
  %649 = vmatpush.msra.mxu0 %v292
  %650 = vmatpush.msra.mxu0 %v288
  %651 = vmatpush.msra.mxu0 %v284
  %652 = vmatpush.msra.mxu0 %v280
  %653 = vmatpush.msra.mxu0 %v276
  %654 = vmatpush.msra.mxu0 %v272
  %655 = vmatmul.f32.gmra.mxu0 %v547
  %v656 = vpop.f32.mrf.mxu0
  %v657 = vadd.f32 %v637, %v656
  %658 = vdwg.mxu0
  %659 = vmatpush.msra.mxu0 %v396
  %660 = vmatpush.msra.mxu0 %v392
  %661 = vmatpush.msra.mxu0 %v388
  %662 = vmatpush.msra.mxu0 %v384
  %663 = vmatpush.msra.mxu0 %v380
  %664 = vmatpush.msra.mxu0 %v376
  %665 = vmatpush.msra.mxu0 %v372
  %666 = vmatpush.msra.mxu0 %v368
  %667 = vmatpush.msra.mxu0 %v364
  %668 = vmatpush.msra.mxu0 %v360
  %669 = vmatpush.msra.mxu0 %v356
  %670 = vmatpush.msra.mxu0 %v352
  %671 = vmatpush.msra.mxu0 %v348
  %672 = vmatpush.msra.mxu0 %v344
  %673 = vmatpush.msra.mxu0 %v340
  %674 = vmatpush.msra.mxu0 %v336
  %675 = vmatmul.f32.gmra.mxu0 %v548
  %v676 = vpop.f32.mrf.mxu0
  %v677 = vadd.f32 %v657, %v676
  %678 = vdwg.mxu0
  %679 = vmatpush.msra.mxu0 %v460
  %680 = vmatpush.msra.mxu0 %v456
  %681 = vmatpush.msra.mxu0 %v452
  %682 = vmatpush.msra.mxu0 %v448
  %683 = vmatpush.msra.mxu0 %v444
  %684 = vmatpush.msra.mxu0 %v440
  %685 = vmatpush.msra.mxu0 %v436
  %686 = vmatpush.msra.mxu0 %v432
  %687 = vmatpush.msra.mxu0 %v428
  %688 = vmatpush.msra.mxu0 %v424
  %689 = vmatpush.msra.mxu0 %v420
  %690 = vmatpush.msra.mxu0 %v416
  %691 = vmatpush.msra.mxu0 %v412
  %692 = vmatpush.msra.mxu0 %v408
  %693 = vmatpush.msra.mxu0 %v404
  %694 = vmatpush.msra.mxu0 %v400
  %695 = vmatmul.f32.gmra.mxu0 %v549
  %v696 = vpop.f32.mrf.mxu0
  %v697 = vadd.f32 %v677, %v696
  %698 = vdwg.mxu0
  %699 = vmatpush.msra.mxu0 %v524
  %700 = vmatpush.msra.mxu0 %v520
  %701 = vmatpush.msra.mxu0 %v516
  %702 = vmatpush.msra.mxu0 %v512
  %703 = vmatpush.msra.mxu0 %v508
  %704 = vmatpush.msra.mxu0 %v504
  %705 = vmatpush.msra.mxu0 %v500
  %706 = vmatpush.msra.mxu0 %v496
  %707 = vmatpush.msra.mxu0 %v492
  %708 = vmatpush.msra.mxu0 %v488
  %709 = vmatpush.msra.mxu0 %v484
  %710 = vmatpush.msra.mxu0 %v480
  %711 = vmatpush.msra.mxu0 %v476
  %712 = vmatpush.msra.mxu0 %v472
  %713 = vmatpush.msra.mxu0 %v468
  %714 = vmatpush.msra.mxu0 %v464
  %715 = vmatmul.f32.gmra.mxu0 %v550
  %v716 = vpop.f32.mrf.mxu0
  %v717 = vadd.f32 %v697, %v716
  %718 = vdwg.mxu0
  %719 = vmatpush.msra.mxu0 %v77
  %720 = vmatpush.msra.mxu0 %v73
  %721 = vmatpush.msra.mxu0 %v69
  %722 = vmatpush.msra.mxu0 %v65
  %723 = vmatpush.msra.mxu0 %v61
  %724 = vmatpush.msra.mxu0 %v57
  %725 = vmatpush.msra.mxu0 %v53
  %726 = vmatpush.msra.mxu0 %v49
  %727 = vmatpush.msra.mxu0 %v45
  %728 = vmatpush.msra.mxu0 %v41
  %729 = vmatpush.msra.mxu0 %v37
  %730 = vmatpush.msra.mxu0 %v33
  %731 = vmatpush.msra.mxu0 %v29
  %732 = vmatpush.msra.mxu0 %v25
  %733 = vmatpush.msra.mxu0 %v21
  %734 = vmatpush.msra.mxu0 %v17
  %735 = vmatmul.f32.gmra.mxu0 %v543
  %v736 = vpop.f32.mrf.mxu0
  %v737 = vadd.f32 %v531, %v736
  %738 = vdwg.mxu0
  %739 = vmatpush.msra.mxu0 %v141
  %740 = vmatpush.msra.mxu0 %v137
  %741 = vmatpush.msra.mxu0 %v133
  %742 = vmatpush.msra.mxu0 %v129
  %743 = vmatpush.msra.mxu0 %v125
  %744 = vmatpush.msra.mxu0 %v121
  %745 = vmatpush.msra.mxu0 %v117
  %746 = vmatpush.msra.mxu0 %v113
  %747 = vmatpush.msra.mxu0 %v109
  %748 = vmatpush.msra.mxu0 %v105
  %749 = vmatpush.msra.mxu0 %v101
  %750 = vmatpush.msra.mxu0 %v97
  %751 = vmatpush.msra.mxu0 %v93
  %752 = vmatpush.msra.mxu0 %v89
  %753 = vmatpush.msra.mxu0 %v85
  %754 = vmatpush.msra.mxu0 %v81
  %755 = vmatmul.f32.gmra.mxu0 %v544
  %v756 = vpop.f32.mrf.mxu0
  %v757 = vadd.f32 %v737, %v756
  %758 = vdwg.mxu0
  %759 = vmatpush.msra.mxu0 %v205
  %760 = vmatpush.msra.mxu0 %v201
  %761 = vmatpush.msra.mxu0 %v197
  %762 = vmatpush.msra.mxu0 %v193
  %763 = vmatpush.msra.mxu0 %v189
  %764 = vmatpush.msra.mxu0 %v185
  %765 = vmatpush.msra.mxu0 %v181
  %766 = vmatpush.msra.mxu0 %v177
  %767 = vmatpush.msra.mxu0 %v173
  %768 = vmatpush.msra.mxu0 %v169
  %769 = vmatpush.msra.mxu0 %v165
  %770 = vmatpush.msra.mxu0 %v161
  %771 = vmatpush.msra.mxu0 %v157
  %772 = vmatpush.msra.mxu0 %v153
  %773 = vmatpush.msra.mxu0 %v149
  %774 = vmatpush.msra.mxu0 %v145
  %775 = vmatmul.f32.gmra.mxu0 %v545
  %v776 = vpop.f32.mrf.mxu0
  %v777 = vadd.f32 %v757, %v776
  %778 = vdwg.mxu0
  %779 = vmatpush.msra.mxu0 %v269
  %780 = vmatpush.msra.mxu0 %v265
  %781 = vmatpush.msra.mxu0 %v261
  %782 = vmatpush.msra.mxu0 %v257
  %783 = vmatpush.msra.mxu0 %v253
  %784 = vmatpush.msra.mxu0 %v249
  %785 = vmatpush.msra.mxu0 %v245
  %786 = vmatpush.msra.mxu0 %v241
  %787 = vmatpush.msra.mxu0 %v237
  %788 = vmatpush.msra.mxu0 %v233
  %789 = vmatpush.msra.mxu0 %v229
  %790 = vmatpush.msra.mxu0 %v225
  %791 = vmatpush.msra.mxu0 %v221
  %792 = vmatpush.msra.mxu0 %v217
  %793 = vmatpush.msra.mxu0 %v213
  %794 = vmatpush.msra.mxu0 %v209
  %795 = vmatmul.f32.gmra.mxu0 %v546
  %v796 = vpop.f32.mrf.mxu0
  %v797 = vadd.f32 %v777, %v796
  %798 = vdwg.mxu0
  %799 = vmatpush.msra.mxu0 %v333
  %800 = vmatpush.msra.mxu0 %v329
  %801 = vmatpush.msra.mxu0 %v325
  %802 = vmatpush.msra.mxu0 %v321
  %803 = vmatpush.msra.mxu0 %v317
  %804 = vmatpush.msra.mxu0 %v313
  %805 = vmatpush.msra.mxu0 %v309
  %806 = vmatpush.msra.mxu0 %v305
  %807 = vmatpush.msra.mxu0 %v301
  %808 = vmatpush.msra.mxu0 %v297
  %809 = vmatpush.msra.mxu0 %v293
  %810 = vmatpush.msra.mxu0 %v289
  %811 = vmatpush.msra.mxu0 %v285
  %812 = vmatpush.msra.mxu0 %v281
  %813 = vmatpush.msra.mxu0 %v277
  %814 = vmatpush.msra.mxu0 %v273
  %815 = vmatmul.f32.gmra.mxu0 %v547
  %v816 = vpop.f32.mrf.mxu0
  %v817 = vadd.f32 %v797, %v816
  %818 = vdwg.mxu0
  %819 = vmatpush.msra.mxu0 %v397
  %820 = vmatpush.msra.mxu0 %v393
  %821 = vmatpush.msra.mxu0 %v389
  %822 = vmatpush.msra.mxu0 %v385
  %823 = vmatpush.msra.mxu0 %v381
  %824 = vmatpush.msra.mxu0 %v377
  %825 = vmatpush.msra.mxu0 %v373
  %826 = vmatpush.msra.mxu0 %v369
  %827 = vmatpush.msra.mxu0 %v365
  %828 = vmatpush.msra.mxu0 %v361
  %829 = vmatpush.msra.mxu0 %v357
  %830 = vmatpush.msra.mxu0 %v353
  %831 = vmatpush.msra.mxu0 %v349
  %832 = vmatpush.msra.mxu0 %v345
  %833 = vmatpush.msra.mxu0 %v341
  %834 = vmatpush.msra.mxu0 %v337
  %835 = vmatmul.f32.gmra.mxu0 %v548
  %v836 = vpop.f32.mrf.mxu0
  %v837 = vadd.f32 %v817, %v836
  %838 = vdwg.mxu0
  %839 = vmatpush.msra.mxu0 %v461
  %840 = vmatpush.msra.mxu0 %v457
  %841 = vmatpush.msra.mxu0 %v453
  %842 = vmatpush.msra.mxu0 %v449
  %843 = vmatpush.msra.mxu0 %v445
  %844 = vmatpush.msra.mxu0 %v441
  %845 = vmatpush.msra.mxu0 %v437
  %846 = vmatpush.msra.mxu0 %v433
  %847 = vmatpush.msra.mxu0 %v429
  %848 = vmatpush.msra.mxu0 %v425
  %849 = vmatpush.msra.mxu0 %v421
  %850 = vmatpush.msra.mxu0 %v417
  %851 = vmatpush.msra.mxu0 %v413
  %852 = vmatpush.msra.mxu0 %v409
  %853 = vmatpush.msra.mxu0 %v405
  %854 = vmatpush.msra.mxu0 %v401
  %855 = vmatmul.f32.gmra.mxu0 %v549
  %v856 = vpop.f32.mrf.mxu0
  %v857 = vadd.f32 %v837, %v856
  %858 = vdwg.mxu0
  %859 = vmatpush.msra.mxu0 %v525
  %860 = vmatpush.msra.mxu0 %v521
  %861 = vmatpush.msra.mxu0 %v517
  %862 = vmatpush.msra.mxu0 %v513
  %863 = vmatpush.msra.mxu0 %v509
  %864 = vmatpush.msra.mxu0 %v505
  %865 = vmatpush.msra.mxu0 %v501
  %866 = vmatpush.msra.mxu0 %v497
  %867 = vmatpush.msra.mxu0 %v493
  %868 = vmatpush.msra.mxu0 %v489
  %869 = vmatpush.msra.mxu0 %v485
  %870 = vmatpush.msra.mxu0 %v481
  %871 = vmatpush.msra.mxu0 %v477
  %872 = vmatpush.msra.mxu0 %v473
  %873 = vmatpush.msra.mxu0 %v469
  %874 = vmatpush.msra.mxu0 %v465
  %875 = vmatmul.f32.gmra.mxu0 %v550
  %v876 = vpop.f32.mrf.mxu0
  %v877 = vadd.f32 %v857, %v876
  %878 = vdwg.mxu0
  %879 = vmatpush.msra.mxu0 %v78
  %880 = vmatpush.msra.mxu0 %v74
  %881 = vmatpush.msra.mxu0 %v70
  %882 = vmatpush.msra.mxu0 %v66
  %883 = vmatpush.msra.mxu0 %v62
  %884 = vmatpush.msra.mxu0 %v58
  %885 = vmatpush.msra.mxu0 %v54
  %886 = vmatpush.msra.mxu0 %v50
  %887 = vmatpush.msra.mxu0 %v46
  %888 = vmatpush.msra.mxu0 %v42
  %889 = vmatpush.msra.mxu0 %v38
  %890 = vmatpush.msra.mxu0 %v34
  %891 = vmatpush.msra.mxu0 %v30
  %892 = vmatpush.msra.mxu0 %v26
  %893 = vmatpush.msra.mxu0 %v22
  %894 = vmatpush.msra.mxu0 %v18
  %895 = vmatmul.f32.gmra.mxu0 %v543
  %v896 = vpop.f32.mrf.mxu0
  %v897 = vadd.f32 %v532, %v896
  %898 = vdwg.mxu0
  %899 = vmatpush.msra.mxu0 %v142
  %900 = vmatpush.msra.mxu0 %v138
  %901 = vmatpush.msra.mxu0 %v134
  %902 = vmatpush.msra.mxu0 %v130
  %903 = vmatpush.msra.mxu0 %v126
  %904 = vmatpush.msra.mxu0 %v122
  %905 = vmatpush.msra.mxu0 %v118
  %906 = vmatpush.msra.mxu0 %v114
  %907 = vmatpush.msra.mxu0 %v110
  %908 = vmatpush.msra.mxu0 %v106
  %909 = vmatpush.msra.mxu0 %v102
  %910 = vmatpush.msra.mxu0 %v98
  %911 = vmatpush.msra.mxu0 %v94
  %912 = vmatpush.msra.mxu0 %v90
  %913 = vmatpush.msra.mxu0 %v86
  %914 = vmatpush.msra.mxu0 %v82
  %915 = vmatmul.f32.gmra.mxu0 %v544
  %v916 = vpop.f32.mrf.mxu0
  %v917 = vadd.f32 %v897, %v916
  %918 = vdwg.mxu0
  %919 = vmatpush.msra.mxu0 %v206
  %920 = vmatpush.msra.mxu0 %v202
  %921 = vmatpush.msra.mxu0 %v198
  %922 = vmatpush.msra.mxu0 %v194
  %923 = vmatpush.msra.mxu0 %v190
  %924 = vmatpush.msra.mxu0 %v186
  %925 = vmatpush.msra.mxu0 %v182
  %926 = vmatpush.msra.mxu0 %v178
  %927 = vmatpush.msra.mxu0 %v174
  %928 = vmatpush.msra.mxu0 %v170
  %929 = vmatpush.msra.mxu0 %v166
  %930 = vmatpush.msra.mxu0 %v162
  %931 = vmatpush.msra.mxu0 %v158
  %932 = vmatpush.msra.mxu0 %v154
  %933 = vmatpush.msra.mxu0 %v150
  %934 = vmatpush.msra.mxu0 %v146
  %935 = vmatmul.f32.gmra.mxu0 %v545
  %v936 = vpop.f32.mrf.mxu0
  %v937 = vadd.f32 %v917, %v936
  %938 = vdwg.mxu0
  %939 = vmatpush.msra.mxu0 %v270
  %940 = vmatpush.msra.mxu0 %v266
  %941 = vmatpush.msra.mxu0 %v262
  %942 = vmatpush.msra.mxu0 %v258
  %943 = vmatpush.msra.mxu0 %v254
  %944 = vmatpush.msra.mxu0 %v250
  %945 = vmatpush.msra.mxu0 %v246
  %946 = vmatpush.msra.mxu0 %v242
  %947 = vmatpush.msra.mxu0 %v238
  %948 = vmatpush.msra.mxu0 %v234
  %949 = vmatpush.msra.mxu0 %v230
  %950 = vmatpush.msra.mxu0 %v226
  %951 = vmatpush.msra.mxu0 %v222
  %952 = vmatpush.msra.mxu0 %v218
  %953 = vmatpush.msra.mxu0 %v214
  %954 = vmatpush.msra.mxu0 %v210
  %955 = vmatmul.f32.gmra.mxu0 %v546
  %v956 = vpop.f32.mrf.mxu0
  %v957 = vadd.f32 %v937, %v956
  %958 = vdwg.mxu0
  %959 = vmatpush.msra.mxu0 %v334
  %960 = vmatpush.msra.mxu0 %v330
  %961 = vmatpush.msra.mxu0 %v326
  %962 = vmatpush.msra.mxu0 %v322
  %963 = vmatpush.msra.mxu0 %v318
  %964 = vmatpush.msra.mxu0 %v314
  %965 = vmatpush.msra.mxu0 %v310
  %966 = vmatpush.msra.mxu0 %v306
  %967 = vmatpush.msra.mxu0 %v302
  %968 = vmatpush.msra.mxu0 %v298
  %969 = vmatpush.msra.mxu0 %v294
  %970 = vmatpush.msra.mxu0 %v290
  %971 = vmatpush.msra.mxu0 %v286
  %972 = vmatpush.msra.mxu0 %v282
  %973 = vmatpush.msra.mxu0 %v278
  %974 = vmatpush.msra.mxu0 %v274
  %975 = vmatmul.f32.gmra.mxu0 %v547
  %v976 = vpop.f32.mrf.mxu0
  %v977 = vadd.f32 %v957, %v976
  %978 = vdwg.mxu0
  %979 = vmatpush.msra.mxu0 %v398
  %980 = vmatpush.msra.mxu0 %v394
  %981 = vmatpush.msra.mxu0 %v390
  %982 = vmatpush.msra.mxu0 %v386
  %983 = vmatpush.msra.mxu0 %v382
  %984 = vmatpush.msra.mxu0 %v378
  %985 = vmatpush.msra.mxu0 %v374
  %986 = vmatpush.msra.mxu0 %v370
  %987 = vmatpush.msra.mxu0 %v366
  %988 = vmatpush.msra.mxu0 %v362
  %989 = vmatpush.msra.mxu0 %v358
  %990 = vmatpush.msra.mxu0 %v354
  %991 = vmatpush.msra.mxu0 %v350
  %992 = vmatpush.msra.mxu0 %v346
  %993 = vmatpush.msra.mxu0 %v342
  %994 = vmatpush.msra.mxu0 %v338
  %995 = vmatmul.f32.gmra.mxu0 %v548
  %v996 = vpop.f32.mrf.mxu0
  %v997 = vadd.f32 %v977, %v996
  %998 = vdwg.mxu0
  %999 = vmatpush.msra.mxu0 %v462
  %1000 = vmatpush.msra.mxu0 %v458
  %1001 = vmatpush.msra.mxu0 %v454
  %1002 = vmatpush.msra.mxu0 %v450
  %1003 = vmatpush.msra.mxu0 %v446
  %1004 = vmatpush.msra.mxu0 %v442
  %1005 = vmatpush.msra.mxu0 %v438
  %1006 = vmatpush.msra.mxu0 %v434
  %1007 = vmatpush.msra.mxu0 %v430
  %1008 = vmatpush.msra.mxu0 %v426
  %1009 = vmatpush.msra.mxu0 %v422
  %1010 = vmatpush.msra.mxu0 %v418
  %1011 = vmatpush.msra.mxu0 %v414
  %1012 = vmatpush.msra.mxu0 %v410
  %1013 = vmatpush.msra.mxu0 %v406
  %1014 = vmatpush.msra.mxu0 %v402
  %1015 = vmatmul.f32.gmra.mxu0 %v549
  %v1016 = vpop.f32.mrf.mxu0
  %v1017 = vadd.f32 %v997, %v1016
  %1018 = vdwg.mxu0
  %1019 = vmatpush.msra.mxu0 %v526
  %1020 = vmatpush.msra.mxu0 %v522
  %1021 = vmatpush.msra.mxu0 %v518
  %1022 = vmatpush.msra.mxu0 %v514
  %1023 = vmatpush.msra.mxu0 %v510
  %1024 = vmatpush.msra.mxu0 %v506
  %1025 = vmatpush.msra.mxu0 %v502
  %1026 = vmatpush.msra.mxu0 %v498
  %1027 = vmatpush.msra.mxu0 %v494
  %1028 = vmatpush.msra.mxu0 %v490
  %1029 = vmatpush.msra.mxu0 %v486
  %1030 = vmatpush.msra.mxu0 %v482
  %1031 = vmatpush.msra.mxu0 %v478
  %1032 = vmatpush.msra.mxu0 %v474
  %1033 = vmatpush.msra.mxu0 %v470
  %1034 = vmatpush.msra.mxu0 %v466
  %1035 = vmatmul.f32.gmra.mxu0 %v550
  %v1036 = vpop.f32.mrf.mxu0
  %v1037 = vadd.f32 %v1017, %v1036
  %1038 = vdwg.mxu0
  %1039 = vmatpush.msra.mxu0 %v79
  %1040 = vmatpush.msra.mxu0 %v75
  %1041 = vmatpush.msra.mxu0 %v71
  %1042 = vmatpush.msra.mxu0 %v67
  %1043 = vmatpush.msra.mxu0 %v63
  %1044 = vmatpush.msra.mxu0 %v59
  %1045 = vmatpush.msra.mxu0 %v55
  %1046 = vmatpush.msra.mxu0 %v51
  %1047 = vmatpush.msra.mxu0 %v47
  %1048 = vmatpush.msra.mxu0 %v43
  %1049 = vmatpush.msra.mxu0 %v39
  %1050 = vmatpush.msra.mxu0 %v35
  %1051 = vmatpush.msra.mxu0 %v31
  %1052 = vmatpush.msra.mxu0 %v27
  %1053 = vmatpush.msra.mxu0 %v23
  %1054 = vmatpush.msra.mxu0 %v19
  %1055 = vmatmul.f32.gmra.mxu0 %v543
  %v1056 = vpop.f32.mrf.mxu0
  %v1057 = vadd.f32 %v533, %v1056
  %1058 = vdwg.mxu0
  %1059 = vmatpush.msra.mxu0 %v143
  %1060 = vmatpush.msra.mxu0 %v139
  %1061 = vmatpush.msra.mxu0 %v135
  %1062 = vmatpush.msra.mxu0 %v131
  %1063 = vmatpush.msra.mxu0 %v127
  %1064 = vmatpush.msra.mxu0 %v123
  %1065 = vmatpush.msra.mxu0 %v119
  %1066 = vmatpush.msra.mxu0 %v115
  %1067 = vmatpush.msra.mxu0 %v111
  %1068 = vmatpush.msra.mxu0 %v107
  %1069 = vmatpush.msra.mxu0 %v103
  %1070 = vmatpush.msra.mxu0 %v99
  %1071 = vmatpush.msra.mxu0 %v95
  %1072 = vmatpush.msra.mxu0 %v91
  %1073 = vmatpush.msra.mxu0 %v87
  %1074 = vmatpush.msra.mxu0 %v83
  %1075 = vmatmul.f32.gmra.mxu0 %v544
  %v1076 = vpop.f32.mrf.mxu0
  %v1077 = vadd.f32 %v1057, %v1076
  %1078 = vdwg.mxu0
  %1079 = vmatpush.msra.mxu0 %v207
  %1080 = vmatpush.msra.mxu0 %v203
  %1081 = vmatpush.msra.mxu0 %v199
  %1082 = vmatpush.msra.mxu0 %v195
  %1083 = vmatpush.msra.mxu0 %v191
  %1084 = vmatpush.msra.mxu0 %v187
  %1085 = vmatpush.msra.mxu0 %v183
  %1086 = vmatpush.msra.mxu0 %v179
  %1087 = vmatpush.msra.mxu0 %v175
  %1088 = vmatpush.msra.mxu0 %v171
  %1089 = vmatpush.msra.mxu0 %v167
  %1090 = vmatpush.msra.mxu0 %v163
  %1091 = vmatpush.msra.mxu0 %v159
  %1092 = vmatpush.msra.mxu0 %v155
  %1093 = vmatpush.msra.mxu0 %v151
  %1094 = vmatpush.msra.mxu0 %v147
  %1095 = vmatmul.f32.gmra.mxu0 %v545
  %v1096 = vpop.f32.mrf.mxu0
  %v1097 = vadd.f32 %v1077, %v1096
  %1098 = vdwg.mxu0
  %1099 = vmatpush.msra.mxu0 %v271
  %1100 = vmatpush.msra.mxu0 %v267
  %1101 = vmatpush.msra.mxu0 %v263
  %1102 = vmatpush.msra.mxu0 %v259
  %1103 = vmatpush.msra.mxu0 %v255
  %1104 = vmatpush.msra.mxu0 %v251
  %1105 = vmatpush.msra.mxu0 %v247
  %1106 = vmatpush.msra.mxu0 %v243
  %1107 = vmatpush.msra.mxu0 %v239
  %1108 = vmatpush.msra.mxu0 %v235
  %1109 = vmatpush.msra.mxu0 %v231
  %1110 = vmatpush.msra.mxu0 %v227
  %1111 = vmatpush.msra.mxu0 %v223
  %1112 = vmatpush.msra.mxu0 %v219
  %1113 = vmatpush.msra.mxu0 %v215
  %1114 = vmatpush.msra.mxu0 %v211
  %1115 = vmatmul.f32.gmra.mxu0 %v546
  %v1116 = vpop.f32.mrf.mxu0
  %v1117 = vadd.f32 %v1097, %v1116
  %1118 = vdwg.mxu0
  %1119 = vmatpush.msra.mxu0 %v335
  %1120 = vmatpush.msra.mxu0 %v331
  %1121 = vmatpush.msra.mxu0 %v327
  %1122 = vmatpush.msra.mxu0 %v323
  %1123 = vmatpush.msra.mxu0 %v319
  %1124 = vmatpush.msra.mxu0 %v315
  %1125 = vmatpush.msra.mxu0 %v311
  %1126 = vmatpush.msra.mxu0 %v307
  %1127 = vmatpush.msra.mxu0 %v303
  %1128 = vmatpush.msra.mxu0 %v299
  %1129 = vmatpush.msra.mxu0 %v295
  %1130 = vmatpush.msra.mxu0 %v291
  %1131 = vmatpush.msra.mxu0 %v287
  %1132 = vmatpush.msra.mxu0 %v283
  %1133 = vmatpush.msra.mxu0 %v279
  %1134 = vmatpush.msra.mxu0 %v275
  %1135 = vmatmul.f32.gmra.mxu0 %v547
  %v1136 = vpop.f32.mrf.mxu0
  %v1137 = vadd.f32 %v1117, %v1136
  %1138 = vdwg.mxu0
  %1139 = vmatpush.msra.mxu0 %v399
  %1140 = vmatpush.msra.mxu0 %v395
  %1141 = vmatpush.msra.mxu0 %v391
  %1142 = vmatpush.msra.mxu0 %v387
  %1143 = vmatpush.msra.mxu0 %v383
  %1144 = vmatpush.msra.mxu0 %v379
  %1145 = vmatpush.msra.mxu0 %v375
  %1146 = vmatpush.msra.mxu0 %v371
  %1147 = vmatpush.msra.mxu0 %v367
  %1148 = vmatpush.msra.mxu0 %v363
  %1149 = vmatpush.msra.mxu0 %v359
  %1150 = vmatpush.msra.mxu0 %v355
  %1151 = vmatpush.msra.mxu0 %v351
  %1152 = vmatpush.msra.mxu0 %v347
  %1153 = vmatpush.msra.mxu0 %v343
  %1154 = vmatpush.msra.mxu0 %v339
  %1155 = vmatmul.f32.gmra.mxu0 %v548
  %v1156 = vpop.f32.mrf.mxu0
  %v1157 = vadd.f32 %v1137, %v1156
  %1158 = vdwg.mxu0
  %1159 = vmatpush.msra.mxu0 %v463
  %1160 = vmatpush.msra.mxu0 %v459
  %1161 = vmatpush.msra.mxu0 %v455
  %1162 = vmatpush.msra.mxu0 %v451
  %1163 = vmatpush.msra.mxu0 %v447
  %1164 = vmatpush.msra.mxu0 %v443
  %1165 = vmatpush.msra.mxu0 %v439
  %1166 = vmatpush.msra.mxu0 %v435
  %1167 = vmatpush.msra.mxu0 %v431
  %1168 = vmatpush.msra.mxu0 %v427
  %1169 = vmatpush.msra.mxu0 %v423
  %1170 = vmatpush.msra.mxu0 %v419
  %1171 = vmatpush.msra.mxu0 %v415
  %1172 = vmatpush.msra.mxu0 %v411
  %1173 = vmatpush.msra.mxu0 %v407
  %1174 = vmatpush.msra.mxu0 %v403
  %1175 = vmatmul.f32.gmra.mxu0 %v549
  %v1176 = vpop.f32.mrf.mxu0
  %v1177 = vadd.f32 %v1157, %v1176
  %1178 = vdwg.mxu0
  %1179 = vmatpush.msra.mxu0 %v527
  %1180 = vmatpush.msra.mxu0 %v523
  %1181 = vmatpush.msra.mxu0 %v519
  %1182 = vmatpush.msra.mxu0 %v515
  %1183 = vmatpush.msra.mxu0 %v511
  %1184 = vmatpush.msra.mxu0 %v507
  %1185 = vmatpush.msra.mxu0 %v503
  %1186 = vmatpush.msra.mxu0 %v499
  %1187 = vmatpush.msra.mxu0 %v495
  %1188 = vmatpush.msra.mxu0 %v491
  %1189 = vmatpush.msra.mxu0 %v487
  %1190 = vmatpush.msra.mxu0 %v483
  %1191 = vmatpush.msra.mxu0 %v479
  %1192 = vmatpush.msra.mxu0 %v475
  %1193 = vmatpush.msra.mxu0 %v471
  %1194 = vmatpush.msra.mxu0 %v467
  %1195 = vmatmul.f32.gmra.mxu0 %v550
  %v1196 = vpop.f32.mrf.mxu0
  %v1197 = vadd.f32 %v1177, %v1196
  %1198 = vdwg.mxu0
  %v1199 = vand.u32 2147483647, %v717
  %v1200 = vand.u32 2147483647, %v877
  %v1201 = vand.u32 2147483647, %v1037
  %v1202 = vand.u32 2147483647, %v1197
  %vm1203 = vcmask 1041408
  %v1204 = vsel %vm1203, %v1199, 0.0
  %v1205 = vsel %vm1203, %v1200, 0.0
  %v1206 = vadd.f32 %v1204, %v1205
  %v1207 = vsel %vm1203, %v1201, 0.0
  %v1208 = vadd.f32 %v1206, %v1207
  %v1209 = vsel %vm1203, %v1202, 0.0
  %v1210 = vadd.f32 %v1208, %v1209
  %1211 = vadd.xlane.f32.xlu0 %v1210
  %v1212 = vpop.xlane.xlu0 %1211
  %v1213 = vmul.f32 %v1212, 0.0013671875
  %vm1214 = vcmp.gt.f32.partialorder %v1199, %v1213
  %vm1215 = vcmp.gt.f32.partialorder %v1200, %v1213
  %vm1216 = vcmp.gt.f32.partialorder %v1201, %v1213
  %vm1217 = vcmp.gt.f32.partialorder %v1202, %v1213
  %v1218 = vsel %vm1214, 1, 0
  %v1219 = vsel %vm1215, 1, 0
  %v1220 = vsel %vm1216, 1, 0
  %v1221 = vsel %vm1217, 1, 0
  %v1222 = vcvt.s32.f32 %v1218
  %v1223 = vcvt.s32.f32 %v1219
  %v1224 = vcvt.s32.f32 %v1220
  %v1225 = vcvt.s32.f32 %v1221
  %v1226 = vsel %vm1203, %v1222, 0.0
  %v1227 = vsel %vm1203, %v1223, 0.0
  %v1228 = vadd.f32 %v1226, %v1227
  %v1229 = vsel %vm1203, %v1224, 0.0
  %v1230 = vadd.f32 %v1228, %v1229
  %v1231 = vsel %vm1203, %v1225, 0.0
  %v1232 = vadd.f32 %v1230, %v1231
  %1233 = vadd.xlane.f32.xlu0 %v1232
  %v1234 = vpop.xlane.xlu0 %1233
  %v1235 = vmul.f32 %v1199, %v1222
  %v1236 = vmul.f32 %v1200, %v1223
  %v1237 = vmul.f32 %v1201, %v1224
  %v1238 = vmul.f32 %v1202, %v1225
  %v1239 = vsel %vm1203, %v1235, 0.0
  %v1240 = vsel %vm1203, %v1236, 0.0
  %v1241 = vadd.f32 %v1239, %v1240
  %v1242 = vsel %vm1203, %v1237, 0.0
  %v1243 = vadd.f32 %v1241, %v1242
  %v1244 = vsel %vm1203, %v1238, 0.0
  %v1245 = vadd.f32 %v1243, %v1244
  %1246 = vadd.xlane.f32.xlu0 %v1245
  %v1247 = vpop.xlane.xlu0 %1246
  %vm1248 = vcmp.gt.f32.partialorder %v1234, 0.0
  %v1249 = vmax.f32 %v1234, 1.0
  %v1250 = vrcp.pop %v1249
  %v1251 = vmul.f32 %v1249, %v1250
  %v1252 = vsub.f32 1.0, %v1251
  %v1253 = vmul.f32 %v1250, %v1252
  %v1254 = vadd.f32 %v1250, %v1253
  %vm1255 = vweird.f32 %v1249
  %vm1256 = vweird.f32 %v1250
  %vm1257 = vmor %vm1255, %vm1256
  %v1258 = vsel %vm1257, %v1250, %v1254
  %v1259 = vand.u32 2147483647, %v1249
  %vm1260 = vcmp.eq.f32.partialorder %v1259, 8.507059e+37
  %v1261 = vand.u32 %v1249, 2147483648
  %v1262 = vor.u32 1.1754944e-38, %v1261
  %v1263 = vsel %vm1260, %v1262, %v1258
  %v1264 = vmul.f32 %v1247, %v1263
  %v1265 = vsel %vm1248, %v1264, 0.0
  %vm1266 = vcmp.gt.f32.partialorder %v717, %v1213
  %vm1267 = vcmp.gt.f32.partialorder %v877, %v1213
  %vm1268 = vcmp.gt.f32.partialorder %v1037, %v1213
  %vm1269 = vcmp.gt.f32.partialorder %v1197, %v1213
  %v1270 = vsel %vm1266, 1, 0
  %v1271 = vsel %vm1267, 1, 0
  %v1272 = vsel %vm1268, 1, 0
  %v1273 = vsel %vm1269, 1, 0
  %v1274 = vcvt.s32.f32 %v1270
  %v1275 = vcvt.s32.f32 %v1271
  %v1276 = vcvt.s32.f32 %v1272
  %v1277 = vcvt.s32.f32 %v1273
  %v1278 = vsub.f32 0.0, %v1213
  %vm1279 = vcmp.lt.f32.partialorder %v717, %v1278
  %vm1280 = vcmp.lt.f32.partialorder %v877, %v1278
  %vm1281 = vcmp.lt.f32.partialorder %v1037, %v1278
  %vm1282 = vcmp.lt.f32.partialorder %v1197, %v1278
  %v1283 = vsel %vm1279, 1, 0
  %v1284 = vsel %vm1280, 1, 0
  %v1285 = vsel %vm1281, 1, 0
  %v1286 = vsel %vm1282, 1, 0
  %v1287 = vcvt.s32.f32 %v1283
  %v1288 = vcvt.s32.f32 %v1284
  %v1289 = vcvt.s32.f32 %v1285
  %v1290 = vcvt.s32.f32 %v1286
  %v1291 = vsub.f32 %v1274, %v1287
  %v1292 = vsub.f32 %v1275, %v1288
  %v1293 = vsub.f32 %v1276, %v1289
  %v1294 = vsub.f32 %v1277, %v1290
  %v1295 = vmul.f32 %v1265, %v1291
  %v1296 = vmul.f32 %v1265, %v1292
  %v1297 = vmul.f32 %v1265, %v1293
  %v1298 = vmul.f32 %v1265, %v1294
  %v1299 = vmax.f32 %v1295, 0.0
  %v1300 = vmax.f32 %v1296, 0.0
  %v1301 = vmax.f32 %v1297, 0.0
  %v1302 = vmax.f32 %v1298, 0.0
  %v1307 = vrot.slane %v1300, 6
  %v1308 = vrot.slane %v1301, 4
  %v1309 = vrot.slane %v1302, 2
  %v1310 = vsel %vm1203, %v1299, %v1307
  %vm1311 = vcmask 1045508
  %v1312 = vsel %vm1311, %v1308, %v1309
  %vm1313 = vcmask 1043456
  %v1314 = vsel %vm1313, %v1310, %v1312
  %1316 = vst [vmem:[%s3] sm:$0xff] %v1314
  // Predicated region
  $region14: #{lenet5_t_forward.6} parent=0 // pred_check
    _
  $region15: #{lenet5_t_forward.6} parent=0 // pred_check_branch
    %1318 = sbr.rel (0) target = $region17
  $region16: #{lenet5_t_forward.6} parent=0 // pred_region
    _
  $region17: #{lenet5_t_forward.6} parent=0 // pred_fallthru
    _
  // Predicated region
  $region18: #{lenet5_t_forward.6} parent=0 // pred_check
    _
  $region19: #{lenet5_t_forward.6} parent=0 // pred_check_branch
    %1320 = sbr.rel (0) target = $region21
  $region20: #{lenet5_t_forward.6} parent=0 // pred_region
    _
  $region21: #{lenet5_t_forward.6} parent=0 // pred_fallthru
    _

</llo_original>
